<compile_context>
chip_gen: v7x
topology: tpu7x:2x2x1
jax: 0.10.0
libtpu: 0.0.40
codegen_flags: <defaults>
</compile_context>

<pallas_src>
import functools

import numpy as np
import jax
import jax.numpy as jnp
from jax.experimental import pallas as pl
from jax.experimental.pallas import tpu as pltpu


# ----------------------------------------------------------------------------
# Static geometry: a common 21x21 spatial "canvas", flattened onto lanes.
# ----------------------------------------------------------------------------
DOUT = 5                 # == int(np.sqrt(32**2)//4 - 3*(5-1)//4)
HC = 21                  # canvas rows  (layer-2's padded-input footprint)
WC = 21                  # canvas cols
NREAL = HC * WC          # 441 real canvas positions
NC = 512                 # lane width of every activation (>= NREAL, mult of 128)
PADR = 128               # zero lane tail so shifted slices never run off
OUT_HW = 32              # final image size
HALF = OUT_HW // 2       # 16 = polyphase half-resolution

# ---- Geometry invariants (review "correctness_concerns") -------------------
_MAX_SHIFT2 = 4 * WC + 4                      # 88: largest layer-2 tap shift
_MAX_SHIFT3 = 1 * WC + 1                      # 22: largest layer-3 phase shift
_LAST_VALID2 = (HC - 5) * WC + (WC - 5)       # 352: last valid layer-2 output
_LAST_VALID3 = (HALF - 1) * WC + (HALF - 1)   # 330: last layer-3 output pos
assert NREAL <= NC and NC % 128 == 0 and PADR % 128 == 0
assert _MAX_SHIFT2 + NC <= NC + PADR          # layer-2 slices stay in-bounds
assert _MAX_SHIFT3 + NC <= NC + PADR          # layer-3 slices stay in-bounds
assert _LAST_VALID2 + _MAX_SHIFT2 <= NREAL - 1   # valid reads hit real canvas
assert _LAST_VALID3 + _MAX_SHIFT3 <= _LAST_VALID2  # layer-3 reads valid act2
assert (WC - 5) + 4 <= WC - 1                 # no row-wrap for valid outputs


# ----------------------------------------------------------------------------
# The fused kernel (one grid step == one batch sample)
# ----------------------------------------------------------------------------
def _decoder_kernel(z_ref, p1_ref, p1b_ref, w2_ref, b2_ref, w3_ref, b3_ref,
                    out_ref, *, n_concepts):
    bi = pl.program_id(0)
    f32 = jnp.float32

    # ---- Layer 1: Linear + ConvTranspose2d(20,16,5,s=2), folded into planes.
    # out1 = P_bias + sum_k z_k * P_k  (each (16, 512)), pairwise-tree summed.
    terms = [p1b_ref[...]] + [z_ref[bi, k] * p1_ref[k]
                              for k in range(n_concepts)]
    while len(terms) > 1:
        nxt = [terms[i] + terms[i + 1] for i in range(0, len(terms) - 1, 2)]
        if len(terms) & 1:
            nxt.append(terms[-1])
        terms = nxt
    # Planes are exactly zero outside the valid canvas region, so ReLU alone
    # reproduces the old mask*ReLU (zeros double as layer-2 padding).
    act1 = jnp.maximum(terms[0], 0.0)                        # (16, 512)

    # ---- Layer 2: ConvTranspose2d(16,8,5) == 25 accumulated (8,16)@(16,512).
    in2 = jnp.concatenate(
        [act1, jnp.zeros((16, PADR), f32)], axis=1)          # (16, 640)
    acc2 = jnp.dot(w2_ref[0], in2[:, 0:NC],
                   preferred_element_type=f32)               # tap (ky,kx)=(0,0)
    for t in range(1, 25):
        off = (t // 5) * WC + (t % 5)
        acc2 = acc2 + jnp.dot(w2_ref[t], in2[:, off:off + NC],
                              preferred_element_type=f32)
    act2 = jnp.maximum(acc2 + b2_ref[...], 0.0)              # (8, 512)

    # ---- Layer 3: ConvTranspose2d(8,nC,2,s=2,p=1) == 4 polyphase matmuls ----
    in3 = jnp.concatenate(
        [act2, jnp.zeros((8, PADR), f32)], axis=1)           # (8, 640)
    for p in range(2):
        for q in range(2):
            d = p * WC + q
            y = jnp.dot(w3_ref[p, q], in3[:, d:d + NC],
                        preferred_element_type=f32) + b3_ref[...]
            # y[c, a*WC + b] == image[c, 2a+p, 2b+q]; ONE lane-dense store.
            out_ref[0, p * 2 + q] = y                        # (nC, 512)


# ----------------------------------------------------------------------------
# Host-side helpers (also used by the pure-JAX reference)
# ----------------------------------------------------------------------------
def _conv_transpose_ref(x_nhwc, w_pt, b, *, stride, padding):
    Cin, Cout, kH, kW = w_pt.shape
    w_hwio = jnp.transpose(w_pt[:, :, ::-1, ::-1], (2, 3, 0, 1))
    pad = kH - 1 - padding
    y = jax.lax.conv_general_dilated(
        x_nhwc, w_hwio, window_strides=(1, 1),
        padding=[(pad, pad), (pad, pad)],
        lhs_dilation=(stride, stride),
        dimension_numbers=("NHWC", "HWIO", "NHWC"))
    return y + b


# ----------------------------------------------------------------------------
# One-time parameter preparation (all folds / flips / transposes hoisted)
# ----------------------------------------------------------------------------
def prepare_params(params):
    n_concepts = params["w_lin"].shape[0]
    n_channels = params["w_ct3"].shape[1]
    f32 = jnp.float32

    # -- Fold Linear + CT1 (exact, by linearity) into per-concept planes -----
    #   basis_k = CT1_linear(View(W_lin[k]))            (16, 13, 13)
    #   biasp   = CT1_linear(View(b_lin)) + b_ct1       (16, 13, 13)
    def ct1(x_nchw, bias):
        y = _conv_transpose_ref(jnp.transpose(x_nchw.astype(f32), (0, 2, 3, 1)),
                                params["w_ct1"].astype(f32), bias,
                                stride=2, padding=0)          # (N,13,13,16)
        return jnp.transpose(y, (0, 3, 1, 2))                 # (N,16,13,13)

    basis = ct1(params["w_lin"].astype(f32).reshape(n_concepts, 20, DOUT, DOUT),
                jnp.zeros((16,), f32))                        # (K,16,13,13)
    biasp = ct1(params["b_lin"].astype(f32).reshape(1, 20, DOUT, DOUT),
                params["b_ct1"].astype(f32))[0]               # (16,13,13)

    # Place CT1 outputs at canvas [4:17, 4:17]; zeros elsewhere act as the
    # layer-2 padding AND replace the old valid-region mask; flatten to lanes.
    def to_canvas(x):                        # (..., 16, 13, 13) -> (..., 16, NC)
        c = jnp.zeros(x.shape[:-2] + (HC, WC), f32)
        c = c.at[..., 4:4 + 13, 4:4 + 13].set(x)
        c = c.reshape(x.shape[:-2] + (NREAL,))
        return jnp.pad(c, [(0, 0)] * (c.ndim - 1) + [(0, NC - NREAL)])

    p1 = to_canvas(basis)                    # (n_concepts, 16, NC)
    p1b = to_canvas(biasp)                   # (16, NC)

    # CT2: flipped kernel as 25 per-tap (cout, cin)=(8,16) matrices.  Tap
    # t = ky*5+kx pairs with canvas lane offset ky*WC+kx in the kernel.
    w2t = jnp.transpose(params["w_ct2"].astype(f32)[:, :, ::-1, ::-1],
                        (2, 3, 1, 0)).reshape(25, 8, 16)

    # CT3 polyphase taps: w3t[p, q] = w_ct3[:, :, 1-p, 1-q]^T  -> (2,2,nC,8)
    w3t = jnp.transpose(params["w_ct3"].astype(f32)[:, :, ::-1, ::-1],
                        (2, 3, 1, 0))

    return {
        "p1": p1, "p1b": p1b,
        "w2t": w2t, "b2": params["b_ct2"].astype(f32).reshape(8, 1),
        "w3t": w3t, "b3": params["b_ct3"].astype(f32).reshape(n_channels, 1),
    }


# ----------------------------------------------------------------------------
# Forward: one pallas_call + wrapper-side crop / polyphase de-interleave
# ----------------------------------------------------------------------------
@jax.jit
def senn_decoder_forward(z, prep):
    """z: (B, n_concepts) -> (B, n_channels, 32, 32) (PyTorch NCHW)."""
    B, n_concepts = z.shape
    n_channels = prep["b3"].shape[0]

    out = pl.pallas_call(
        functools.partial(_decoder_kernel, n_concepts=n_concepts),
        out_shape=jax.ShapeDtypeStruct((B, 4, n_channels, NC), jnp.float32),
        grid=(B,),
        in_specs=[
            pl.BlockSpec((B, n_concepts), lambda b: (0, 0),
                         memory_space=pltpu.MemorySpace.SMEM),
            # Constant index_maps: weights/planes stay resident across steps.
            pl.BlockSpec((n_concepts, 16, NC), lambda b: (0, 0, 0)),
            pl.BlockSpec((16, NC), lambda b: (0, 0)),
            pl.BlockSpec((25, 8, 16), lambda b: (0, 0, 0)),
            pl.BlockSpec((8, 1), lambda b: (0, 0)),
            pl.BlockSpec((2, 2, n_channels, 8), lambda b: (0, 0, 0, 0)),
            pl.BlockSpec((n_channels, 1), lambda b: (0, 0)),
        ],
        out_specs=pl.BlockSpec((1, 4, n_channels, NC), lambda b: (b, 0, 0, 0)),
        compiler_params=pltpu.CompilerParams(
            dimension_semantics=("parallel",)),
    )(z, prep["p1"], prep["p1b"], prep["w2t"], prep["b2"],
      prep["w3t"], prep["b3"])

    # Lane-dense kernel output -> crop + polyphase de-interleave (cheap XLA):
    #   out[b, p*2+q, c, a*WC + w] == image[b, c, 2a+p, 2w+q]
    o = out[:, :, :, :NREAL].reshape(B, 2, 2, n_channels, HC, WC)
    o = o[:, :, :, :, :HALF, :HALF]                  # (B, 2, 2, nC, 16, 16)
    o = jnp.transpose(o, (0, 3, 4, 1, 5, 2))         # (B, nC, 16, p, 16, q)
    return o.reshape(B, n_channels, OUT_HW, OUT_HW)


# ----------------------------------------------------------------------------
# Pure-JAX reference (correctness check)
# ----------------------------------------------------------------------------
def senn_decoder_reference(z, params):
    B = z.shape[0]
    h = z @ params["w_lin"] + params["b_lin"]
    x = h.reshape(B, 20, DOUT, DOUT)
    x = jnp.transpose(x, (0, 2, 3, 1))
    x = jax.nn.relu(_conv_transpose_ref(x, params["w_ct1"], params["b_ct1"],
                                        stride=2, padding=0))
    x = jax.nn.relu(_conv_transpose_ref(x, params["w_ct2"], params["b_ct2"],
                                        stride=1, padding=0))
    x = _conv_transpose_ref(x, params["w_ct3"], params["b_ct3"],
                            stride=2, padding=1)
    return jnp.transpose(x, (0, 3, 1, 2))


# ----------------------------------------------------------------------------
# Main
# ----------------------------------------------------------------------------
if __name__ == "__main__":
    B, n_concepts, n_channels = 2, 4, 3
    dout = int(np.sqrt(32 ** 2) // 4 - 3 * (5 - 1) // 4)   # == 5 == DOUT
    assert dout == DOUT

    key = jax.random.PRNGKey(0)
    ks = jax.random.split(key, 9)
    s = 0.1
    params = {
        # Linear(n_concepts, 20*dout*dout), stored as (in, out)
        "w_lin": s * jax.random.normal(ks[0], (n_concepts, 20 * dout * dout), jnp.float32),
        "b_lin": s * jax.random.normal(ks[1], (20 * dout * dout,), jnp.float32),
        # ConvTranspose2d(20, 16, 5, stride=2): PyTorch weight (Cin, Cout, kH, kW)
        "w_ct1": s * jax.random.normal(ks[2], (20, 16, 5, 5), jnp.float32),
        "b_ct1": s * jax.random.normal(ks[3], (16,), jnp.float32),
        # ConvTranspose2d(16, 8, 5)
        "w_ct2": s * jax.random.normal(ks[4], (16, 8, 5, 5), jnp.float32),
        "b_ct2": s * jax.random.normal(ks[5], (8,), jnp.float32),
        # ConvTranspose2d(8, n_channels, 2, stride=2, padding=1)
        "w_ct3": s * jax.random.normal(ks[6], (8, n_channels, 2, 2), jnp.float32),
        "b_ct3": s * jax.random.normal(ks[7], (n_channels,), jnp.float32),
    }
    z = jax.random.normal(ks[8], (B, n_concepts), jnp.float32)

    prep = prepare_params(params)                 # one-time weight prep
    out = jax.block_until_ready(senn_decoder_forward(z, prep))
    assert out.shape == (B, n_channels, 32, 32), out.shape

    ref = jax.block_until_ready(senn_decoder_reference(z, params))
    np.testing.assert_allclose(np.asarray(out), np.asarray(ref),
                               rtol=1e-4, atol=1e-4)

    print("KERNEL_OK")
</pallas_src>

<mosaic_0001>
module attributes {stable_mosaic.version = 11 : i64} {
  func.func @_decoder_kernel(%arg0: i32, %arg1: memref<2x4xf32, #tpu.memory_space<smem>>, %arg2: memref<4x16x512xf32, #tpu.memory_space<vmem>>, %arg3: memref<16x512xf32, #tpu.memory_space<vmem>>, %arg4: memref<25x8x16xf32, #tpu.memory_space<vmem>>, %arg5: memref<8x1xf32, #tpu.memory_space<vmem>>, %arg6: memref<2x2x3x8xf32, #tpu.memory_space<vmem>>, %arg7: memref<3x1xf32, #tpu.memory_space<vmem>>, %arg8: memref<1x4x3x512xf32, #tpu.memory_space<vmem>>) attributes {dimension_semantics = [#tpu.dimension_semantics<parallel>], iteration_bounds = array<i64: 2>, scalar_prefetch = 0 : i64, scratch_operands = 0 : i64, tpu.core_type = #tpu.core_type<tc>, window_params = [{transform_indices = @transform_0, window_bounds = array<i64: 2, 4>}, {pipeline_mode = #tpu.pipeline_mode<synchronous>, transform_indices = @transform_1, window_bounds = array<i64: 4, 16, 512>}, {pipeline_mode = #tpu.pipeline_mode<synchronous>, transform_indices = @transform_2, window_bounds = array<i64: 16, 512>}, {pipeline_mode = #tpu.pipeline_mode<synchronous>, transform_indices = @transform_3, window_bounds = array<i64: 25, 8, 16>}, {pipeline_mode = #tpu.pipeline_mode<synchronous>, transform_indices = @transform_4, window_bounds = array<i64: 8, 1>}, {pipeline_mode = #tpu.pipeline_mode<synchronous>, transform_indices = @transform_5, window_bounds = array<i64: 2, 2, 3, 8>}, {pipeline_mode = #tpu.pipeline_mode<synchronous>, transform_indices = @transform_6, window_bounds = array<i64: 3, 1>}, {transform_indices = @transform_7, window_bounds = array<i64: 1, 4, 3, 512>}]} {
    %c0 = arith.constant 0 : index
    %c0_0 = arith.constant 0 : index
    %0 = vector.load %arg3[%c0, %c0_0] : memref<16x512xf32, #tpu.memory_space<vmem>>, vector<16x512xf32>
    %1 = arith.index_cast %arg0 : i32 to index
    %c0_1 = arith.constant 0 : index
    %2 = memref.load %arg1[%1, %c0_1] : memref<2x4xf32, #tpu.memory_space<smem>>
    %c0_2 = arith.constant 0 : index
    %c0_3 = arith.constant 0 : index
    %c0_4 = arith.constant 0 : index
    %3 = vector.load %arg2[%c0_2, %c0_3, %c0_4] : memref<4x16x512xf32, #tpu.memory_space<vmem>>, vector<1x16x512xf32>
    %4 = vector.shape_cast %3 : vector<1x16x512xf32> to vector<16x512xf32>
    %5 = vector.broadcast %2 : f32 to vector<16x512xf32>
    %6 = arith.mulf %5, %4 : vector<16x512xf32>
    %7 = arith.index_cast %arg0 : i32 to index
    %c1 = arith.constant 1 : index
    %8 = memref.load %arg1[%7, %c1] : memref<2x4xf32, #tpu.memory_space<smem>>
    %c1_5 = arith.constant 1 : index
    %c0_6 = arith.constant 0 : index
    %c0_7 = arith.constant 0 : index
    %9 = vector.load %arg2[%c1_5, %c0_6, %c0_7] : memref<4x16x512xf32, #tpu.memory_space<vmem>>, vector<1x16x512xf32>
    %10 = vector.shape_cast %9 : vector<1x16x512xf32> to vector<16x512xf32>
    %11 = vector.broadcast %8 : f32 to vector<16x512xf32>
    %12 = arith.mulf %11, %10 : vector<16x512xf32>
    %13 = arith.index_cast %arg0 : i32 to index
    %c2 = arith.constant 2 : index
    %14 = memref.load %arg1[%13, %c2] : memref<2x4xf32, #tpu.memory_space<smem>>
    %c2_8 = arith.constant 2 : index
    %c0_9 = arith.constant 0 : index
    %c0_10 = arith.constant 0 : index
    %15 = vector.load %arg2[%c2_8, %c0_9, %c0_10] : memref<4x16x512xf32, #tpu.memory_space<vmem>>, vector<1x16x512xf32>
    %16 = vector.shape_cast %15 : vector<1x16x512xf32> to vector<16x512xf32>
    %17 = vector.broadcast %14 : f32 to vector<16x512xf32>
    %18 = arith.mulf %17, %16 : vector<16x512xf32>
    %19 = arith.index_cast %arg0 : i32 to index
    %c3 = arith.constant 3 : index
    %20 = memref.load %arg1[%19, %c3] : memref<2x4xf32, #tpu.memory_space<smem>>
    %c3_11 = arith.constant 3 : index
    %c0_12 = arith.constant 0 : index
    %c0_13 = arith.constant 0 : index
    %21 = vector.load %arg2[%c3_11, %c0_12, %c0_13] : memref<4x16x512xf32, #tpu.memory_space<vmem>>, vector<1x16x512xf32>
    %22 = vector.shape_cast %21 : vector<1x16x512xf32> to vector<16x512xf32>
    %23 = vector.broadcast %20 : f32 to vector<16x512xf32>
    %24 = arith.mulf %23, %22 : vector<16x512xf32>
    %25 = arith.addf %0, %6 : vector<16x512xf32>
    %26 = arith.addf %12, %18 : vector<16x512xf32>
    %27 = arith.addf %25, %26 : vector<16x512xf32>
    %28 = arith.addf %27, %24 : vector<16x512xf32>
    %cst = arith.constant 0.000000e+00 : f32
    %29 = vector.broadcast %cst : f32 to vector<16x512xf32>
    %30 = arith.maximumf %28, %29 : vector<16x512xf32>
    %cst_14 = arith.constant 0.000000e+00 : f32
    %31 = vector.broadcast %cst_14 : f32 to vector<16x128xf32>
    %32 = tpu.concatenate %30, %31 in 1 : vector<16x512xf32>, vector<16x128xf32> -> vector<16x640xf32>
    %c0_15 = arith.constant 0 : index
    %c0_16 = arith.constant 0 : index
    %c0_17 = arith.constant 0 : index
    %33 = vector.load %arg4[%c0_15, %c0_16, %c0_17] : memref<25x8x16xf32, #tpu.memory_space<vmem>>, vector<1x8x16xf32>
    %34 = vector.shape_cast %33 : vector<1x8x16xf32> to vector<8x16xf32>
    %35 = vector.extract_strided_slice %32 {offsets = [0, 0], sizes = [16, 512], strides = [1, 1]} : vector<16x640xf32> to vector<16x512xf32>
    %cst_18 = arith.constant dense<0.000000e+00> : vector<8x512xf32>
    %36 = tpu.matmul %34, %35, %cst_18 {dimension_numbers = #tpu.dot_dimension_numbers<[1], [0], [0], [1], [0, 0, 1, 1], [], []>} : vector<8x16xf32>, vector<16x512xf32>, vector<8x512xf32> -> vector<8x512xf32>
    %c1_19 = arith.constant 1 : index
    %c0_20 = arith.constant 0 : index
    %c0_21 = arith.constant 0 : index
    %37 = vector.load %arg4[%c1_19, %c0_20, %c0_21] : memref<25x8x16xf32, #tpu.memory_space<vmem>>, vector<1x8x16xf32>
    %38 = vector.shape_cast %37 : vector<1x8x16xf32> to vector<8x16xf32>
    %39 = vector.extract_strided_slice %32 {offsets = [0, 1], sizes = [16, 512], strides = [1, 1]} : vector<16x640xf32> to vector<16x512xf32>
    %cst_22 = arith.constant dense<0.000000e+00> : vector<8x512xf32>
    %40 = tpu.matmul %38, %39, %cst_22 {dimension_numbers = #tpu.dot_dimension_numbers<[1], [0], [0], [1], [0, 0, 1, 1], [], []>} : vector<8x16xf32>, vector<16x512xf32>, vector<8x512xf32> -> vector<8x512xf32>
    %41 = arith.addf %36, %40 : vector<8x512xf32>
    %c2_23 = arith.constant 2 : index
    %c0_24 = arith.constant 0 : index
    %c0_25 = arith.constant 0 : index
    %42 = vector.load %arg4[%c2_23, %c0_24, %c0_25] : memref<25x8x16xf32, #tpu.memory_space<vmem>>, vector<1x8x16xf32>
    %43 = vector.shape_cast %42 : vector<1x8x16xf32> to vector<8x16xf32>
    %44 = vector.extract_strided_slice %32 {offsets = [0, 2], sizes = [16, 512], strides = [1, 1]} : vector<16x640xf32> to vector<16x512xf32>
    %cst_26 = arith.constant dense<0.000000e+00> : vector<8x512xf32>
    %45 = tpu.matmul %43, %44, %cst_26 {dimension_numbers = #tpu.dot_dimension_numbers<[1], [0], [0], [1], [0, 0, 1, 1], [], []>} : vector<8x16xf32>, vector<16x512xf32>, vector<8x512xf32> -> vector<8x512xf32>
    %46 = arith.addf %41, %45 : vector<8x512xf32>
    %c3_27 = arith.constant 3 : index
    %c0_28 = arith.constant 0 : index
    %c0_29 = arith.constant 0 : index
    %47 = vector.load %arg4[%c3_27, %c0_28, %c0_29] : memref<25x8x16xf32, #tpu.memory_space<vmem>>, vector<1x8x16xf32>
    %48 = vector.shape_cast %47 : vector<1x8x16xf32> to vector<8x16xf32>
    %49 = vector.extract_strided_slice %32 {offsets = [0, 3], sizes = [16, 512], strides = [1, 1]} : vector<16x640xf32> to vector<16x512xf32>
    %cst_30 = arith.constant dense<0.000000e+00> : vector<8x512xf32>
    %50 = tpu.matmul %48, %49, %cst_30 {dimension_numbers = #tpu.dot_dimension_numbers<[1], [0], [0], [1], [0, 0, 1, 1], [], []>} : vector<8x16xf32>, vector<16x512xf32>, vector<8x512xf32> -> vector<8x512xf32>
    %51 = arith.addf %46, %50 : vector<8x512xf32>
    %c4 = arith.constant 4 : index
    %c0_31 = arith.constant 0 : index
    %c0_32 = arith.constant 0 : index
    %52 = vector.load %arg4[%c4, %c0_31, %c0_32] : memref<25x8x16xf32, #tpu.memory_space<vmem>>, vector<1x8x16xf32>
    %53 = vector.shape_cast %52 : vector<1x8x16xf32> to vector<8x16xf32>
    %54 = vector.extract_strided_slice %32 {offsets = [0, 4], sizes = [16, 512], strides = [1, 1]} : vector<16x640xf32> to vector<16x512xf32>
    %cst_33 = arith.constant dense<0.000000e+00> : vector<8x512xf32>
    %55 = tpu.matmul %53, %54, %cst_33 {dimension_numbers = #tpu.dot_dimension_numbers<[1], [0], [0], [1], [0, 0, 1, 1], [], []>} : vector<8x16xf32>, vector<16x512xf32>, vector<8x512xf32> -> vector<8x512xf32>
    %56 = arith.addf %51, %55 : vector<8x512xf32>
    %c5 = arith.constant 5 : index
    %c0_34 = arith.constant 0 : index
    %c0_35 = arith.constant 0 : index
    %57 = vector.load %arg4[%c5, %c0_34, %c0_35] : memref<25x8x16xf32, #tpu.memory_space<vmem>>, vector<1x8x16xf32>
    %58 = vector.shape_cast %57 : vector<1x8x16xf32> to vector<8x16xf32>
    %59 = vector.extract_strided_slice %32 {offsets = [0, 21], sizes = [16, 512], strides = [1, 1]} : vector<16x640xf32> to vector<16x512xf32>
    %cst_36 = arith.constant dense<0.000000e+00> : vector<8x512xf32>
    %60 = tpu.matmul %58, %59, %cst_36 {dimension_numbers = #tpu.dot_dimension_numbers<[1], [0], [0], [1], [0, 0, 1, 1], [], []>} : vector<8x16xf32>, vector<16x512xf32>, vector<8x512xf32> -> vector<8x512xf32>
    %61 = arith.addf %56, %60 : vector<8x512xf32>
    %c6 = arith.constant 6 : index
    %c0_37 = arith.constant 0 : index
    %c0_38 = arith.constant 0 : index
    %62 = vector.load %arg4[%c6, %c0_37, %c0_38] : memref<25x8x16xf32, #tpu.memory_space<vmem>>, vector<1x8x16xf32>
    %63 = vector.shape_cast %62 : vector<1x8x16xf32> to vector<8x16xf32>
    %64 = vector.extract_strided_slice %32 {offsets = [0, 22], sizes = [16, 512], strides = [1, 1]} : vector<16x640xf32> to vector<16x512xf32>
    %cst_39 = arith.constant dense<0.000000e+00> : vector<8x512xf32>
    %65 = tpu.matmul %63, %64, %cst_39 {dimension_numbers = #tpu.dot_dimension_numbers<[1], [0], [0], [1], [0, 0, 1, 1], [], []>} : vector<8x16xf32>, vector<16x512xf32>, vector<8x512xf32> -> vector<8x512xf32>
    %66 = arith.addf %61, %65 : vector<8x512xf32>
    %c7 = arith.constant 7 : index
    %c0_40 = arith.constant 0 : index
    %c0_41 = arith.constant 0 : index
    %67 = vector.load %arg4[%c7, %c0_40, %c0_41] : memref<25x8x16xf32, #tpu.memory_space<vmem>>, vector<1x8x16xf32>
    %68 = vector.shape_cast %67 : vector<1x8x16xf32> to vector<8x16xf32>
    %69 = vector.extract_strided_slice %32 {offsets = [0, 23], sizes = [16, 512], strides = [1, 1]} : vector<16x640xf32> to vector<16x512xf32>
    %cst_42 = arith.constant dense<0.000000e+00> : vector<8x512xf32>
    %70 = tpu.matmul %68, %69, %cst_42 {dimension_numbers = #tpu.dot_dimension_numbers<[1], [0], [0], [1], [0, 0, 1, 1], [], []>} : vector<8x16xf32>, vector<16x512xf32>, vector<8x512xf32> -> vector<8x512xf32>
    %71 = arith.addf %66, %70 : vector<8x512xf32>
    %c8 = arith.constant 8 : index
    %c0_43 = arith.constant 0 : index
    %c0_44 = arith.constant 0 : index
    %72 = vector.load %arg4[%c8, %c0_43, %c0_44] : memref<25x8x16xf32, #tpu.memory_space<vmem>>, vector<1x8x16xf32>
    %73 = vector.shape_cast %72 : vector<1x8x16xf32> to vector<8x16xf32>
    %74 = vector.extract_strided_slice %32 {offsets = [0, 24], sizes = [16, 512], strides = [1, 1]} : vector<16x640xf32> to vector<16x512xf32>
    %cst_45 = arith.constant dense<0.000000e+00> : vector<8x512xf32>
    %75 = tpu.matmul %73, %74, %cst_45 {dimension_numbers = #tpu.dot_dimension_numbers<[1], [0], [0], [1], [0, 0, 1, 1], [], []>} : vector<8x16xf32>, vector<16x512xf32>, vector<8x512xf32> -> vector<8x512xf32>
    %76 = arith.addf %71, %75 : vector<8x512xf32>
    %c9 = arith.constant 9 : index
    %c0_46 = arith.constant 0 : index
    %c0_47 = arith.constant 0 : index
    %77 = vector.load %arg4[%c9, %c0_46, %c0_47] : memref<25x8x16xf32, #tpu.memory_space<vmem>>, vector<1x8x16xf32>
    %78 = vector.shape_cast %77 : vector<1x8x16xf32> to vector<8x16xf32>
    %79 = vector.extract_strided_slice %32 {offsets = [0, 25], sizes = [16, 512], strides = [1, 1]} : vector<16x640xf32> to vector<16x512xf32>
    %cst_48 = arith.constant dense<0.000000e+00> : vector<8x512xf32>
    %80 = tpu.matmul %78, %79, %cst_48 {dimension_numbers = #tpu.dot_dimension_numbers<[1], [0], [0], [1], [0, 0, 1, 1], [], []>} : vector<8x16xf32>, vector<16x512xf32>, vector<8x512xf32> -> vector<8x512xf32>
    %81 = arith.addf %76, %80 : vector<8x512xf32>
    %c10 = arith.constant 10 : index
    %c0_49 = arith.constant 0 : index
    %c0_50 = arith.constant 0 : index
    %82 = vector.load %arg4[%c10, %c0_49, %c0_50] : memref<25x8x16xf32, #tpu.memory_space<vmem>>, vector<1x8x16xf32>
    %83 = vector.shape_cast %82 : vector<1x8x16xf32> to vector<8x16xf32>
    %84 = vector.extract_strided_slice %32 {offsets = [0, 42], sizes = [16, 512], strides = [1, 1]} : vector<16x640xf32> to vector<16x512xf32>
    %cst_51 = arith.constant dense<0.000000e+00> : vector<8x512xf32>
    %85 = tpu.matmul %83, %84, %cst_51 {dimension_numbers = #tpu.dot_dimension_numbers<[1], [0], [0], [1], [0, 0, 1, 1], [], []>} : vector<8x16xf32>, vector<16x512xf32>, vector<8x512xf32> -> vector<8x512xf32>
    %86 = arith.addf %81, %85 : vector<8x512xf32>
    %c11 = arith.constant 11 : index
    %c0_52 = arith.constant 0 : index
    %c0_53 = arith.constant 0 : index
    %87 = vector.load %arg4[%c11, %c0_52, %c0_53] : memref<25x8x16xf32, #tpu.memory_space<vmem>>, vector<1x8x16xf32>
    %88 = vector.shape_cast %87 : vector<1x8x16xf32> to vector<8x16xf32>
    %89 = vector.extract_strided_slice %32 {offsets = [0, 43], sizes = [16, 512], strides = [1, 1]} : vector<16x640xf32> to vector<16x512xf32>
    %cst_54 = arith.constant dense<0.000000e+00> : vector<8x512xf32>
    %90 = tpu.matmul %88, %89, %cst_54 {dimension_numbers = #tpu.dot_dimension_numbers<[1], [0], [0], [1], [0, 0, 1, 1], [], []>} : vector<8x16xf32>, vector<16x512xf32>, vector<8x512xf32> -> vector<8x512xf32>
    %91 = arith.addf %86, %90 : vector<8x512xf32>
    %c12 = arith.constant 12 : index
    %c0_55 = arith.constant 0 : index
    %c0_56 = arith.constant 0 : index
    %92 = vector.load %arg4[%c12, %c0_55, %c0_56] : memref<25x8x16xf32, #tpu.memory_space<vmem>>, vector<1x8x16xf32>
    %93 = vector.shape_cast %92 : vector<1x8x16xf32> to vector<8x16xf32>
    %94 = vector.extract_strided_slice %32 {offsets = [0, 44], sizes = [16, 512], strides = [1, 1]} : vector<16x640xf32> to vector<16x512xf32>
    %cst_57 = arith.constant dense<0.000000e+00> : vector<8x512xf32>
    %95 = tpu.matmul %93, %94, %cst_57 {dimension_numbers = #tpu.dot_dimension_numbers<[1], [0], [0], [1], [0, 0, 1, 1], [], []>} : vector<8x16xf32>, vector<16x512xf32>, vector<8x512xf32> -> vector<8x512xf32>
    %96 = arith.addf %91, %95 : vector<8x512xf32>
    %c13 = arith.constant 13 : index
    %c0_58 = arith.constant 0 : index
    %c0_59 = arith.constant 0 : index
    %97 = vector.load %arg4[%c13, %c0_58, %c0_59] : memref<25x8x16xf32, #tpu.memory_space<vmem>>, vector<1x8x16xf32>
    %98 = vector.shape_cast %97 : vector<1x8x16xf32> to vector<8x16xf32>
    %99 = vector.extract_strided_slice %32 {offsets = [0, 45], sizes = [16, 512], strides = [1, 1]} : vector<16x640xf32> to vector<16x512xf32>
    %cst_60 = arith.constant dense<0.000000e+00> : vector<8x512xf32>
    %100 = tpu.matmul %98, %99, %cst_60 {dimension_numbers = #tpu.dot_dimension_numbers<[1], [0], [0], [1], [0, 0, 1, 1], [], []>} : vector<8x16xf32>, vector<16x512xf32>, vector<8x512xf32> -> vector<8x512xf32>
    %101 = arith.addf %96, %100 : vector<8x512xf32>
    %c14 = arith.constant 14 : index
    %c0_61 = arith.constant 0 : index
    %c0_62 = arith.constant 0 : index
    %102 = vector.load %arg4[%c14, %c0_61, %c0_62] : memref<25x8x16xf32, #tpu.memory_space<vmem>>, vector<1x8x16xf32>
    %103 = vector.shape_cast %102 : vector<1x8x16xf32> to vector<8x16xf32>
    %104 = vector.extract_strided_slice %32 {offsets = [0, 46], sizes = [16, 512], strides = [1, 1]} : vector<16x640xf32> to vector<16x512xf32>
    %cst_63 = arith.constant dense<0.000000e+00> : vector<8x512xf32>
    %105 = tpu.matmul %103, %104, %cst_63 {dimension_numbers = #tpu.dot_dimension_numbers<[1], [0], [0], [1], [0, 0, 1, 1], [], []>} : vector<8x16xf32>, vector<16x512xf32>, vector<8x512xf32> -> vector<8x512xf32>
    %106 = arith.addf %101, %105 : vector<8x512xf32>
    %c15 = arith.constant 15 : index
    %c0_64 = arith.constant 0 : index
    %c0_65 = arith.constant 0 : index
    %107 = vector.load %arg4[%c15, %c0_64, %c0_65] : memref<25x8x16xf32, #tpu.memory_space<vmem>>, vector<1x8x16xf32>
    %108 = vector.shape_cast %107 : vector<1x8x16xf32> to vector<8x16xf32>
    %109 = vector.extract_strided_slice %32 {offsets = [0, 63], sizes = [16, 512], strides = [1, 1]} : vector<16x640xf32> to vector<16x512xf32>
    %cst_66 = arith.constant dense<0.000000e+00> : vector<8x512xf32>
    %110 = tpu.matmul %108, %109, %cst_66 {dimension_numbers = #tpu.dot_dimension_numbers<[1], [0], [0], [1], [0, 0, 1, 1], [], []>} : vector<8x16xf32>, vector<16x512xf32>, vector<8x512xf32> -> vector<8x512xf32>
    %111 = arith.addf %106, %110 : vector<8x512xf32>
    %c16 = arith.constant 16 : index
    %c0_67 = arith.constant 0 : index
    %c0_68 = arith.constant 0 : index
    %112 = vector.load %arg4[%c16, %c0_67, %c0_68] : memref<25x8x16xf32, #tpu.memory_space<vmem>>, vector<1x8x16xf32>
    %113 = vector.shape_cast %112 : vector<1x8x16xf32> to vector<8x16xf32>
    %114 = vector.extract_strided_slice %32 {offsets = [0, 64], sizes = [16, 512], strides = [1, 1]} : vector<16x640xf32> to vector<16x512xf32>
    %cst_69 = arith.constant dense<0.000000e+00> : vector<8x512xf32>
    %115 = tpu.matmul %113, %114, %cst_69 {dimension_numbers = #tpu.dot_dimension_numbers<[1], [0], [0], [1], [0, 0, 1, 1], [], []>} : vector<8x16xf32>, vector<16x512xf32>, vector<8x512xf32> -> vector<8x512xf32>
    %116 = arith.addf %111, %115 : vector<8x512xf32>
    %c17 = arith.constant 17 : index
    %c0_70 = arith.constant 0 : index
    %c0_71 = arith.constant 0 : index
    %117 = vector.load %arg4[%c17, %c0_70, %c0_71] : memref<25x8x16xf32, #tpu.memory_space<vmem>>, vector<1x8x16xf32>
    %118 = vector.shape_cast %117 : vector<1x8x16xf32> to vector<8x16xf32>
    %119 = vector.extract_strided_slice %32 {offsets = [0, 65], sizes = [16, 512], strides = [1, 1]} : vector<16x640xf32> to vector<16x512xf32>
    %cst_72 = arith.constant dense<0.000000e+00> : vector<8x512xf32>
    %120 = tpu.matmul %118, %119, %cst_72 {dimension_numbers = #tpu.dot_dimension_numbers<[1], [0], [0], [1], [0, 0, 1, 1], [], []>} : vector<8x16xf32>, vector<16x512xf32>, vector<8x512xf32> -> vector<8x512xf32>
    %121 = arith.addf %116, %120 : vector<8x512xf32>
    %c18 = arith.constant 18 : index
    %c0_73 = arith.constant 0 : index
    %c0_74 = arith.constant 0 : index
    %122 = vector.load %arg4[%c18, %c0_73, %c0_74] : memref<25x8x16xf32, #tpu.memory_space<vmem>>, vector<1x8x16xf32>
    %123 = vector.shape_cast %122 : vector<1x8x16xf32> to vector<8x16xf32>
    %124 = vector.extract_strided_slice %32 {offsets = [0, 66], sizes = [16, 512], strides = [1, 1]} : vector<16x640xf32> to vector<16x512xf32>
    %cst_75 = arith.constant dense<0.000000e+00> : vector<8x512xf32>
    %125 = tpu.matmul %123, %124, %cst_75 {dimension_numbers = #tpu.dot_dimension_numbers<[1], [0], [0], [1], [0, 0, 1, 1], [], []>} : vector<8x16xf32>, vector<16x512xf32>, vector<8x512xf32> -> vector<8x512xf32>
    %126 = arith.addf %121, %125 : vector<8x512xf32>
    %c19 = arith.constant 19 : index
    %c0_76 = arith.constant 0 : index
    %c0_77 = arith.constant 0 : index
    %127 = vector.load %arg4[%c19, %c0_76, %c0_77] : memref<25x8x16xf32, #tpu.memory_space<vmem>>, vector<1x8x16xf32>
    %128 = vector.shape_cast %127 : vector<1x8x16xf32> to vector<8x16xf32>
    %129 = vector.extract_strided_slice %32 {offsets = [0, 67], sizes = [16, 512], strides = [1, 1]} : vector<16x640xf32> to vector<16x512xf32>
    %cst_78 = arith.constant dense<0.000000e+00> : vector<8x512xf32>
    %130 = tpu.matmul %128, %129, %cst_78 {dimension_numbers = #tpu.dot_dimension_numbers<[1], [0], [0], [1], [0, 0, 1, 1], [], []>} : vector<8x16xf32>, vector<16x512xf32>, vector<8x512xf32> -> vector<8x512xf32>
    %131 = arith.addf %126, %130 : vector<8x512xf32>
    %c20 = arith.constant 20 : index
    %c0_79 = arith.constant 0 : index
    %c0_80 = arith.constant 0 : index
    %132 = vector.load %arg4[%c20, %c0_79, %c0_80] : memref<25x8x16xf32, #tpu.memory_space<vmem>>, vector<1x8x16xf32>
    %133 = vector.shape_cast %132 : vector<1x8x16xf32> to vector<8x16xf32>
    %134 = vector.extract_strided_slice %32 {offsets = [0, 84], sizes = [16, 512], strides = [1, 1]} : vector<16x640xf32> to vector<16x512xf32>
    %cst_81 = arith.constant dense<0.000000e+00> : vector<8x512xf32>
    %135 = tpu.matmul %133, %134, %cst_81 {dimension_numbers = #tpu.dot_dimension_numbers<[1], [0], [0], [1], [0, 0, 1, 1], [], []>} : vector<8x16xf32>, vector<16x512xf32>, vector<8x512xf32> -> vector<8x512xf32>
    %136 = arith.addf %131, %135 : vector<8x512xf32>
    %c21 = arith.constant 21 : index
    %c0_82 = arith.constant 0 : index
    %c0_83 = arith.constant 0 : index
    %137 = vector.load %arg4[%c21, %c0_82, %c0_83] : memref<25x8x16xf32, #tpu.memory_space<vmem>>, vector<1x8x16xf32>
    %138 = vector.shape_cast %137 : vector<1x8x16xf32> to vector<8x16xf32>
    %139 = vector.extract_strided_slice %32 {offsets = [0, 85], sizes = [16, 512], strides = [1, 1]} : vector<16x640xf32> to vector<16x512xf32>
    %cst_84 = arith.constant dense<0.000000e+00> : vector<8x512xf32>
    %140 = tpu.matmul %138, %139, %cst_84 {dimension_numbers = #tpu.dot_dimension_numbers<[1], [0], [0], [1], [0, 0, 1, 1], [], []>} : vector<8x16xf32>, vector<16x512xf32>, vector<8x512xf32> -> vector<8x512xf32>
    %141 = arith.addf %136, %140 : vector<8x512xf32>
    %c22 = arith.constant 22 : index
    %c0_85 = arith.constant 0 : index
    %c0_86 = arith.constant 0 : index
    %142 = vector.load %arg4[%c22, %c0_85, %c0_86] : memref<25x8x16xf32, #tpu.memory_space<vmem>>, vector<1x8x16xf32>
    %143 = vector.shape_cast %142 : vector<1x8x16xf32> to vector<8x16xf32>
    %144 = vector.extract_strided_slice %32 {offsets = [0, 86], sizes = [16, 512], strides = [1, 1]} : vector<16x640xf32> to vector<16x512xf32>
    %cst_87 = arith.constant dense<0.000000e+00> : vector<8x512xf32>
    %145 = tpu.matmul %143, %144, %cst_87 {dimension_numbers = #tpu.dot_dimension_numbers<[1], [0], [0], [1], [0, 0, 1, 1], [], []>} : vector<8x16xf32>, vector<16x512xf32>, vector<8x512xf32> -> vector<8x512xf32>
    %146 = arith.addf %141, %145 : vector<8x512xf32>
    %c23 = arith.constant 23 : index
    %c0_88 = arith.constant 0 : index
    %c0_89 = arith.constant 0 : index
    %147 = vector.load %arg4[%c23, %c0_88, %c0_89] : memref<25x8x16xf32, #tpu.memory_space<vmem>>, vector<1x8x16xf32>
    %148 = vector.shape_cast %147 : vector<1x8x16xf32> to vector<8x16xf32>
    %149 = vector.extract_strided_slice %32 {offsets = [0, 87], sizes = [16, 512], strides = [1, 1]} : vector<16x640xf32> to vector<16x512xf32>
    %cst_90 = arith.constant dense<0.000000e+00> : vector<8x512xf32>
    %150 = tpu.matmul %148, %149, %cst_90 {dimension_numbers = #tpu.dot_dimension_numbers<[1], [0], [0], [1], [0, 0, 1, 1], [], []>} : vector<8x16xf32>, vector<16x512xf32>, vector<8x512xf32> -> vector<8x512xf32>
    %151 = arith.addf %146, %150 : vector<8x512xf32>
    %c24 = arith.constant 24 : index
    %c0_91 = arith.constant 0 : index
    %c0_92 = arith.constant 0 : index
    %152 = vector.load %arg4[%c24, %c0_91, %c0_92] : memref<25x8x16xf32, #tpu.memory_space<vmem>>, vector<1x8x16xf32>
    %153 = vector.shape_cast %152 : vector<1x8x16xf32> to vector<8x16xf32>
    %154 = vector.extract_strided_slice %32 {offsets = [0, 88], sizes = [16, 512], strides = [1, 1]} : vector<16x640xf32> to vector<16x512xf32>
    %cst_93 = arith.constant dense<0.000000e+00> : vector<8x512xf32>
    %155 = tpu.matmul %153, %154, %cst_93 {dimension_numbers = #tpu.dot_dimension_numbers<[1], [0], [0], [1], [0, 0, 1, 1], [], []>} : vector<8x16xf32>, vector<16x512xf32>, vector<8x512xf32> -> vector<8x512xf32>
    %156 = arith.addf %151, %155 : vector<8x512xf32>
    %c0_94 = arith.constant 0 : index
    %c0_95 = arith.constant 0 : index
    %157 = vector.load %arg5[%c0_94, %c0_95] : memref<8x1xf32, #tpu.memory_space<vmem>>, vector<8x1xf32>
    %158 = vector.broadcast %157 : vector<8x1xf32> to vector<8x512xf32>
    %159 = arith.addf %156, %158 : vector<8x512xf32>
    %cst_96 = arith.constant 0.000000e+00 : f32
    %160 = vector.broadcast %cst_96 : f32 to vector<8x512xf32>
    %161 = arith.maximumf %159, %160 : vector<8x512xf32>
    %cst_97 = arith.constant 0.000000e+00 : f32
    %162 = vector.broadcast %cst_97 : f32 to vector<8x128xf32>
    %163 = tpu.concatenate %161, %162 in 1 : vector<8x512xf32>, vector<8x128xf32> -> vector<8x640xf32>
    %c0_98 = arith.constant 0 : index
    %c0_99 = arith.constant 0 : index
    %c0_100 = arith.constant 0 : index
    %c0_101 = arith.constant 0 : index
    %164 = vector.load %arg6[%c0_98, %c0_99, %c0_100, %c0_101] : memref<2x2x3x8xf32, #tpu.memory_space<vmem>>, vector<1x1x3x8xf32>
    %165 = vector.shape_cast %164 : vector<1x1x3x8xf32> to vector<3x8xf32>
    %166 = vector.extract_strided_slice %163 {offsets = [0, 0], sizes = [8, 512], strides = [1, 1]} : vector<8x640xf32> to vector<8x512xf32>
    %cst_102 = arith.constant dense<0.000000e+00> : vector<3x512xf32>
    %167 = tpu.matmul %165, %166, %cst_102 {dimension_numbers = #tpu.dot_dimension_numbers<[1], [0], [0], [1], [0, 0, 1, 1], [], []>} : vector<3x8xf32>, vector<8x512xf32>, vector<3x512xf32> -> vector<3x512xf32>
    %c0_103 = arith.constant 0 : index
    %c0_104 = arith.constant 0 : index
    %168 = vector.load %arg7[%c0_103, %c0_104] : memref<3x1xf32, #tpu.memory_space<vmem>>, vector<3x1xf32>
    %169 = vector.broadcast %168 : vector<3x1xf32> to vector<3x512xf32>
    %170 = arith.addf %167, %169 : vector<3x512xf32>
    %c0_105 = arith.constant 0 : index
    %c0_106 = arith.constant 0 : index
    %c0_107 = arith.constant 0 : index
    %c0_108 = arith.constant 0 : index
    %171 = vector.load %arg8[%c0_105, %c0_106, %c0_107, %c0_108] : memref<1x4x3x512xf32, #tpu.memory_space<vmem>>, vector<1x1x3x512xf32>
    %172 = vector.shape_cast %171 : vector<1x1x3x512xf32> to vector<3x512xf32>
    %173 = vector.shape_cast %170 : vector<3x512xf32> to vector<1x1x3x512xf32>
    tpu.vector_store %arg8[%c0_105, %c0_106, %c0_107, %c0_108], %173 {strides = array<i32>} : memref<1x4x3x512xf32, #tpu.memory_space<vmem>>, vector<1x1x3x512xf32>,
    %c0_109 = arith.constant 0 : index
    %c1_110 = arith.constant 1 : index
    %c0_111 = arith.constant 0 : index
    %c0_112 = arith.constant 0 : index
    %174 = vector.load %arg6[%c0_109, %c1_110, %c0_111, %c0_112] : memref<2x2x3x8xf32, #tpu.memory_space<vmem>>, vector<1x1x3x8xf32>
    %175 = vector.shape_cast %174 : vector<1x1x3x8xf32> to vector<3x8xf32>
    %176 = vector.extract_strided_slice %163 {offsets = [0, 1], sizes = [8, 512], strides = [1, 1]} : vector<8x640xf32> to vector<8x512xf32>
    %cst_113 = arith.constant dense<0.000000e+00> : vector<3x512xf32>
    %177 = tpu.matmul %175, %176, %cst_113 {dimension_numbers = #tpu.dot_dimension_numbers<[1], [0], [0], [1], [0, 0, 1, 1], [], []>} : vector<3x8xf32>, vector<8x512xf32>, vector<3x512xf32> -> vector<3x512xf32>
    %c0_114 = arith.constant 0 : index
    %c0_115 = arith.constant 0 : index
    %178 = vector.load %arg7[%c0_114, %c0_115] : memref<3x1xf32, #tpu.memory_space<vmem>>, vector<3x1xf32>
    %179 = vector.broadcast %178 : vector<3x1xf32> to vector<3x512xf32>
    %180 = arith.addf %177, %179 : vector<3x512xf32>
    %c0_116 = arith.constant 0 : index
    %c1_117 = arith.constant 1 : index
    %c0_118 = arith.constant 0 : index
    %c0_119 = arith.constant 0 : index
    %181 = vector.load %arg8[%c0_116, %c1_117, %c0_118, %c0_119] : memref<1x4x3x512xf32, #tpu.memory_space<vmem>>, vector<1x1x3x512xf32>
    %182 = vector.shape_cast %181 : vector<1x1x3x512xf32> to vector<3x512xf32>
    %183 = vector.shape_cast %180 : vector<3x512xf32> to vector<1x1x3x512xf32>
    tpu.vector_store %arg8[%c0_116, %c1_117, %c0_118, %c0_119], %183 {strides = array<i32>} : memref<1x4x3x512xf32, #tpu.memory_space<vmem>>, vector<1x1x3x512xf32>,
    %c1_120 = arith.constant 1 : index
    %c0_121 = arith.constant 0 : index
    %c0_122 = arith.constant 0 : index
    %c0_123 = arith.constant 0 : index
    %184 = vector.load %arg6[%c1_120, %c0_121, %c0_122, %c0_123] : memref<2x2x3x8xf32, #tpu.memory_space<vmem>>, vector<1x1x3x8xf32>
    %185 = vector.shape_cast %184 : vector<1x1x3x8xf32> to vector<3x8xf32>
    %186 = vector.extract_strided_slice %163 {offsets = [0, 21], sizes = [8, 512], strides = [1, 1]} : vector<8x640xf32> to vector<8x512xf32>
    %cst_124 = arith.constant dense<0.000000e+00> : vector<3x512xf32>
    %187 = tpu.matmul %185, %186, %cst_124 {dimension_numbers = #tpu.dot_dimension_numbers<[1], [0], [0], [1], [0, 0, 1, 1], [], []>} : vector<3x8xf32>, vector<8x512xf32>, vector<3x512xf32> -> vector<3x512xf32>
    %c0_125 = arith.constant 0 : index
    %c0_126 = arith.constant 0 : index
    %188 = vector.load %arg7[%c0_125, %c0_126] : memref<3x1xf32, #tpu.memory_space<vmem>>, vector<3x1xf32>
    %189 = vector.broadcast %188 : vector<3x1xf32> to vector<3x512xf32>
    %190 = arith.addf %187, %189 : vector<3x512xf32>
    %c0_127 = arith.constant 0 : index
    %c2_128 = arith.constant 2 : index
    %c0_129 = arith.constant 0 : index
    %c0_130 = arith.constant 0 : index
    %191 = vector.load %arg8[%c0_127, %c2_128, %c0_129, %c0_130] : memref<1x4x3x512xf32, #tpu.memory_space<vmem>>, vector<1x1x3x512xf32>
    %192 = vector.shape_cast %191 : vector<1x1x3x512xf32> to vector<3x512xf32>
    %193 = vector.shape_cast %190 : vector<3x512xf32> to vector<1x1x3x512xf32>
    tpu.vector_store %arg8[%c0_127, %c2_128, %c0_129, %c0_130], %193 {strides = array<i32>} : memref<1x4x3x512xf32, #tpu.memory_space<vmem>>, vector<1x1x3x512xf32>,
    %c1_131 = arith.constant 1 : index
    %c1_132 = arith.constant 1 : index
    %c0_133 = arith.constant 0 : index
    %c0_134 = arith.constant 0 : index
    %194 = vector.load %arg6[%c1_131, %c1_132, %c0_133, %c0_134] : memref<2x2x3x8xf32, #tpu.memory_space<vmem>>, vector<1x1x3x8xf32>
    %195 = vector.shape_cast %194 : vector<1x1x3x8xf32> to vector<3x8xf32>
    %196 = vector.extract_strided_slice %163 {offsets = [0, 22], sizes = [8, 512], strides = [1, 1]} : vector<8x640xf32> to vector<8x512xf32>
    %cst_135 = arith.constant dense<0.000000e+00> : vector<3x512xf32>
    %197 = tpu.matmul %195, %196, %cst_135 {dimension_numbers = #tpu.dot_dimension_numbers<[1], [0], [0], [1], [0, 0, 1, 1], [], []>} : vector<3x8xf32>, vector<8x512xf32>, vector<3x512xf32> -> vector<3x512xf32>
    %c0_136 = arith.constant 0 : index
    %c0_137 = arith.constant 0 : index
    %198 = vector.load %arg7[%c0_136, %c0_137] : memref<3x1xf32, #tpu.memory_space<vmem>>, vector<3x1xf32>
    %199 = vector.broadcast %198 : vector<3x1xf32> to vector<3x512xf32>
    %200 = arith.addf %197, %199 : vector<3x512xf32>
    %c0_138 = arith.constant 0 : index
    %c3_139 = arith.constant 3 : index
    %c0_140 = arith.constant 0 : index
    %c0_141 = arith.constant 0 : index
    %201 = vector.load %arg8[%c0_138, %c3_139, %c0_140, %c0_141] : memref<1x4x3x512xf32, #tpu.memory_space<vmem>>, vector<1x1x3x512xf32>
    %202 = vector.shape_cast %201 : vector<1x1x3x512xf32> to vector<3x512xf32>
    %203 = vector.shape_cast %200 : vector<3x512xf32> to vector<1x1x3x512xf32>
    tpu.vector_store %arg8[%c0_138, %c3_139, %c0_140, %c0_141], %203 {strides = array<i32>} : memref<1x4x3x512xf32, #tpu.memory_space<vmem>>, vector<1x1x3x512xf32>,
    return
  }
  func.func @transform_0(%arg0: i32) -> (i32, i32) {
    %c0_i32 = arith.constant 0 : i32
    %c0_i32_0 = arith.constant 0 : i32
    %c0_i32_1 = arith.constant 0 : i32
    return %c0_i32, %c0_i32_0 : i32, i32
  }
  func.func @transform_1(%arg0: i32) -> (i32, i32, i32) {
    %c0_i32 = arith.constant 0 : i32
    %c0_i32_0 = arith.constant 0 : i32
    %c0_i32_1 = arith.constant 0 : i32
    %c0_i32_2 = arith.constant 0 : i32
    return %c0_i32, %c0_i32_0, %c0_i32_1 : i32, i32, i32
  }
  func.func @transform_2(%arg0: i32) -> (i32, i32) {
    %c0_i32 = arith.constant 0 : i32
    %c0_i32_0 = arith.constant 0 : i32
    %c0_i32_1 = arith.constant 0 : i32
    return %c0_i32, %c0_i32_0 : i32, i32
  }
  func.func @transform_3(%arg0: i32) -> (i32, i32, i32) {
    %c0_i32 = arith.constant 0 : i32
    %c0_i32_0 = arith.constant 0 : i32
    %c0_i32_1 = arith.constant 0 : i32
    %c0_i32_2 = arith.constant 0 : i32
    return %c0_i32, %c0_i32_0, %c0_i32_1 : i32, i32, i32
  }
  func.func @transform_4(%arg0: i32) -> (i32, i32) {
    %c0_i32 = arith.constant 0 : i32
    %c0_i32_0 = arith.constant 0 : i32
    %c0_i32_1 = arith.constant 0 : i32
    return %c0_i32, %c0_i32_0 : i32, i32
  }
  func.func @transform_5(%arg0: i32) -> (i32, i32, i32, i32) {
    %c0_i32 = arith.constant 0 : i32
    %c0_i32_0 = arith.constant 0 : i32
    %c0_i32_1 = arith.constant 0 : i32
    %c0_i32_2 = arith.constant 0 : i32
    %c0_i32_3 = arith.constant 0 : i32
    return %c0_i32, %c0_i32_0, %c0_i32_1, %c0_i32_2 : i32, i32, i32, i32
  }
  func.func @transform_6(%arg0: i32) -> (i32, i32) {
    %c0_i32 = arith.constant 0 : i32
    %c0_i32_0 = arith.constant 0 : i32
    %c0_i32_1 = arith.constant 0 : i32
    return %c0_i32, %c0_i32_0 : i32, i32
  }
  func.func @transform_7(%arg0: i32) -> (i32, i32, i32, i32) {
    %c0_i32 = arith.constant 0 : i32
    %c0_i32_0 = arith.constant 0 : i32
    %c0_i32_1 = arith.constant 0 : i32
    %c0_i32_2 = arith.constant 0 : i32
    return %arg0, %c0_i32, %c0_i32_0, %c0_i32_1 : i32, i32, i32, i32
  }
}

</mosaic_0001>

<llo_original>
// kernel: senn_decoder_forward.1
$region0: #{senn_decoder_forward.1}
  #allocation0 [shape = 'u32[]', space=smem, size = 0x4, offset = 0x4, fixed_abs, tag = 'smem constant byte address 0x4 - core index']
  #allocation1 [shape = 'u32[144,128]{1,0:T(1,128)}', space=vmem, size = 0x12000, scoped, tag = 'internal scratch']
  %s0 = inlined_call_operand.hbm [shape: f32[2,4], index: 0, kind: input, shape index: {}]
  %s1 = inlined_call_operand.hbm [shape: f32[4,16,512], index: 1, kind: input, shape index: {}]
  %s2 = inlined_call_operand.hbm [shape: f32[16,512], index: 2, kind: input, shape index: {}]
  %s3 = inlined_call_operand.vmem [shape: f32[25,8,16], index: 3, kind: input, shape index: {}]
  %s4 = inlined_call_operand.vmem [shape: f32[8,1], index: 4, kind: input, shape index: {}]
  %s5 = inlined_call_operand.vmem [shape: f32[2,2,3,8], index: 5, kind: input, shape index: {}]
  %s6 = inlined_call_operand.vmem [shape: f32[3,1], index: 6, kind: input, shape index: {}]
  %s7 = inlined_call_operand.vmem [shape: f32[2,4,3,512], index: 7, kind: output, shape index: {}]
  %s8 = sld [smem:[#allocation0]]
  $region73: #{senn_decoder_forward.1} parent=0
    _
  %s10 = ssub.s32 1, %s8
  %s11 = scalar_select 0, %s10, %s8
  $region1: #{senn_decoder_forward.1} parent=0
    #allocation2 [shape = 'u8[1024]{0}', space=smem, size = 0x400, scoped, tag = 'input window, operand 0, single buffered']
    #allocation3 [shape = 's32[2]{0}', space=sflag, size = 0x8, scoped, tag = 'scoped memory for senn_decoder_forward.1']
    #allocation4 [shape = 's32[2]{0}', space=sflag, size = 0x8, scoped, tag = 'scoped memory for senn_decoder_forward.1']
    #allocation5 [shape = 'u8[131072]{0}', space=vmem, size = 0x20000, scoped, tag = 'input window, operand 1, single buffered']
    #allocation6 [shape = 'u8[32768]{0}', space=vmem, size = 0x8000, scoped, tag = 'input window, operand 2, single buffered']
    #allocation7 [shape = 's32[1]{0}', space=sflag, size = 0x4, scoped, tag = 'scoped memory for senn_decoder_forward.1']
    %12 = vsyncpa [#allocation4], 0
    %13 = vsyncpa [#allocation3], 0
    %14 = vsyncpa [#allocation7], 0
    loop: start=0, step=1, limit=4
    $region2: #{senn_decoder_forward.1} parent=1 // loop_pre_header
      _
    $region3: #{senn_decoder_forward.1} parent=1 // loop_header
      %s16 = sphi 0, %s20
      %p17 = scmp.ge.s32.totalorder %s16, 4
      %s24 = sphi 0, %s24
      %s26 = sphi 0, %s24
      %s27 = sphi 0, %s26
      %s41 = sphi 0, %s27
      %s45 = sphi 0, %s45
      %s47 = sphi 0, %s45
      %s48 = sphi 0, %s47
      %s62 = sphi 0, %s48
      %s66 = sphi 0, %s66
      %s68 = sphi 0, %s66
      %s69 = sphi 0, %s68
      %s83 = sphi 0, %s69
      %s87 = sphi 0, %s87
      %s89 = sphi 0, %s87
      %s90 = sphi 0, %s89
      %s104 = sphi 0, %s90
      %s108 = sphi 0, %s108
      %s110 = sphi 0, %s108
      %s111 = sphi 0, %s110
      %s125 = sphi 0, %s111
      %s129 = sphi 0, %s129
      %s131 = sphi 0, %s129
      %s132 = sphi 0, %s131
      %s146 = sphi 0, %s132
      %s150 = sphi 0, %s150
      %s152 = sphi 0, %s150
      %s153 = sphi 0, %s152
      %s167 = sphi 0, %s153
      %s173 = sphi 0, %s175
      %s176 = sphi 0, %s173
      %s177 = sphi 0, %s176
      %s193 = sphi 0, %s177
    $region4: #{senn_decoder_forward.1} parent=1 // loop_header_branch
      %19 = sbr.rel (%p17) target = $region8
    $region5: #{senn_decoder_forward.1} parent=1 // loop_body
      %s21 = ssub.s32 %s16, 1
      %s22 = ssub.s32 %s16, 2
      %s23 = sadd.s32 %s16, 1
      %s25 = sadd.s32 %s24, 1
      %p28 = scmp.eq.s32.totalorder %s16, 1
      %p29 = scmp.ne.s32.totalorder %s24, %s26
      %p30 = scmp.eq.s32.totalorder %s16, 0
      %p31 = por %p29, %p30
      %p32 = scmp.ne.s32.totalorder %s24, %s26
      %p33 = scmp.eq.s32.totalorder %s21, 1
      %p34 = por %p32, %p33
      %p35 = scmp.ne.s32.totalorder %s26, %s27
      %p36 = scmp.eq.s32.totalorder %s21, 0
      %p37 = por %p35, %p36
      %p38 = scmp.ne.s32.totalorder %s26, %s27
      %p39 = scmp.eq.s32.totalorder %s22, 1
      %p40 = por %p38, %p39
      %p42 = scmp.ne.s32.totalorder %s27, %s41
      %p43 = scmp.eq.s32.totalorder %s22, 0
      %p44 = por %p42, %p43
      %s46 = sadd.s32 %s45, 1
      %p49 = scmp.eq.s32.totalorder %s16, 1
      %p50 = scmp.ne.s32.totalorder %s45, %s47
      %p51 = scmp.eq.s32.totalorder %s16, 0
      %p52 = por %p50, %p51
      %p53 = scmp.ne.s32.totalorder %s45, %s47
      %p54 = scmp.eq.s32.totalorder %s21, 1
      %p55 = por %p53, %p54
      %p56 = scmp.ne.s32.totalorder %s47, %s48
      %p57 = scmp.eq.s32.totalorder %s21, 0
      %p58 = por %p56, %p57
      %p59 = scmp.ne.s32.totalorder %s47, %s48
      %p60 = scmp.eq.s32.totalorder %s22, 1
      %p61 = por %p59, %p60
      %p63 = scmp.ne.s32.totalorder %s48, %s62
      %p64 = scmp.eq.s32.totalorder %s22, 0
      %p65 = por %p63, %p64
      %s67 = sadd.s32 %s66, 1
      %p70 = scmp.eq.s32.totalorder %s16, 1
      %p71 = scmp.ne.s32.totalorder %s66, %s68
      %p72 = scmp.eq.s32.totalorder %s16, 0
      %p73 = por %p71, %p72
      %p74 = scmp.ne.s32.totalorder %s66, %s68
      %p75 = scmp.eq.s32.totalorder %s21, 1
      %p76 = por %p74, %p75
      %p77 = scmp.ne.s32.totalorder %s68, %s69
      %p78 = scmp.eq.s32.totalorder %s21, 0
      %p79 = por %p77, %p78
      %p80 = scmp.ne.s32.totalorder %s68, %s69
      %p81 = scmp.eq.s32.totalorder %s22, 1
      %p82 = por %p80, %p81
      %p84 = scmp.ne.s32.totalorder %s69, %s83
      %p85 = scmp.eq.s32.totalorder %s22, 0
      %p86 = por %p84, %p85
      %s88 = sadd.s32 %s87, 1
      %p91 = scmp.eq.s32.totalorder %s16, 1
      %p92 = scmp.ne.s32.totalorder %s87, %s89
      %p93 = scmp.eq.s32.totalorder %s16, 0
      %p94 = por %p92, %p93
      %p95 = scmp.ne.s32.totalorder %s87, %s89
      %p96 = scmp.eq.s32.totalorder %s21, 1
      %p97 = por %p95, %p96
      %p98 = scmp.ne.s32.totalorder %s89, %s90
      %p99 = scmp.eq.s32.totalorder %s21, 0
      %p100 = por %p98, %p99
      %p101 = scmp.ne.s32.totalorder %s89, %s90
      %p102 = scmp.eq.s32.totalorder %s22, 1
      %p103 = por %p101, %p102
      %p105 = scmp.ne.s32.totalorder %s90, %s104
      %p106 = scmp.eq.s32.totalorder %s22, 0
      %p107 = por %p105, %p106
      %s109 = sadd.s32 %s108, 1
      %p112 = scmp.eq.s32.totalorder %s16, 1
      %p113 = scmp.ne.s32.totalorder %s108, %s110
      %p114 = scmp.eq.s32.totalorder %s16, 0
      %p115 = por %p113, %p114
      %p116 = scmp.ne.s32.totalorder %s108, %s110
      %p117 = scmp.eq.s32.totalorder %s21, 1
      %p118 = por %p116, %p117
      %p119 = scmp.ne.s32.totalorder %s110, %s111
      %p120 = scmp.eq.s32.totalorder %s21, 0
      %p121 = por %p119, %p120
      %p122 = scmp.ne.s32.totalorder %s110, %s111
      %p123 = scmp.eq.s32.totalorder %s22, 1
      %p124 = por %p122, %p123
      %p126 = scmp.ne.s32.totalorder %s111, %s125
      %p127 = scmp.eq.s32.totalorder %s22, 0
      %p128 = por %p126, %p127
      %s130 = sadd.s32 %s129, 1
      %p133 = scmp.eq.s32.totalorder %s16, 1
      %p134 = scmp.ne.s32.totalorder %s129, %s131
      %p135 = scmp.eq.s32.totalorder %s16, 0
      %p136 = por %p134, %p135
      %p137 = scmp.ne.s32.totalorder %s129, %s131
      %p138 = scmp.eq.s32.totalorder %s21, 1
      %p139 = por %p137, %p138
      %p140 = scmp.ne.s32.totalorder %s131, %s132
      %p141 = scmp.eq.s32.totalorder %s21, 0
      %p142 = por %p140, %p141
      %p143 = scmp.ne.s32.totalorder %s131, %s132
      %p144 = scmp.eq.s32.totalorder %s22, 1
      %p145 = por %p143, %p144
      %p147 = scmp.ne.s32.totalorder %s132, %s146
      %p148 = scmp.eq.s32.totalorder %s22, 0
      %p149 = por %p147, %p148
      %s151 = sadd.s32 %s150, 1
      %p154 = scmp.eq.s32.totalorder %s16, 1
      %p155 = scmp.ne.s32.totalorder %s150, %s152
      %p156 = scmp.eq.s32.totalorder %s16, 0
      %p157 = por %p155, %p156
      %p158 = scmp.ne.s32.totalorder %s150, %s152
      %p159 = scmp.eq.s32.totalorder %s21, 1
      %p160 = por %p158, %p159
      %p161 = scmp.ne.s32.totalorder %s152, %s153
      %p162 = scmp.eq.s32.totalorder %s21, 0
      %p163 = por %p161, %p162
      %p164 = scmp.ne.s32.totalorder %s152, %s153
      %p165 = scmp.eq.s32.totalorder %s22, 1
      %p166 = por %p164, %p165
      %p168 = scmp.ne.s32.totalorder %s153, %s167
      %p169 = scmp.eq.s32.totalorder %s22, 0
      %p170 = por %p168, %p169
      %s171 = ssub.s32 %s16, %s23
      %p172 = scmp.eq.s32.totalorder %s171, 0
      %s174 = sadd.s32 %s173, 1
      %s175 = scalar_select %p172, %s173, %s174
      %p178 = pneg %p172
      %p179 = scmp.eq.s32.totalorder %s16, 1
      %p180 = por %p178, %p179
      %p181 = scmp.ne.s32.totalorder %s173, %s176
      %p182 = scmp.eq.s32.totalorder %s16, 0
      %p183 = por %p181, %p182
      %p184 = scmp.ne.s32.totalorder %s173, %s176
      %p185 = scmp.eq.s32.totalorder %s21, 1
      %p186 = por %p184, %p185
      %p187 = scmp.ne.s32.totalorder %s176, %s177
      %p188 = scmp.eq.s32.totalorder %s21, 0
      %p189 = por %p187, %p188
      %p190 = scmp.ne.s32.totalorder %s176, %s177
      %p191 = scmp.eq.s32.totalorder %s22, 1
      %p192 = por %p190, %p191
      %p194 = scmp.ne.s32.totalorder %s177, %s193
      %p195 = scmp.eq.s32.totalorder %s22, 0
      %p196 = por %p194, %p195
      %p197 = scmp.le.s32.totalorder 1, %s16
      %p198 = scmp.lt.s32.totalorder %s16, 3
      %p199 = pnand %p197, %p198
      %p200 = pneg %p199
      // Predicated region
      $region9: #{senn_decoder_forward.1} parent=5 // pred_check
        _
      $region10: #{senn_decoder_forward.1} parent=5 // pred_check_branch
        %202 = sbr.rel (%p199) target = $region12
      $region11: #{senn_decoder_forward.1} parent=5 // pred_region
        %s203 = ssub.s32 %s16, 1
        // Predicated region
        $region13: #{senn_decoder_forward.1} parent=11 // pred_check
          %p204 = pneg %p37
        $region14: #{senn_decoder_forward.1} parent=11 // pred_check_branch
          %206 = sbr.rel (%p204) target = $region16
        $region15: #{senn_decoder_forward.1} parent=11 // pred_region
          %s208 = ssub.s32 32, 32
          %209 = vsyncadd [#allocation4], %s208
          %212 = dma.hbm_to_smem %s0, 32, [#allocation2], [#allocation4]
        $region16: #{senn_decoder_forward.1} parent=11 // pred_fallthru
          _
        // Predicated region
        $region17: #{senn_decoder_forward.1} parent=11 // pred_check
          %p213 = pneg %p58
        $region18: #{senn_decoder_forward.1} parent=11 // pred_check_branch
          %215 = sbr.rel (%p213) target = $region20
        $region19: #{senn_decoder_forward.1} parent=11 // pred_region
          %s217 = ssub.s32 4096, 4096
          %218 = vsyncadd [#allocation3], %s217
          %s219 = sshll.u32 [#allocation5], 4
          %s220 = int_to_ptr.vmem [resolvable:$true] %s219
          %225 = dma.hbm_to_vmem [thread:$0]  %s1, 4096, %s220, [#allocation3], 512, 512, 32
        $region20: #{senn_decoder_forward.1} parent=11 // pred_fallthru
          _
        // Predicated region
        $region21: #{senn_decoder_forward.1} parent=11 // pred_check
          %p226 = pneg %p79
        $region22: #{senn_decoder_forward.1} parent=11 // pred_check_branch
          %228 = sbr.rel (%p226) target = $region24
        $region23: #{senn_decoder_forward.1} parent=11 // pred_region
          %s230 = ssub.s32 1024, 1024
          %231 = vsyncadd [#allocation7], %s230
          %s232 = sshll.u32 [#allocation6], 4
          %s233 = int_to_ptr.vmem [resolvable:$true] %s232
          %238 = dma.hbm_to_vmem [thread:$0]  %s2, 1024, %s233, [#allocation7], 512, 512, 32
        $region24: #{senn_decoder_forward.1} parent=11 // pred_fallthru
          _
        // Predicated region
        $region25: #{senn_decoder_forward.1} parent=11 // pred_check
          %p239 = pneg %p100
        $region26: #{senn_decoder_forward.1} parent=11 // pred_check_branch
          %241 = sbr.rel (%p239) target = $region28
        $region27: #{senn_decoder_forward.1} parent=11 // pred_region
          _
        $region28: #{senn_decoder_forward.1} parent=11 // pred_fallthru
          _
        // Predicated region
        $region29: #{senn_decoder_forward.1} parent=11 // pred_check
          %p242 = pneg %p121
        $region30: #{senn_decoder_forward.1} parent=11 // pred_check_branch
          %244 = sbr.rel (%p242) target = $region32
        $region31: #{senn_decoder_forward.1} parent=11 // pred_region
          _
        $region32: #{senn_decoder_forward.1} parent=11 // pred_fallthru
          _
        // Predicated region
        $region33: #{senn_decoder_forward.1} parent=11 // pred_check
          %p245 = pneg %p142
        $region34: #{senn_decoder_forward.1} parent=11 // pred_check_branch
          %247 = sbr.rel (%p245) target = $region36
        $region35: #{senn_decoder_forward.1} parent=11 // pred_region
          _
        $region36: #{senn_decoder_forward.1} parent=11 // pred_fallthru
          _
        // Predicated region
        $region37: #{senn_decoder_forward.1} parent=11 // pred_check
          %p248 = pneg %p163
        $region38: #{senn_decoder_forward.1} parent=11 // pred_check_branch
          %250 = sbr.rel (%p248) target = $region40
        $region39: #{senn_decoder_forward.1} parent=11 // pred_region
          _
        $region40: #{senn_decoder_forward.1} parent=11 // pred_fallthru
          _
      $region12: #{senn_decoder_forward.1} parent=5 // pred_fallthru
        _
      %p251 = scmp.lt.s32.totalorder %s16, 2
      // Predicated region
      $region41: #{senn_decoder_forward.1} parent=5 // pred_check
        %p252 = pneg %p251
      $region42: #{senn_decoder_forward.1} parent=5 // pred_check_branch
        %254 = sbr.rel (%p252) target = $region44
      $region43: #{senn_decoder_forward.1} parent=5 // pred_region
        _
      $region44: #{senn_decoder_forward.1} parent=5 // pred_fallthru
        _
      %p255 = scmp.le.s32.totalorder 1, %s16
      %p256 = scmp.lt.s32.totalorder %s16, 3
      %p257 = pnand %p255, %p256
      %p258 = pneg %p257
      // Predicated region
      $region45: #{senn_decoder_forward.1} parent=5 // pred_check
        _
      $region46: #{senn_decoder_forward.1} parent=5 // pred_check_branch
        %260 = sbr.rel (%p257) target = $region48
      $region47: #{senn_decoder_forward.1} parent=5 // pred_region
        %s261 = ssub.s32 %s16, 1
        // Predicated region
        $region49: #{senn_decoder_forward.1} parent=47 // pred_check
          %p262 = pneg %p37
        $region50: #{senn_decoder_forward.1} parent=47 // pred_check_branch
          %264 = sbr.rel (%p262) target = $region52
        $region51: #{senn_decoder_forward.1} parent=47 // pred_region
          %265 = dma.done [#allocation4], 32
        $region52: #{senn_decoder_forward.1} parent=47 // pred_fallthru
          _
        // Predicated region
        $region53: #{senn_decoder_forward.1} parent=47 // pred_check
          %p266 = pneg %p58
        $region54: #{senn_decoder_forward.1} parent=47 // pred_check_branch
          %268 = sbr.rel (%p266) target = $region56
        $region55: #{senn_decoder_forward.1} parent=47 // pred_region
          %269 = dma.done [#allocation3], 4096
        $region56: #{senn_decoder_forward.1} parent=47 // pred_fallthru
          _
        // Predicated region
        $region57: #{senn_decoder_forward.1} parent=47 // pred_check
          %p270 = pneg %p79
        $region58: #{senn_decoder_forward.1} parent=47 // pred_check_branch
          %272 = sbr.rel (%p270) target = $region60
        $region59: #{senn_decoder_forward.1} parent=47 // pred_region
          %273 = dma.done [#allocation7], 1024
        $region60: #{senn_decoder_forward.1} parent=47 // pred_fallthru
          _
        %274 = sfence
        %p275 = pneg %p37
        %p276 = pneg %p34
        %p277 = pneg %p58
        %p278 = pneg %p55
        %p279 = pneg %p79
        %p280 = pneg %p76
        %p281 = pneg %p100
        %p282 = pneg %p97
        %p283 = pneg %p121
        %p284 = pneg %p118
        %p285 = pneg %p142
        %p286 = pneg %p139
        %p287 = pneg %p163
        %p288 = pneg %p160
        %p289 = pneg %p189
        %p290 = pneg %p186
        %p291 = scmp.lt.s32.totalorder %s21, 1
        %s292 = scalar_select %p291, %s21, 1
        %s293 = smul.addr %s292, 16
        %s294 = smul.addr %s293, 4
        %s295 = scalar_lea.vmem %s7, %s294
        %p296 = scmp.lt.s32.totalorder %s21, 1
        %s297 = scalar_select %p296, %s21, 1
        %s298 = smul.addr %s297, 16
        %s299 = smul.addr %s298, 4
        %s300 = scalar_lea.vmem %s7, %s299
        %v301 = vld [vmem:[#allocation6] sm:$0xff]
        %v302 = vld [vmem:[#allocation6 + $0x8] sm:$0xff]
        %v303 = vld [vmem:[#allocation6 + $0x10] sm:$0xff]
        %v304 = vld [vmem:[#allocation6 + $0x18] sm:$0xff]
        %v305 = vld [vmem:[#allocation6 + $0x20] sm:$0xff]
        %v306 = vld [vmem:[#allocation6 + $0x28] sm:$0xff]
        %v307 = vld [vmem:[#allocation6 + $0x30] sm:$0xff]
        %v308 = vld [vmem:[#allocation6 + $0x38] sm:$0xff]
        %s309 = smul.u32 %s21, 128
        %s310 = sld [smem:[#allocation2 + %s309]]
        %v311 = vld [vmem:[#allocation5] sm:$0xff]
        %v312 = vld [vmem:[#allocation5 + $0x8] sm:$0xff]
        %v313 = vld [vmem:[#allocation5 + $0x10] sm:$0xff]
        %v314 = vld [vmem:[#allocation5 + $0x18] sm:$0xff]
        %v315 = vld [vmem:[#allocation5 + $0x20] sm:$0xff]
        %v316 = vld [vmem:[#allocation5 + $0x28] sm:$0xff]
        %v317 = vld [vmem:[#allocation5 + $0x30] sm:$0xff]
        %v318 = vld [vmem:[#allocation5 + $0x38] sm:$0xff]
        %v319 = vstv %s310
        %v320 = vmul.f32 %v319, %v311
        %v321 = vmul.f32 %v319, %v312
        %v322 = vmul.f32 %v319, %v313
        %v323 = vmul.f32 %v319, %v314
        %v324 = vmul.f32 %v319, %v315
        %v325 = vmul.f32 %v319, %v316
        %v326 = vmul.f32 %v319, %v317
        %v327 = vmul.f32 %v319, %v318
        %s328 = sadd.s32 %s309, 1
        %s329 = sld [smem:[#allocation2 + %s328]]
        %s330 = scalar_lea.vmem [#allocation5], 64
        %v331 = vld [vmem:[%s330] sm:$0xff]
        %v332 = vld [vmem:[%s330 + $0x8] sm:$0xff]
        %v333 = vld [vmem:[%s330 + $0x10] sm:$0xff]
        %v334 = vld [vmem:[%s330 + $0x18] sm:$0xff]
        %v335 = vld [vmem:[%s330 + $0x20] sm:$0xff]
        %v336 = vld [vmem:[%s330 + $0x28] sm:$0xff]
        %v337 = vld [vmem:[%s330 + $0x30] sm:$0xff]
        %v338 = vld [vmem:[%s330 + $0x38] sm:$0xff]
        %v339 = vstv %s329
        %v340 = vmul.f32 %v339, %v331
        %v341 = vmul.f32 %v339, %v332
        %v342 = vmul.f32 %v339, %v333
        %v343 = vmul.f32 %v339, %v334
        %v344 = vmul.f32 %v339, %v335
        %v345 = vmul.f32 %v339, %v336
        %v346 = vmul.f32 %v339, %v337
        %v347 = vmul.f32 %v339, %v338
        %s348 = sadd.s32 %s309, 2
        %s349 = sld [smem:[#allocation2 + %s348]]
        %s350 = scalar_lea.vmem [#allocation5], 128
        %v351 = vld [vmem:[%s350] sm:$0xff]
        %v352 = vld [vmem:[%s350 + $0x8] sm:$0xff]
        %v353 = vld [vmem:[%s350 + $0x10] sm:$0xff]
        %v354 = vld [vmem:[%s350 + $0x18] sm:$0xff]
        %v355 = vld [vmem:[%s350 + $0x20] sm:$0xff]
        %v356 = vld [vmem:[%s350 + $0x28] sm:$0xff]
        %v357 = vld [vmem:[%s350 + $0x30] sm:$0xff]
        %v358 = vld [vmem:[%s350 + $0x38] sm:$0xff]
        %v359 = vstv %s349
        %v360 = vmul.f32 %v359, %v351
        %v361 = vmul.f32 %v359, %v352
        %v362 = vmul.f32 %v359, %v353
        %v363 = vmul.f32 %v359, %v354
        %v364 = vmul.f32 %v359, %v355
        %v365 = vmul.f32 %v359, %v356
        %v366 = vmul.f32 %v359, %v357
        %v367 = vmul.f32 %v359, %v358
        %s368 = sadd.s32 %s309, 3
        %s369 = sld [smem:[#allocation2 + %s368]]
        %s370 = scalar_lea.vmem [#allocation5], 192
        %v371 = vld [vmem:[%s370] sm:$0xff]
        %v372 = vld [vmem:[%s370 + $0x8] sm:$0xff]
        %v373 = vld [vmem:[%s370 + $0x10] sm:$0xff]
        %v374 = vld [vmem:[%s370 + $0x18] sm:$0xff]
        %v375 = vld [vmem:[%s370 + $0x20] sm:$0xff]
        %v376 = vld [vmem:[%s370 + $0x28] sm:$0xff]
        %v377 = vld [vmem:[%s370 + $0x30] sm:$0xff]
        %v378 = vld [vmem:[%s370 + $0x38] sm:$0xff]
        %v379 = vstv %s369
        %v380 = vmul.f32 %v379, %v371
        %v381 = vmul.f32 %v379, %v372
        %v382 = vmul.f32 %v379, %v373
        %v383 = vmul.f32 %v379, %v374
        %v384 = vmul.f32 %v379, %v375
        %v385 = vmul.f32 %v379, %v376
        %v386 = vmul.f32 %v379, %v377
        %v387 = vmul.f32 %v379, %v378
        %v388 = vadd.f32 %v301, %v320
        %v389 = vadd.f32 %v302, %v321
        %v390 = vadd.f32 %v303, %v322
        %v391 = vadd.f32 %v304, %v323
        %v392 = vadd.f32 %v305, %v324
        %v393 = vadd.f32 %v306, %v325
        %v394 = vadd.f32 %v307, %v326
        %v395 = vadd.f32 %v308, %v327
        %v396 = vadd.f32 %v340, %v360
        %v397 = vadd.f32 %v341, %v361
        %v398 = vadd.f32 %v342, %v362
        %v399 = vadd.f32 %v343, %v363
        %v400 = vadd.f32 %v344, %v364
        %v401 = vadd.f32 %v345, %v365
        %v402 = vadd.f32 %v346, %v366
        %v403 = vadd.f32 %v347, %v367
        %v404 = vadd.f32 %v388, %v396
        %v405 = vadd.f32 %v389, %v397
        %v406 = vadd.f32 %v390, %v398
        %v407 = vadd.f32 %v391, %v399
        %v408 = vadd.f32 %v392, %v400
        %v409 = vadd.f32 %v393, %v401
        %v410 = vadd.f32 %v394, %v402
        %v411 = vadd.f32 %v395, %v403
        %v412 = vadd.f32 %v404, %v380
        %v413 = vadd.f32 %v405, %v381
        %v414 = vadd.f32 %v406, %v382
        %v415 = vadd.f32 %v407, %v383
        %v416 = vadd.f32 %v408, %v384
        %v417 = vadd.f32 %v409, %v385
        %v418 = vadd.f32 %v410, %v386
        %v419 = vadd.f32 %v411, %v387
        %v420 = vmax.f32 %v412, 0.0
        %v421 = vmax.f32 %v413, 0.0
        %v422 = vmax.f32 %v414, 0.0
        %v423 = vmax.f32 %v415, 0.0
        %v424 = vmax.f32 %v416, 0.0
        %v425 = vmax.f32 %v417, 0.0
        %v426 = vmax.f32 %v418, 0.0
        %v427 = vmax.f32 %v419, 0.0
        %v428 = vld [vmem:[%s3] sm:$0xff]
        %s429 = scalar_lea.vmem %s3, 8
        %v430 = vld [vmem:[%s429] sm:$0xff]
        %440 = vrot.lane.b32.xlu0 %v420, 127
        %v441 = vpop.permute.xlu0 %440
        %442 = vrot.lane.b32.xlu0 %v421, 127
        %v443 = vpop.permute.xlu0 %442
        %444 = vrot.lane.b32.xlu0 %v422, 127
        %v445 = vpop.permute.xlu0 %444
        %446 = vrot.lane.b32.xlu0 %v423, 127
        %v447 = vpop.permute.xlu0 %446
        %448 = vrot.lane.b32.xlu0 0.0, 127
        %v449 = vpop.permute.xlu0 %448
        %450 = vrot.lane.b32.xlu0 %v424, 127
        %v451 = vpop.permute.xlu0 %450
        %452 = vrot.lane.b32.xlu0 %v425, 127
        %v453 = vpop.permute.xlu0 %452
        %454 = vrot.lane.b32.xlu0 %v426, 127
        %v455 = vpop.permute.xlu0 %454
        %456 = vrot.lane.b32.xlu0 %v427, 127
        %v457 = vpop.permute.xlu0 %456
        %vm458 = vcmask 1039360
        %v459 = vsel %vm458, %v441, %v443
        %v460 = vsel %vm458, %v443, %v445
        %v461 = vsel %vm458, %v445, %v447
        %v462 = vsel %vm458, %v447, %v449
        %v463 = vsel %vm458, %v451, %v453
        %v464 = vsel %vm458, %v453, %v455
        %v465 = vsel %vm458, %v455, %v457
        %v466 = vsel %vm458, %v457, %v449
        %vm475 = vcmask 130048
        %v477 = vsel %vm475, %v430, 0
        %479 = vmatprep.subr.mxu0 %v460
        %480 = vmatpush1.msra.mxu0 %v459
        %481 = vmatprep.subr.mxu0 %v464
        %482 = vmatpush1.msra.mxu0 %v463
        %483 = vmatprep.subr.mxu0 0.0
        %484 = vmatpush1.msra.mxu0 0.0
        %485 = vmatprep.subr.mxu0 0.0
        %486 = vmatpush1.msra.mxu0 0.0
        %487 = vmatprep.subr.mxu0 0.0
        %488 = vmatpush1.msra.mxu0 0.0
        %489 = vmatprep.subr.mxu0 0.0
        %490 = vmatpush1.msra.mxu0 0.0
        %491 = vmatprep.subr.mxu0 0.0
        %492 = vmatpush1.msra.mxu0 0.0
        %493 = vmatprep.subr.mxu0 0.0
        %494 = vmatpush1.msra.mxu0 0.0
        %495 = vmatprep.subr.mxu0 0.0
        %496 = vmatpush1.msra.mxu0 0.0
        %497 = vmatprep.subr.mxu0 0.0
        %498 = vmatpush1.msra.mxu0 0.0
        %499 = vmatprep.subr.mxu0 0.0
        %500 = vmatpush1.msra.mxu0 0.0
        %501 = vmatprep.subr.mxu0 0.0
        %502 = vmatpush1.msra.mxu0 0.0
        %503 = vmatprep.subr.mxu0 0.0
        %504 = vmatpush1.msra.mxu0 0.0
        %505 = vmatprep.subr.mxu0 0.0
        %506 = vmatpush1.msra.mxu0 0.0
        %507 = vmatprep.subr.mxu0 0.0
        %508 = vmatpush1.msra.mxu0 0.0
        %509 = vmatprep.subr.mxu0 0.0
        %510 = vmatpush1.msra.mxu0 0.0
        %511 = vmatprep.subr.mxu0 0.0
        %512 = vmatpush1.msra.mxu0 0.0
        %513 = vmatprep.subr.mxu0 0.0
        %514 = vmatpush1.msra.mxu0 0.0
        %515 = vmatprep.subr.mxu0 0.0
        %516 = vmatpush1.msra.mxu0 0.0
        %517 = vmatprep.subr.mxu0 0.0
        %518 = vmatpush1.msra.mxu0 0.0
        %519 = vmatprep.subr.mxu0 0.0
        %520 = vmatpush1.msra.mxu0 0.0
        %521 = vmatprep.subr.mxu0 0.0
        %522 = vmatpush1.msra.mxu0 0.0
        %523 = vmatprep.subr.mxu0 0.0
        %524 = vmatpush1.msra.mxu0 0.0
        %525 = vmatprep.subr.mxu0 0.0
        %526 = vmatpush1.msra.mxu0 0.0
        %527 = vmatprep.subr.mxu0 0.0
        %528 = vmatpush1.msra.mxu0 0.0
        %529 = vmatprep.subr.mxu0 0.0
        %530 = vmatpush1.msra.mxu0 0.0
        %531 = vmatprep.subr.mxu0 0.0
        %532 = vmatpush1.msra.mxu0 0.0
        %533 = vmatprep.subr.mxu0 0.0
        %534 = vmatpush1.msra.mxu0 0.0
        %535 = vmatprep.subr.mxu0 0.0
        %536 = vmatpush1.msra.mxu0 0.0
        %537 = vmatprep.subr.mxu0 0.0
        %538 = vmatpush1.msra.mxu0 0.0
        %539 = vmatprep.subr.mxu0 0.0
        %540 = vmatpush1.msra.mxu0 0.0
        %541 = vmatprep.subr.mxu0 0.0
        %542 = vmatpush1.msra.mxu0 0.0
        %543 = vmatprep.mubr.f32.mxu0 0.0
        %544 = vmatmul.mubr.f32.gmra.mrb[0].mxu0 %v477
        %v545 = vpop.f32.mrb[0].mxu0
        %v546 = vadd.f32 0.0, %v545
        %v547 = vpop.f32.mrb[0].mxu0
        %v548 = vadd.f32 0.0, %v547
        %549 = vdwg.mxu0
        %550 = vmatprep.subr.mxu0 %v462
        %551 = vmatpush1.msra.mxu0 %v461
        %552 = vmatprep.subr.mxu0 %v466
        %553 = vmatpush1.msra.mxu0 %v465
        %554 = vmatprep.subr.mxu0 0.0
        %555 = vmatpush1.msra.mxu0 0.0
        %556 = vmatprep.subr.mxu0 0.0
        %557 = vmatpush1.msra.mxu0 0.0
        %558 = vmatprep.subr.mxu0 0.0
        %559 = vmatpush1.msra.mxu0 0.0
        %560 = vmatprep.subr.mxu0 0.0
        %561 = vmatpush1.msra.mxu0 0.0
        %562 = vmatprep.subr.mxu0 0.0
        %563 = vmatpush1.msra.mxu0 0.0
        %564 = vmatprep.subr.mxu0 0.0
        %565 = vmatpush1.msra.mxu0 0.0
        %566 = vmatprep.subr.mxu0 0.0
        %567 = vmatpush1.msra.mxu0 0.0
        %568 = vmatprep.subr.mxu0 0.0
        %569 = vmatpush1.msra.mxu0 0.0
        %570 = vmatprep.subr.mxu0 0.0
        %571 = vmatpush1.msra.mxu0 0.0
        %572 = vmatprep.subr.mxu0 0.0
        %573 = vmatpush1.msra.mxu0 0.0
        %574 = vmatprep.subr.mxu0 0.0
        %575 = vmatpush1.msra.mxu0 0.0
        %576 = vmatprep.subr.mxu0 0.0
        %577 = vmatpush1.msra.mxu0 0.0
        %578 = vmatprep.subr.mxu0 0.0
        %579 = vmatpush1.msra.mxu0 0.0
        %580 = vmatprep.subr.mxu0 0.0
        %581 = vmatpush1.msra.mxu0 0.0
        %582 = vmatprep.subr.mxu0 0.0
        %583 = vmatpush1.msra.mxu0 0.0
        %584 = vmatprep.subr.mxu0 0.0
        %585 = vmatpush1.msra.mxu0 0.0
        %586 = vmatprep.subr.mxu0 0.0
        %587 = vmatpush1.msra.mxu0 0.0
        %588 = vmatprep.subr.mxu0 0.0
        %589 = vmatpush1.msra.mxu0 0.0
        %590 = vmatprep.subr.mxu0 0.0
        %591 = vmatpush1.msra.mxu0 0.0
        %592 = vmatprep.subr.mxu0 0.0
        %593 = vmatpush1.msra.mxu0 0.0
        %594 = vmatprep.subr.mxu0 0.0
        %595 = vmatpush1.msra.mxu0 0.0
        %596 = vmatprep.subr.mxu0 0.0
        %597 = vmatpush1.msra.mxu0 0.0
        %598 = vmatprep.subr.mxu0 0.0
        %599 = vmatpush1.msra.mxu0 0.0
        %600 = vmatprep.subr.mxu0 0.0
        %601 = vmatpush1.msra.mxu0 0.0
        %602 = vmatprep.subr.mxu0 0.0
        %603 = vmatpush1.msra.mxu0 0.0
        %604 = vmatprep.subr.mxu0 0.0
        %605 = vmatpush1.msra.mxu0 0.0
        %606 = vmatprep.subr.mxu0 0.0
        %607 = vmatpush1.msra.mxu0 0.0
        %608 = vmatprep.subr.mxu0 0.0
        %609 = vmatpush1.msra.mxu0 0.0
        %610 = vmatprep.subr.mxu0 0.0
        %611 = vmatpush1.msra.mxu0 0.0
        %612 = vmatprep.subr.mxu0 0.0
        %613 = vmatpush1.msra.mxu0 0.0
        %614 = vmatprep.mubr.f32.mxu0 0.0
        %615 = vmatmul.mubr.f32.gmra.mrb[0].mxu0 %v477
        %v616 = vpop.f32.mrb[0].mxu0
        %v617 = vadd.f32 0.0, %v616
        %v618 = vpop.f32.mrb[0].mxu0
        %v619 = vadd.f32 0.0, %v618
        %620 = vdwg.mxu0
        %v622 = vsel %vm475, %v428, 0
        %624 = vmatprep.subr.mxu0 %v421
        %625 = vmatpush1.msra.mxu0 %v420
        %626 = vmatprep.subr.mxu0 %v425
        %627 = vmatpush1.msra.mxu0 %v424
        %628 = vmatprep.subr.mxu0 0.0
        %629 = vmatpush1.msra.mxu0 0.0
        %630 = vmatprep.subr.mxu0 0.0
        %631 = vmatpush1.msra.mxu0 0.0
        %632 = vmatprep.subr.mxu0 0.0
        %633 = vmatpush1.msra.mxu0 0.0
        %634 = vmatprep.subr.mxu0 0.0
        %635 = vmatpush1.msra.mxu0 0.0
        %636 = vmatprep.subr.mxu0 0.0
        %637 = vmatpush1.msra.mxu0 0.0
        %638 = vmatprep.subr.mxu0 0.0
        %639 = vmatpush1.msra.mxu0 0.0
        %640 = vmatprep.subr.mxu0 0.0
        %641 = vmatpush1.msra.mxu0 0.0
        %642 = vmatprep.subr.mxu0 0.0
        %643 = vmatpush1.msra.mxu0 0.0
        %644 = vmatprep.subr.mxu0 0.0
        %645 = vmatpush1.msra.mxu0 0.0
        %646 = vmatprep.subr.mxu0 0.0
        %647 = vmatpush1.msra.mxu0 0.0
        %648 = vmatprep.subr.mxu0 0.0
        %649 = vmatpush1.msra.mxu0 0.0
        %650 = vmatprep.subr.mxu0 0.0
        %651 = vmatpush1.msra.mxu0 0.0
        %652 = vmatprep.subr.mxu0 0.0
        %653 = vmatpush1.msra.mxu0 0.0
        %654 = vmatprep.subr.mxu0 0.0
        %655 = vmatpush1.msra.mxu0 0.0
        %656 = vmatprep.subr.mxu0 0.0
        %657 = vmatpush1.msra.mxu0 0.0
        %658 = vmatprep.subr.mxu0 0.0
        %659 = vmatpush1.msra.mxu0 0.0
        %660 = vmatprep.subr.mxu0 0.0
        %661 = vmatpush1.msra.mxu0 0.0
        %662 = vmatprep.subr.mxu0 0.0
        %663 = vmatpush1.msra.mxu0 0.0
        %664 = vmatprep.subr.mxu0 0.0
        %665 = vmatpush1.msra.mxu0 0.0
        %666 = vmatprep.subr.mxu0 0.0
        %667 = vmatpush1.msra.mxu0 0.0
        %668 = vmatprep.subr.mxu0 0.0
        %669 = vmatpush1.msra.mxu0 0.0
        %670 = vmatprep.subr.mxu0 0.0
        %671 = vmatpush1.msra.mxu0 0.0
        %672 = vmatprep.subr.mxu0 0.0
        %673 = vmatpush1.msra.mxu0 0.0
        %674 = vmatprep.subr.mxu0 0.0
        %675 = vmatpush1.msra.mxu0 0.0
        %676 = vmatprep.subr.mxu0 0.0
        %677 = vmatpush1.msra.mxu0 0.0
        %678 = vmatprep.subr.mxu0 0.0
        %679 = vmatpush1.msra.mxu0 0.0
        %680 = vmatprep.subr.mxu0 0.0
        %681 = vmatpush1.msra.mxu0 0.0
        %682 = vmatprep.subr.mxu0 0.0
        %683 = vmatpush1.msra.mxu0 0.0
        %684 = vmatprep.subr.mxu0 0.0
        %685 = vmatpush1.msra.mxu0 0.0
        %686 = vmatprep.subr.mxu0 0.0
        %687 = vmatpush1.msra.mxu0 0.0
        %688 = vmatprep.mubr.f32.mxu0 0.0
        %689 = vmatmul.mubr.f32.gmra.mrb[0].mxu0 %v622
        %v690 = vpop.f32.mrb[0].mxu0
        %v691 = vadd.f32 %v546, %v690
        %v692 = vpop.f32.mrb[0].mxu0
        %v693 = vadd.f32 %v548, %v692
        %694 = vdwg.mxu0
        %695 = vmatprep.subr.mxu0 %v423
        %696 = vmatpush1.msra.mxu0 %v422
        %697 = vmatprep.subr.mxu0 %v427
        %698 = vmatpush1.msra.mxu0 %v426
        %699 = vmatprep.subr.mxu0 0.0
        %700 = vmatpush1.msra.mxu0 0.0
        %701 = vmatprep.subr.mxu0 0.0
        %702 = vmatpush1.msra.mxu0 0.0
        %703 = vmatprep.subr.mxu0 0.0
        %704 = vmatpush1.msra.mxu0 0.0
        %705 = vmatprep.subr.mxu0 0.0
        %706 = vmatpush1.msra.mxu0 0.0
        %707 = vmatprep.subr.mxu0 0.0
        %708 = vmatpush1.msra.mxu0 0.0
        %709 = vmatprep.subr.mxu0 0.0
        %710 = vmatpush1.msra.mxu0 0.0
        %711 = vmatprep.subr.mxu0 0.0
        %712 = vmatpush1.msra.mxu0 0.0
        %713 = vmatprep.subr.mxu0 0.0
        %714 = vmatpush1.msra.mxu0 0.0
        %715 = vmatprep.subr.mxu0 0.0
        %716 = vmatpush1.msra.mxu0 0.0
        %717 = vmatprep.subr.mxu0 0.0
        %718 = vmatpush1.msra.mxu0 0.0
        %719 = vmatprep.subr.mxu0 0.0
        %720 = vmatpush1.msra.mxu0 0.0
        %721 = vmatprep.subr.mxu0 0.0
        %722 = vmatpush1.msra.mxu0 0.0
        %723 = vmatprep.subr.mxu0 0.0
        %724 = vmatpush1.msra.mxu0 0.0
        %725 = vmatprep.subr.mxu0 0.0
        %726 = vmatpush1.msra.mxu0 0.0
        %727 = vmatprep.subr.mxu0 0.0
        %728 = vmatpush1.msra.mxu0 0.0
        %729 = vmatprep.subr.mxu0 0.0
        %730 = vmatpush1.msra.mxu0 0.0
        %731 = vmatprep.subr.mxu0 0.0
        %732 = vmatpush1.msra.mxu0 0.0
        %733 = vmatprep.subr.mxu0 0.0
        %734 = vmatpush1.msra.mxu0 0.0
        %735 = vmatprep.subr.mxu0 0.0
        %736 = vmatpush1.msra.mxu0 0.0
        %737 = vmatprep.subr.mxu0 0.0
        %738 = vmatpush1.msra.mxu0 0.0
        %739 = vmatprep.subr.mxu0 0.0
        %740 = vmatpush1.msra.mxu0 0.0
        %741 = vmatprep.subr.mxu0 0.0
        %742 = vmatpush1.msra.mxu0 0.0
        %743 = vmatprep.subr.mxu0 0.0
        %744 = vmatpush1.msra.mxu0 0.0
        %745 = vmatprep.subr.mxu0 0.0
        %746 = vmatpush1.msra.mxu0 0.0
        %747 = vmatprep.subr.mxu0 0.0
        %748 = vmatpush1.msra.mxu0 0.0
        %749 = vmatprep.subr.mxu0 0.0
        %750 = vmatpush1.msra.mxu0 0.0
        %751 = vmatprep.subr.mxu0 0.0
        %752 = vmatpush1.msra.mxu0 0.0
        %753 = vmatprep.subr.mxu0 0.0
        %754 = vmatpush1.msra.mxu0 0.0
        %755 = vmatprep.subr.mxu0 0.0
        %756 = vmatpush1.msra.mxu0 0.0
        %757 = vmatprep.subr.mxu0 0.0
        %758 = vmatpush1.msra.mxu0 0.0
        %759 = vmatprep.mubr.f32.mxu0 0.0
        %760 = vmatmul.mubr.f32.gmra.mrb[0].mxu0 %v622
        %v761 = vpop.f32.mrb[0].mxu0
        %v762 = vadd.f32 %v617, %v761
        %v763 = vpop.f32.mrb[0].mxu0
        %v764 = vadd.f32 %v619, %v763
        %765 = vdwg.mxu0
        %s766 = scalar_lea.vmem %s3, 16
        %v767 = vld [vmem:[%s766] sm:$0xff]
        %768 = vrot.lane.b32.xlu0 %v420, 126
        %v769 = vpop.permute.xlu0 %768
        %770 = vrot.lane.b32.xlu0 %v421, 126
        %v771 = vpop.permute.xlu0 %770
        %772 = vrot.lane.b32.xlu0 %v422, 126
        %v773 = vpop.permute.xlu0 %772
        %774 = vrot.lane.b32.xlu0 %v423, 126
        %v775 = vpop.permute.xlu0 %774
        %776 = vrot.lane.b32.xlu0 0.0, 126
        %v777 = vpop.permute.xlu0 %776
        %778 = vrot.lane.b32.xlu0 %v424, 126
        %v779 = vpop.permute.xlu0 %778
        %780 = vrot.lane.b32.xlu0 %v425, 126
        %v781 = vpop.permute.xlu0 %780
        %782 = vrot.lane.b32.xlu0 %v426, 126
        %v783 = vpop.permute.xlu0 %782
        %784 = vrot.lane.b32.xlu0 %v427, 126
        %v785 = vpop.permute.xlu0 %784
        %vm786 = vcmask 1031168
        %v787 = vsel %vm786, %v769, %v771
        %v788 = vsel %vm786, %v771, %v773
        %v789 = vsel %vm786, %v773, %v775
        %v790 = vsel %vm786, %v775, %v777
        %v791 = vsel %vm786, %v779, %v781
        %v792 = vsel %vm786, %v781, %v783
        %v793 = vsel %vm786, %v783, %v785
        %v794 = vsel %vm786, %v785, %v777
        %v804 = vsel %vm475, %v767, 0
        %806 = vmatprep.subr.mxu0 %v788
        %807 = vmatpush1.msra.mxu0 %v787
        %808 = vmatprep.subr.mxu0 %v792
        %809 = vmatpush1.msra.mxu0 %v791
        %810 = vmatprep.subr.mxu0 0.0
        %811 = vmatpush1.msra.mxu0 0.0
        %812 = vmatprep.subr.mxu0 0.0
        %813 = vmatpush1.msra.mxu0 0.0
        %814 = vmatprep.subr.mxu0 0.0
        %815 = vmatpush1.msra.mxu0 0.0
        %816 = vmatprep.subr.mxu0 0.0
        %817 = vmatpush1.msra.mxu0 0.0
        %818 = vmatprep.subr.mxu0 0.0
        %819 = vmatpush1.msra.mxu0 0.0
        %820 = vmatprep.subr.mxu0 0.0
        %821 = vmatpush1.msra.mxu0 0.0
        %822 = vmatprep.subr.mxu0 0.0
        %823 = vmatpush1.msra.mxu0 0.0
        %824 = vmatprep.subr.mxu0 0.0
        %825 = vmatpush1.msra.mxu0 0.0
        %826 = vmatprep.subr.mxu0 0.0
        %827 = vmatpush1.msra.mxu0 0.0
        %828 = vmatprep.subr.mxu0 0.0
        %829 = vmatpush1.msra.mxu0 0.0
        %830 = vmatprep.subr.mxu0 0.0
        %831 = vmatpush1.msra.mxu0 0.0
        %832 = vmatprep.subr.mxu0 0.0
        %833 = vmatpush1.msra.mxu0 0.0
        %834 = vmatprep.subr.mxu0 0.0
        %835 = vmatpush1.msra.mxu0 0.0
        %836 = vmatprep.subr.mxu0 0.0
        %837 = vmatpush1.msra.mxu0 0.0
        %838 = vmatprep.subr.mxu0 0.0
        %839 = vmatpush1.msra.mxu0 0.0
        %840 = vmatprep.subr.mxu0 0.0
        %841 = vmatpush1.msra.mxu0 0.0
        %842 = vmatprep.subr.mxu0 0.0
        %843 = vmatpush1.msra.mxu0 0.0
        %844 = vmatprep.subr.mxu0 0.0
        %845 = vmatpush1.msra.mxu0 0.0
        %846 = vmatprep.subr.mxu0 0.0
        %847 = vmatpush1.msra.mxu0 0.0
        %848 = vmatprep.subr.mxu0 0.0
        %849 = vmatpush1.msra.mxu0 0.0
        %850 = vmatprep.subr.mxu0 0.0
        %851 = vmatpush1.msra.mxu0 0.0
        %852 = vmatprep.subr.mxu0 0.0
        %853 = vmatpush1.msra.mxu0 0.0
        %854 = vmatprep.subr.mxu0 0.0
        %855 = vmatpush1.msra.mxu0 0.0
        %856 = vmatprep.subr.mxu0 0.0
        %857 = vmatpush1.msra.mxu0 0.0
        %858 = vmatprep.subr.mxu0 0.0
        %859 = vmatpush1.msra.mxu0 0.0
        %860 = vmatprep.subr.mxu0 0.0
        %861 = vmatpush1.msra.mxu0 0.0
        %862 = vmatprep.subr.mxu0 0.0
        %863 = vmatpush1.msra.mxu0 0.0
        %864 = vmatprep.subr.mxu0 0.0
        %865 = vmatpush1.msra.mxu0 0.0
        %866 = vmatprep.subr.mxu0 0.0
        %867 = vmatpush1.msra.mxu0 0.0
        %868 = vmatprep.subr.mxu0 0.0
        %869 = vmatpush1.msra.mxu0 0.0
        %870 = vmatprep.mubr.f32.mxu0 0.0
        %871 = vmatmul.mubr.f32.gmra.mrb[0].mxu0 %v804
        %v872 = vpop.f32.mrb[0].mxu0
        %v873 = vadd.f32 0.0, %v872
        %v874 = vpop.f32.mrb[0].mxu0
        %v875 = vadd.f32 0.0, %v874
        %876 = vdwg.mxu0
        %877 = vmatprep.subr.mxu0 %v790
        %878 = vmatpush1.msra.mxu0 %v789
        %879 = vmatprep.subr.mxu0 %v794
        %880 = vmatpush1.msra.mxu0 %v793
        %881 = vmatprep.subr.mxu0 0.0
        %882 = vmatpush1.msra.mxu0 0.0
        %883 = vmatprep.subr.mxu0 0.0
        %884 = vmatpush1.msra.mxu0 0.0
        %885 = vmatprep.subr.mxu0 0.0
        %886 = vmatpush1.msra.mxu0 0.0
        %887 = vmatprep.subr.mxu0 0.0
        %888 = vmatpush1.msra.mxu0 0.0
        %889 = vmatprep.subr.mxu0 0.0
        %890 = vmatpush1.msra.mxu0 0.0
        %891 = vmatprep.subr.mxu0 0.0
        %892 = vmatpush1.msra.mxu0 0.0
        %893 = vmatprep.subr.mxu0 0.0
        %894 = vmatpush1.msra.mxu0 0.0
        %895 = vmatprep.subr.mxu0 0.0
        %896 = vmatpush1.msra.mxu0 0.0
        %897 = vmatprep.subr.mxu0 0.0
        %898 = vmatpush1.msra.mxu0 0.0
        %899 = vmatprep.subr.mxu0 0.0
        %900 = vmatpush1.msra.mxu0 0.0
        %901 = vmatprep.subr.mxu0 0.0
        %902 = vmatpush1.msra.mxu0 0.0
        %903 = vmatprep.subr.mxu0 0.0
        %904 = vmatpush1.msra.mxu0 0.0
        %905 = vmatprep.subr.mxu0 0.0
        %906 = vmatpush1.msra.mxu0 0.0
        %907 = vmatprep.subr.mxu0 0.0
        %908 = vmatpush1.msra.mxu0 0.0
        %909 = vmatprep.subr.mxu0 0.0
        %910 = vmatpush1.msra.mxu0 0.0
        %911 = vmatprep.subr.mxu0 0.0
        %912 = vmatpush1.msra.mxu0 0.0
        %913 = vmatprep.subr.mxu0 0.0
        %914 = vmatpush1.msra.mxu0 0.0
        %915 = vmatprep.subr.mxu0 0.0
        %916 = vmatpush1.msra.mxu0 0.0
        %917 = vmatprep.subr.mxu0 0.0
        %918 = vmatpush1.msra.mxu0 0.0
        %919 = vmatprep.subr.mxu0 0.0
        %920 = vmatpush1.msra.mxu0 0.0
        %921 = vmatprep.subr.mxu0 0.0
        %922 = vmatpush1.msra.mxu0 0.0
        %923 = vmatprep.subr.mxu0 0.0
        %924 = vmatpush1.msra.mxu0 0.0
        %925 = vmatprep.subr.mxu0 0.0
        %926 = vmatpush1.msra.mxu0 0.0
        %927 = vmatprep.subr.mxu0 0.0
        %928 = vmatpush1.msra.mxu0 0.0
        %929 = vmatprep.subr.mxu0 0.0
        %930 = vmatpush1.msra.mxu0 0.0
        %931 = vmatprep.subr.mxu0 0.0
        %932 = vmatpush1.msra.mxu0 0.0
        %933 = vmatprep.subr.mxu0 0.0
        %934 = vmatpush1.msra.mxu0 0.0
        %935 = vmatprep.subr.mxu0 0.0
        %936 = vmatpush1.msra.mxu0 0.0
        %937 = vmatprep.subr.mxu0 0.0
        %938 = vmatpush1.msra.mxu0 0.0
        %939 = vmatprep.subr.mxu0 0.0
        %940 = vmatpush1.msra.mxu0 0.0
        %941 = vmatprep.mubr.f32.mxu0 0.0
        %942 = vmatmul.mubr.f32.gmra.mrb[0].mxu0 %v804
        %v943 = vpop.f32.mrb[0].mxu0
        %v944 = vadd.f32 0.0, %v943
        %v945 = vpop.f32.mrb[0].mxu0
        %v946 = vadd.f32 0.0, %v945
        %947 = vdwg.mxu0
        %v948 = vadd.f32 %v691, %v873
        %v949 = vadd.f32 %v693, %v875
        %v950 = vadd.f32 %v762, %v944
        %v951 = vadd.f32 %v764, %v946
        %s952 = scalar_lea.vmem %s3, 24
        %v953 = vld [vmem:[%s952] sm:$0xff]
        %954 = vrot.lane.b32.xlu0 %v420, 125
        %v955 = vpop.permute.xlu0 %954
        %956 = vrot.lane.b32.xlu0 %v421, 125
        %v957 = vpop.permute.xlu0 %956
        %958 = vrot.lane.b32.xlu0 %v422, 125
        %v959 = vpop.permute.xlu0 %958
        %960 = vrot.lane.b32.xlu0 %v423, 125
        %v961 = vpop.permute.xlu0 %960
        %962 = vrot.lane.b32.xlu0 0.0, 125
        %v963 = vpop.permute.xlu0 %962
        %964 = vrot.lane.b32.xlu0 %v424, 125
        %v965 = vpop.permute.xlu0 %964
        %966 = vrot.lane.b32.xlu0 %v425, 125
        %v967 = vpop.permute.xlu0 %966
        %968 = vrot.lane.b32.xlu0 %v426, 125
        %v969 = vpop.permute.xlu0 %968
        %970 = vrot.lane.b32.xlu0 %v427, 125
        %v971 = vpop.permute.xlu0 %970
        %vm972 = vcmask 1022976
        %v973 = vsel %vm972, %v955, %v957
        %v974 = vsel %vm972, %v957, %v959
        %v975 = vsel %vm972, %v959, %v961
        %v976 = vsel %vm972, %v961, %v963
        %v977 = vsel %vm972, %v965, %v967
        %v978 = vsel %vm972, %v967, %v969
        %v979 = vsel %vm972, %v969, %v971
        %v980 = vsel %vm972, %v971, %v963
        %v990 = vsel %vm475, %v953, 0
        %992 = vmatprep.subr.mxu0 %v974
        %993 = vmatpush1.msra.mxu0 %v973
        %994 = vmatprep.subr.mxu0 %v978
        %995 = vmatpush1.msra.mxu0 %v977
        %996 = vmatprep.subr.mxu0 0.0
        %997 = vmatpush1.msra.mxu0 0.0
        %998 = vmatprep.subr.mxu0 0.0
        %999 = vmatpush1.msra.mxu0 0.0
        %1000 = vmatprep.subr.mxu0 0.0
        %1001 = vmatpush1.msra.mxu0 0.0
        %1002 = vmatprep.subr.mxu0 0.0
        %1003 = vmatpush1.msra.mxu0 0.0
        %1004 = vmatprep.subr.mxu0 0.0
        %1005 = vmatpush1.msra.mxu0 0.0
        %1006 = vmatprep.subr.mxu0 0.0
        %1007 = vmatpush1.msra.mxu0 0.0
        %1008 = vmatprep.subr.mxu0 0.0
        %1009 = vmatpush1.msra.mxu0 0.0
        %1010 = vmatprep.subr.mxu0 0.0
        %1011 = vmatpush1.msra.mxu0 0.0
        %1012 = vmatprep.subr.mxu0 0.0
        %1013 = vmatpush1.msra.mxu0 0.0
        %1014 = vmatprep.subr.mxu0 0.0
        %1015 = vmatpush1.msra.mxu0 0.0
        %1016 = vmatprep.subr.mxu0 0.0
        %1017 = vmatpush1.msra.mxu0 0.0
        %1018 = vmatprep.subr.mxu0 0.0
        %1019 = vmatpush1.msra.mxu0 0.0
        %1020 = vmatprep.subr.mxu0 0.0
        %1021 = vmatpush1.msra.mxu0 0.0
        %1022 = vmatprep.subr.mxu0 0.0
        %1023 = vmatpush1.msra.mxu0 0.0
        %1024 = vmatprep.subr.mxu0 0.0
        %1025 = vmatpush1.msra.mxu0 0.0
        %1026 = vmatprep.subr.mxu0 0.0
        %1027 = vmatpush1.msra.mxu0 0.0
        %1028 = vmatprep.subr.mxu0 0.0
        %1029 = vmatpush1.msra.mxu0 0.0
        %1030 = vmatprep.subr.mxu0 0.0
        %1031 = vmatpush1.msra.mxu0 0.0
        %1032 = vmatprep.subr.mxu0 0.0
        %1033 = vmatpush1.msra.mxu0 0.0
        %1034 = vmatprep.subr.mxu0 0.0
        %1035 = vmatpush1.msra.mxu0 0.0
        %1036 = vmatprep.subr.mxu0 0.0
        %1037 = vmatpush1.msra.mxu0 0.0
        %1038 = vmatprep.subr.mxu0 0.0
        %1039 = vmatpush1.msra.mxu0 0.0
        %1040 = vmatprep.subr.mxu0 0.0
        %1041 = vmatpush1.msra.mxu0 0.0
        %1042 = vmatprep.subr.mxu0 0.0
        %1043 = vmatpush1.msra.mxu0 0.0
        %1044 = vmatprep.subr.mxu0 0.0
        %1045 = vmatpush1.msra.mxu0 0.0
        %1046 = vmatprep.subr.mxu0 0.0
        %1047 = vmatpush1.msra.mxu0 0.0
        %1048 = vmatprep.subr.mxu0 0.0
        %1049 = vmatpush1.msra.mxu0 0.0
        %1050 = vmatprep.subr.mxu0 0.0
        %1051 = vmatpush1.msra.mxu0 0.0
        %1052 = vmatprep.subr.mxu0 0.0
        %1053 = vmatpush1.msra.mxu0 0.0
        %1054 = vmatprep.subr.mxu0 0.0
        %1055 = vmatpush1.msra.mxu0 0.0
        %1056 = vmatprep.mubr.f32.mxu0 0.0
        %1057 = vmatmul.mubr.f32.gmra.mrb[0].mxu0 %v990
        %v1058 = vpop.f32.mrb[0].mxu0
        %v1059 = vadd.f32 0.0, %v1058
        %v1060 = vpop.f32.mrb[0].mxu0
        %v1061 = vadd.f32 0.0, %v1060
        %1062 = vdwg.mxu0
        %1063 = vmatprep.subr.mxu0 %v976
        %1064 = vmatpush1.msra.mxu0 %v975
        %1065 = vmatprep.subr.mxu0 %v980
        %1066 = vmatpush1.msra.mxu0 %v979
        %1067 = vmatprep.subr.mxu0 0.0
        %1068 = vmatpush1.msra.mxu0 0.0
        %1069 = vmatprep.subr.mxu0 0.0
        %1070 = vmatpush1.msra.mxu0 0.0
        %1071 = vmatprep.subr.mxu0 0.0
        %1072 = vmatpush1.msra.mxu0 0.0
        %1073 = vmatprep.subr.mxu0 0.0
        %1074 = vmatpush1.msra.mxu0 0.0
        %1075 = vmatprep.subr.mxu0 0.0
        %1076 = vmatpush1.msra.mxu0 0.0
        %1077 = vmatprep.subr.mxu0 0.0
        %1078 = vmatpush1.msra.mxu0 0.0
        %1079 = vmatprep.subr.mxu0 0.0
        %1080 = vmatpush1.msra.mxu0 0.0
        %1081 = vmatprep.subr.mxu0 0.0
        %1082 = vmatpush1.msra.mxu0 0.0
        %1083 = vmatprep.subr.mxu0 0.0
        %1084 = vmatpush1.msra.mxu0 0.0
        %1085 = vmatprep.subr.mxu0 0.0
        %1086 = vmatpush1.msra.mxu0 0.0
        %1087 = vmatprep.subr.mxu0 0.0
        %1088 = vmatpush1.msra.mxu0 0.0
        %1089 = vmatprep.subr.mxu0 0.0
        %1090 = vmatpush1.msra.mxu0 0.0
        %1091 = vmatprep.subr.mxu0 0.0
        %1092 = vmatpush1.msra.mxu0 0.0
        %1093 = vmatprep.subr.mxu0 0.0
        %1094 = vmatpush1.msra.mxu0 0.0
        %1095 = vmatprep.subr.mxu0 0.0
        %1096 = vmatpush1.msra.mxu0 0.0
        %1097 = vmatprep.subr.mxu0 0.0
        %1098 = vmatpush1.msra.mxu0 0.0
        %1099 = vmatprep.subr.mxu0 0.0
        %1100 = vmatpush1.msra.mxu0 0.0
        %1101 = vmatprep.subr.mxu0 0.0
        %1102 = vmatpush1.msra.mxu0 0.0
        %1103 = vmatprep.subr.mxu0 0.0
        %1104 = vmatpush1.msra.mxu0 0.0
        %1105 = vmatprep.subr.mxu0 0.0
        %1106 = vmatpush1.msra.mxu0 0.0
        %1107 = vmatprep.subr.mxu0 0.0
        %1108 = vmatpush1.msra.mxu0 0.0
        %1109 = vmatprep.subr.mxu0 0.0
        %1110 = vmatpush1.msra.mxu0 0.0
        %1111 = vmatprep.subr.mxu0 0.0
        %1112 = vmatpush1.msra.mxu0 0.0
        %1113 = vmatprep.subr.mxu0 0.0
        %1114 = vmatpush1.msra.mxu0 0.0
        %1115 = vmatprep.subr.mxu0 0.0
        %1116 = vmatpush1.msra.mxu0 0.0
        %1117 = vmatprep.subr.mxu0 0.0
        %1118 = vmatpush1.msra.mxu0 0.0
        %1119 = vmatprep.subr.mxu0 0.0
        %1120 = vmatpush1.msra.mxu0 0.0
        %1121 = vmatprep.subr.mxu0 0.0
        %1122 = vmatpush1.msra.mxu0 0.0
        %1123 = vmatprep.subr.mxu0 0.0
        %1124 = vmatpush1.msra.mxu0 0.0
        %1125 = vmatprep.subr.mxu0 0.0
        %1126 = vmatpush1.msra.mxu0 0.0
        %1127 = vmatprep.mubr.f32.mxu0 0.0
        %1128 = vmatmul.mubr.f32.gmra.mrb[0].mxu0 %v990
        %v1129 = vpop.f32.mrb[0].mxu0
        %v1130 = vadd.f32 0.0, %v1129
        %v1131 = vpop.f32.mrb[0].mxu0
        %v1132 = vadd.f32 0.0, %v1131
        %1133 = vdwg.mxu0
        %v1134 = vadd.f32 %v948, %v1059
        %v1135 = vadd.f32 %v949, %v1061
        %v1136 = vadd.f32 %v950, %v1130
        %v1137 = vadd.f32 %v951, %v1132
        %s1138 = scalar_lea.vmem %s3, 32
        %v1139 = vld [vmem:[%s1138] sm:$0xff]
        %1140 = vrot.lane.b32.xlu0 %v420, 124
        %v1141 = vpop.permute.xlu0 %1140
        %1142 = vrot.lane.b32.xlu0 %v421, 124
        %v1143 = vpop.permute.xlu0 %1142
        %1144 = vrot.lane.b32.xlu0 %v422, 124
        %v1145 = vpop.permute.xlu0 %1144
        %1146 = vrot.lane.b32.xlu0 %v423, 124
        %v1147 = vpop.permute.xlu0 %1146
        %1148 = vrot.lane.b32.xlu0 0.0, 124
        %v1149 = vpop.permute.xlu0 %1148
        %1150 = vrot.lane.b32.xlu0 %v424, 124
        %v1151 = vpop.permute.xlu0 %1150
        %1152 = vrot.lane.b32.xlu0 %v425, 124
        %v1153 = vpop.permute.xlu0 %1152
        %1154 = vrot.lane.b32.xlu0 %v426, 124
        %v1155 = vpop.permute.xlu0 %1154
        %1156 = vrot.lane.b32.xlu0 %v427, 124
        %v1157 = vpop.permute.xlu0 %1156
        %vm1158 = vcmask 1014784
        %v1159 = vsel %vm1158, %v1141, %v1143
        %v1160 = vsel %vm1158, %v1143, %v1145
        %v1161 = vsel %vm1158, %v1145, %v1147
        %v1162 = vsel %vm1158, %v1147, %v1149
        %v1163 = vsel %vm1158, %v1151, %v1153
        %v1164 = vsel %vm1158, %v1153, %v1155
        %v1165 = vsel %vm1158, %v1155, %v1157
        %v1166 = vsel %vm1158, %v1157, %v1149
        %v1176 = vsel %vm475, %v1139, 0
        %1178 = vmatprep.subr.mxu0 %v1160
        %1179 = vmatpush1.msra.mxu0 %v1159
        %1180 = vmatprep.subr.mxu0 %v1164
        %1181 = vmatpush1.msra.mxu0 %v1163
        %1182 = vmatprep.subr.mxu0 0.0
        %1183 = vmatpush1.msra.mxu0 0.0
        %1184 = vmatprep.subr.mxu0 0.0
        %1185 = vmatpush1.msra.mxu0 0.0
        %1186 = vmatprep.subr.mxu0 0.0
        %1187 = vmatpush1.msra.mxu0 0.0
        %1188 = vmatprep.subr.mxu0 0.0
        %1189 = vmatpush1.msra.mxu0 0.0
        %1190 = vmatprep.subr.mxu0 0.0
        %1191 = vmatpush1.msra.mxu0 0.0
        %1192 = vmatprep.subr.mxu0 0.0
        %1193 = vmatpush1.msra.mxu0 0.0
        %1194 = vmatprep.subr.mxu0 0.0
        %1195 = vmatpush1.msra.mxu0 0.0
        %1196 = vmatprep.subr.mxu0 0.0
        %1197 = vmatpush1.msra.mxu0 0.0
        %1198 = vmatprep.subr.mxu0 0.0
        %1199 = vmatpush1.msra.mxu0 0.0
        %1200 = vmatprep.subr.mxu0 0.0
        %1201 = vmatpush1.msra.mxu0 0.0
        %1202 = vmatprep.subr.mxu0 0.0
        %1203 = vmatpush1.msra.mxu0 0.0
        %1204 = vmatprep.subr.mxu0 0.0
        %1205 = vmatpush1.msra.mxu0 0.0
        %1206 = vmatprep.subr.mxu0 0.0
        %1207 = vmatpush1.msra.mxu0 0.0
        %1208 = vmatprep.subr.mxu0 0.0
        %1209 = vmatpush1.msra.mxu0 0.0
        %1210 = vmatprep.subr.mxu0 0.0
        %1211 = vmatpush1.msra.mxu0 0.0
        %1212 = vmatprep.subr.mxu0 0.0
        %1213 = vmatpush1.msra.mxu0 0.0
        %1214 = vmatprep.subr.mxu0 0.0
        %1215 = vmatpush1.msra.mxu0 0.0
        %1216 = vmatprep.subr.mxu0 0.0
        %1217 = vmatpush1.msra.mxu0 0.0
        %1218 = vmatprep.subr.mxu0 0.0
        %1219 = vmatpush1.msra.mxu0 0.0
        %1220 = vmatprep.subr.mxu0 0.0
        %1221 = vmatpush1.msra.mxu0 0.0
        %1222 = vmatprep.subr.mxu0 0.0
        %1223 = vmatpush1.msra.mxu0 0.0
        %1224 = vmatprep.subr.mxu0 0.0
        %1225 = vmatpush1.msra.mxu0 0.0
        %1226 = vmatprep.subr.mxu0 0.0
        %1227 = vmatpush1.msra.mxu0 0.0
        %1228 = vmatprep.subr.mxu0 0.0
        %1229 = vmatpush1.msra.mxu0 0.0
        %1230 = vmatprep.subr.mxu0 0.0
        %1231 = vmatpush1.msra.mxu0 0.0
        %1232 = vmatprep.subr.mxu0 0.0
        %1233 = vmatpush1.msra.mxu0 0.0
        %1234 = vmatprep.subr.mxu0 0.0
        %1235 = vmatpush1.msra.mxu0 0.0
        %1236 = vmatprep.subr.mxu0 0.0
        %1237 = vmatpush1.msra.mxu0 0.0
        %1238 = vmatprep.subr.mxu0 0.0
        %1239 = vmatpush1.msra.mxu0 0.0
        %1240 = vmatprep.subr.mxu0 0.0
        %1241 = vmatpush1.msra.mxu0 0.0
        %1242 = vmatprep.mubr.f32.mxu0 0.0
        %1243 = vmatmul.mubr.f32.gmra.mrb[0].mxu0 %v1176
        %v1244 = vpop.f32.mrb[0].mxu0
        %v1245 = vadd.f32 0.0, %v1244
        %v1246 = vpop.f32.mrb[0].mxu0
        %v1247 = vadd.f32 0.0, %v1246
        %1248 = vdwg.mxu0
        %1249 = vmatprep.subr.mxu0 %v1162
        %1250 = vmatpush1.msra.mxu0 %v1161
        %1251 = vmatprep.subr.mxu0 %v1166
        %1252 = vmatpush1.msra.mxu0 %v1165
        %1253 = vmatprep.subr.mxu0 0.0
        %1254 = vmatpush1.msra.mxu0 0.0
        %1255 = vmatprep.subr.mxu0 0.0
        %1256 = vmatpush1.msra.mxu0 0.0
        %1257 = vmatprep.subr.mxu0 0.0
        %1258 = vmatpush1.msra.mxu0 0.0
        %1259 = vmatprep.subr.mxu0 0.0
        %1260 = vmatpush1.msra.mxu0 0.0
        %1261 = vmatprep.subr.mxu0 0.0
        %1262 = vmatpush1.msra.mxu0 0.0
        %1263 = vmatprep.subr.mxu0 0.0
        %1264 = vmatpush1.msra.mxu0 0.0
        %1265 = vmatprep.subr.mxu0 0.0
        %1266 = vmatpush1.msra.mxu0 0.0
        %1267 = vmatprep.subr.mxu0 0.0
        %1268 = vmatpush1.msra.mxu0 0.0
        %1269 = vmatprep.subr.mxu0 0.0
        %1270 = vmatpush1.msra.mxu0 0.0
        %1271 = vmatprep.subr.mxu0 0.0
        %1272 = vmatpush1.msra.mxu0 0.0
        %1273 = vmatprep.subr.mxu0 0.0
        %1274 = vmatpush1.msra.mxu0 0.0
        %1275 = vmatprep.subr.mxu0 0.0
        %1276 = vmatpush1.msra.mxu0 0.0
        %1277 = vmatprep.subr.mxu0 0.0
        %1278 = vmatpush1.msra.mxu0 0.0
        %1279 = vmatprep.subr.mxu0 0.0
        %1280 = vmatpush1.msra.mxu0 0.0
        %1281 = vmatprep.subr.mxu0 0.0
        %1282 = vmatpush1.msra.mxu0 0.0
        %1283 = vmatprep.subr.mxu0 0.0
        %1284 = vmatpush1.msra.mxu0 0.0
        %1285 = vmatprep.subr.mxu0 0.0
        %1286 = vmatpush1.msra.mxu0 0.0
        %1287 = vmatprep.subr.mxu0 0.0
        %1288 = vmatpush1.msra.mxu0 0.0
        %1289 = vmatprep.subr.mxu0 0.0
        %1290 = vmatpush1.msra.mxu0 0.0
        %1291 = vmatprep.subr.mxu0 0.0
        %1292 = vmatpush1.msra.mxu0 0.0
        %1293 = vmatprep.subr.mxu0 0.0
        %1294 = vmatpush1.msra.mxu0 0.0
        %1295 = vmatprep.subr.mxu0 0.0
        %1296 = vmatpush1.msra.mxu0 0.0
        %1297 = vmatprep.subr.mxu0 0.0
        %1298 = vmatpush1.msra.mxu0 0.0
        %1299 = vmatprep.subr.mxu0 0.0
        %1300 = vmatpush1.msra.mxu0 0.0
        %1301 = vmatprep.subr.mxu0 0.0
        %1302 = vmatpush1.msra.mxu0 0.0
        %1303 = vmatprep.subr.mxu0 0.0
        %1304 = vmatpush1.msra.mxu0 0.0
        %1305 = vmatprep.subr.mxu0 0.0
        %1306 = vmatpush1.msra.mxu0 0.0
        %1307 = vmatprep.subr.mxu0 0.0
        %1308 = vmatpush1.msra.mxu0 0.0
        %1309 = vmatprep.subr.mxu0 0.0
        %1310 = vmatpush1.msra.mxu0 0.0
        %1311 = vmatprep.subr.mxu0 0.0
        %1312 = vmatpush1.msra.mxu0 0.0
        %1313 = vmatprep.mubr.f32.mxu0 0.0
        %1314 = vmatmul.mubr.f32.gmra.mrb[0].mxu0 %v1176
        %v1315 = vpop.f32.mrb[0].mxu0
        %v1316 = vadd.f32 0.0, %v1315
        %v1317 = vpop.f32.mrb[0].mxu0
        %v1318 = vadd.f32 0.0, %v1317
        %1319 = vdwg.mxu0
        %v1320 = vadd.f32 %v1134, %v1245
        %v1321 = vadd.f32 %v1135, %v1247
        %v1322 = vadd.f32 %v1136, %v1316
        %v1323 = vadd.f32 %v1137, %v1318
        %s1324 = scalar_lea.vmem %s3, 40
        %v1325 = vld [vmem:[%s1324] sm:$0xff]
        %1326 = vrot.lane.b32.xlu0 %v420, 107
        %v1327 = vpop.permute.xlu0 %1326
        %1328 = vrot.lane.b32.xlu0 %v421, 107
        %v1329 = vpop.permute.xlu0 %1328
        %1330 = vrot.lane.b32.xlu0 %v422, 107
        %v1331 = vpop.permute.xlu0 %1330
        %1332 = vrot.lane.b32.xlu0 %v423, 107
        %v1333 = vpop.permute.xlu0 %1332
        %1334 = vrot.lane.b32.xlu0 0.0, 107
        %v1335 = vpop.permute.xlu0 %1334
        %1336 = vrot.lane.b32.xlu0 %v424, 107
        %v1337 = vpop.permute.xlu0 %1336
        %1338 = vrot.lane.b32.xlu0 %v425, 107
        %v1339 = vpop.permute.xlu0 %1338
        %1340 = vrot.lane.b32.xlu0 %v426, 107
        %v1341 = vpop.permute.xlu0 %1340
        %1342 = vrot.lane.b32.xlu0 %v427, 107
        %v1343 = vpop.permute.xlu0 %1342
        %vm1344 = vcmask 875520
        %v1345 = vsel %vm1344, %v1327, %v1329
        %v1346 = vsel %vm1344, %v1329, %v1331
        %v1347 = vsel %vm1344, %v1331, %v1333
        %v1348 = vsel %vm1344, %v1333, %v1335
        %v1349 = vsel %vm1344, %v1337, %v1339
        %v1350 = vsel %vm1344, %v1339, %v1341
        %v1351 = vsel %vm1344, %v1341, %v1343
        %v1352 = vsel %vm1344, %v1343, %v1335
        %v1362 = vsel %vm475, %v1325, 0
        %1364 = vmatprep.subr.mxu0 %v1346
        %1365 = vmatpush1.msra.mxu0 %v1345
        %1366 = vmatprep.subr.mxu0 %v1350
        %1367 = vmatpush1.msra.mxu0 %v1349
        %1368 = vmatprep.subr.mxu0 0.0
        %1369 = vmatpush1.msra.mxu0 0.0
        %1370 = vmatprep.subr.mxu0 0.0
        %1371 = vmatpush1.msra.mxu0 0.0
        %1372 = vmatprep.subr.mxu0 0.0
        %1373 = vmatpush1.msra.mxu0 0.0
        %1374 = vmatprep.subr.mxu0 0.0
        %1375 = vmatpush1.msra.mxu0 0.0
        %1376 = vmatprep.subr.mxu0 0.0
        %1377 = vmatpush1.msra.mxu0 0.0
        %1378 = vmatprep.subr.mxu0 0.0
        %1379 = vmatpush1.msra.mxu0 0.0
        %1380 = vmatprep.subr.mxu0 0.0
        %1381 = vmatpush1.msra.mxu0 0.0
        %1382 = vmatprep.subr.mxu0 0.0
        %1383 = vmatpush1.msra.mxu0 0.0
        %1384 = vmatprep.subr.mxu0 0.0
        %1385 = vmatpush1.msra.mxu0 0.0
        %1386 = vmatprep.subr.mxu0 0.0
        %1387 = vmatpush1.msra.mxu0 0.0
        %1388 = vmatprep.subr.mxu0 0.0
        %1389 = vmatpush1.msra.mxu0 0.0
        %1390 = vmatprep.subr.mxu0 0.0
        %1391 = vmatpush1.msra.mxu0 0.0
        %1392 = vmatprep.subr.mxu0 0.0
        %1393 = vmatpush1.msra.mxu0 0.0
        %1394 = vmatprep.subr.mxu0 0.0
        %1395 = vmatpush1.msra.mxu0 0.0
        %1396 = vmatprep.subr.mxu0 0.0
        %1397 = vmatpush1.msra.mxu0 0.0
        %1398 = vmatprep.subr.mxu0 0.0
        %1399 = vmatpush1.msra.mxu0 0.0
        %1400 = vmatprep.subr.mxu0 0.0
        %1401 = vmatpush1.msra.mxu0 0.0
        %1402 = vmatprep.subr.mxu0 0.0
        %1403 = vmatpush1.msra.mxu0 0.0
        %1404 = vmatprep.subr.mxu0 0.0
        %1405 = vmatpush1.msra.mxu0 0.0
        %1406 = vmatprep.subr.mxu0 0.0
        %1407 = vmatpush1.msra.mxu0 0.0
        %1408 = vmatprep.subr.mxu0 0.0
        %1409 = vmatpush1.msra.mxu0 0.0
        %1410 = vmatprep.subr.mxu0 0.0
        %1411 = vmatpush1.msra.mxu0 0.0
        %1412 = vmatprep.subr.mxu0 0.0
        %1413 = vmatpush1.msra.mxu0 0.0
        %1414 = vmatprep.subr.mxu0 0.0
        %1415 = vmatpush1.msra.mxu0 0.0
        %1416 = vmatprep.subr.mxu0 0.0
        %1417 = vmatpush1.msra.mxu0 0.0
        %1418 = vmatprep.subr.mxu0 0.0
        %1419 = vmatpush1.msra.mxu0 0.0
        %1420 = vmatprep.subr.mxu0 0.0
        %1421 = vmatpush1.msra.mxu0 0.0
        %1422 = vmatprep.subr.mxu0 0.0
        %1423 = vmatpush1.msra.mxu0 0.0
        %1424 = vmatprep.subr.mxu0 0.0
        %1425 = vmatpush1.msra.mxu0 0.0
        %1426 = vmatprep.subr.mxu0 0.0
        %1427 = vmatpush1.msra.mxu0 0.0
        %1428 = vmatprep.mubr.f32.mxu0 0.0
        %1429 = vmatmul.mubr.f32.gmra.mrb[0].mxu0 %v1362
        %v1430 = vpop.f32.mrb[0].mxu0
        %v1431 = vadd.f32 0.0, %v1430
        %v1432 = vpop.f32.mrb[0].mxu0
        %v1433 = vadd.f32 0.0, %v1432
        %1434 = vdwg.mxu0
        %1435 = vmatprep.subr.mxu0 %v1348
        %1436 = vmatpush1.msra.mxu0 %v1347
        %1437 = vmatprep.subr.mxu0 %v1352
        %1438 = vmatpush1.msra.mxu0 %v1351
        %1439 = vmatprep.subr.mxu0 0.0
        %1440 = vmatpush1.msra.mxu0 0.0
        %1441 = vmatprep.subr.mxu0 0.0
        %1442 = vmatpush1.msra.mxu0 0.0
        %1443 = vmatprep.subr.mxu0 0.0
        %1444 = vmatpush1.msra.mxu0 0.0
        %1445 = vmatprep.subr.mxu0 0.0
        %1446 = vmatpush1.msra.mxu0 0.0
        %1447 = vmatprep.subr.mxu0 0.0
        %1448 = vmatpush1.msra.mxu0 0.0
        %1449 = vmatprep.subr.mxu0 0.0
        %1450 = vmatpush1.msra.mxu0 0.0
        %1451 = vmatprep.subr.mxu0 0.0
        %1452 = vmatpush1.msra.mxu0 0.0
        %1453 = vmatprep.subr.mxu0 0.0
        %1454 = vmatpush1.msra.mxu0 0.0
        %1455 = vmatprep.subr.mxu0 0.0
        %1456 = vmatpush1.msra.mxu0 0.0
        %1457 = vmatprep.subr.mxu0 0.0
        %1458 = vmatpush1.msra.mxu0 0.0
        %1459 = vmatprep.subr.mxu0 0.0
        %1460 = vmatpush1.msra.mxu0 0.0
        %1461 = vmatprep.subr.mxu0 0.0
        %1462 = vmatpush1.msra.mxu0 0.0
        %1463 = vmatprep.subr.mxu0 0.0
        %1464 = vmatpush1.msra.mxu0 0.0
        %1465 = vmatprep.subr.mxu0 0.0
        %1466 = vmatpush1.msra.mxu0 0.0
        %1467 = vmatprep.subr.mxu0 0.0
        %1468 = vmatpush1.msra.mxu0 0.0
        %1469 = vmatprep.subr.mxu0 0.0
        %1470 = vmatpush1.msra.mxu0 0.0
        %1471 = vmatprep.subr.mxu0 0.0
        %1472 = vmatpush1.msra.mxu0 0.0
        %1473 = vmatprep.subr.mxu0 0.0
        %1474 = vmatpush1.msra.mxu0 0.0
        %1475 = vmatprep.subr.mxu0 0.0
        %1476 = vmatpush1.msra.mxu0 0.0
        %1477 = vmatprep.subr.mxu0 0.0
        %1478 = vmatpush1.msra.mxu0 0.0
        %1479 = vmatprep.subr.mxu0 0.0
        %1480 = vmatpush1.msra.mxu0 0.0
        %1481 = vmatprep.subr.mxu0 0.0
        %1482 = vmatpush1.msra.mxu0 0.0
        %1483 = vmatprep.subr.mxu0 0.0
        %1484 = vmatpush1.msra.mxu0 0.0
        %1485 = vmatprep.subr.mxu0 0.0
        %1486 = vmatpush1.msra.mxu0 0.0
        %1487 = vmatprep.subr.mxu0 0.0
        %1488 = vmatpush1.msra.mxu0 0.0
        %1489 = vmatprep.subr.mxu0 0.0
        %1490 = vmatpush1.msra.mxu0 0.0
        %1491 = vmatprep.subr.mxu0 0.0
        %1492 = vmatpush1.msra.mxu0 0.0
        %1493 = vmatprep.subr.mxu0 0.0
        %1494 = vmatpush1.msra.mxu0 0.0
        %1495 = vmatprep.subr.mxu0 0.0
        %1496 = vmatpush1.msra.mxu0 0.0
        %1497 = vmatprep.subr.mxu0 0.0
        %1498 = vmatpush1.msra.mxu0 0.0
        %1499 = vmatprep.mubr.f32.mxu0 0.0
        %1500 = vmatmul.mubr.f32.gmra.mrb[0].mxu0 %v1362
        %v1501 = vpop.f32.mrb[0].mxu0
        %v1502 = vadd.f32 0.0, %v1501
        %v1503 = vpop.f32.mrb[0].mxu0
        %v1504 = vadd.f32 0.0, %v1503
        %1505 = vdwg.mxu0
        %v1506 = vadd.f32 %v1320, %v1431
        %v1507 = vadd.f32 %v1321, %v1433
        %v1508 = vadd.f32 %v1322, %v1502
        %v1509 = vadd.f32 %v1323, %v1504
        %s1510 = scalar_lea.vmem %s3, 48
        %v1511 = vld [vmem:[%s1510] sm:$0xff]
        %1512 = vrot.lane.b32.xlu0 %v420, 106
        %v1513 = vpop.permute.xlu0 %1512
        %1514 = vrot.lane.b32.xlu0 %v421, 106
        %v1515 = vpop.permute.xlu0 %1514
        %1516 = vrot.lane.b32.xlu0 %v422, 106
        %v1517 = vpop.permute.xlu0 %1516
        %1518 = vrot.lane.b32.xlu0 %v423, 106
        %v1519 = vpop.permute.xlu0 %1518
        %1520 = vrot.lane.b32.xlu0 0.0, 106
        %v1521 = vpop.permute.xlu0 %1520
        %1522 = vrot.lane.b32.xlu0 %v424, 106
        %v1523 = vpop.permute.xlu0 %1522
        %1524 = vrot.lane.b32.xlu0 %v425, 106
        %v1525 = vpop.permute.xlu0 %1524
        %1526 = vrot.lane.b32.xlu0 %v426, 106
        %v1527 = vpop.permute.xlu0 %1526
        %1528 = vrot.lane.b32.xlu0 %v427, 106
        %v1529 = vpop.permute.xlu0 %1528
        %vm1530 = vcmask 867328
        %v1531 = vsel %vm1530, %v1513, %v1515
        %v1532 = vsel %vm1530, %v1515, %v1517
        %v1533 = vsel %vm1530, %v1517, %v1519
        %v1534 = vsel %vm1530, %v1519, %v1521
        %v1535 = vsel %vm1530, %v1523, %v1525
        %v1536 = vsel %vm1530, %v1525, %v1527
        %v1537 = vsel %vm1530, %v1527, %v1529
        %v1538 = vsel %vm1530, %v1529, %v1521
        %v1548 = vsel %vm475, %v1511, 0
        %1550 = vmatprep.subr.mxu0 %v1532
        %1551 = vmatpush1.msra.mxu0 %v1531
        %1552 = vmatprep.subr.mxu0 %v1536
        %1553 = vmatpush1.msra.mxu0 %v1535
        %1554 = vmatprep.subr.mxu0 0.0
        %1555 = vmatpush1.msra.mxu0 0.0
        %1556 = vmatprep.subr.mxu0 0.0
        %1557 = vmatpush1.msra.mxu0 0.0
        %1558 = vmatprep.subr.mxu0 0.0
        %1559 = vmatpush1.msra.mxu0 0.0
        %1560 = vmatprep.subr.mxu0 0.0
        %1561 = vmatpush1.msra.mxu0 0.0
        %1562 = vmatprep.subr.mxu0 0.0
        %1563 = vmatpush1.msra.mxu0 0.0
        %1564 = vmatprep.subr.mxu0 0.0
        %1565 = vmatpush1.msra.mxu0 0.0
        %1566 = vmatprep.subr.mxu0 0.0
        %1567 = vmatpush1.msra.mxu0 0.0
        %1568 = vmatprep.subr.mxu0 0.0
        %1569 = vmatpush1.msra.mxu0 0.0
        %1570 = vmatprep.subr.mxu0 0.0
        %1571 = vmatpush1.msra.mxu0 0.0
        %1572 = vmatprep.subr.mxu0 0.0
        %1573 = vmatpush1.msra.mxu0 0.0
        %1574 = vmatprep.subr.mxu0 0.0
        %1575 = vmatpush1.msra.mxu0 0.0
        %1576 = vmatprep.subr.mxu0 0.0
        %1577 = vmatpush1.msra.mxu0 0.0
        %1578 = vmatprep.subr.mxu0 0.0
        %1579 = vmatpush1.msra.mxu0 0.0
        %1580 = vmatprep.subr.mxu0 0.0
        %1581 = vmatpush1.msra.mxu0 0.0
        %1582 = vmatprep.subr.mxu0 0.0
        %1583 = vmatpush1.msra.mxu0 0.0
        %1584 = vmatprep.subr.mxu0 0.0
        %1585 = vmatpush1.msra.mxu0 0.0
        %1586 = vmatprep.subr.mxu0 0.0
        %1587 = vmatpush1.msra.mxu0 0.0
        %1588 = vmatprep.subr.mxu0 0.0
        %1589 = vmatpush1.msra.mxu0 0.0
        %1590 = vmatprep.subr.mxu0 0.0
        %1591 = vmatpush1.msra.mxu0 0.0
        %1592 = vmatprep.subr.mxu0 0.0
        %1593 = vmatpush1.msra.mxu0 0.0
        %1594 = vmatprep.subr.mxu0 0.0
        %1595 = vmatpush1.msra.mxu0 0.0
        %1596 = vmatprep.subr.mxu0 0.0
        %1597 = vmatpush1.msra.mxu0 0.0
        %1598 = vmatprep.subr.mxu0 0.0
        %1599 = vmatpush1.msra.mxu0 0.0
        %1600 = vmatprep.subr.mxu0 0.0
        %1601 = vmatpush1.msra.mxu0 0.0
        %1602 = vmatprep.subr.mxu0 0.0
        %1603 = vmatpush1.msra.mxu0 0.0
        %1604 = vmatprep.subr.mxu0 0.0
        %1605 = vmatpush1.msra.mxu0 0.0
        %1606 = vmatprep.subr.mxu0 0.0
        %1607 = vmatpush1.msra.mxu0 0.0
        %1608 = vmatprep.subr.mxu0 0.0
        %1609 = vmatpush1.msra.mxu0 0.0
        %1610 = vmatprep.subr.mxu0 0.0
        %1611 = vmatpush1.msra.mxu0 0.0
        %1612 = vmatprep.subr.mxu0 0.0
        %1613 = vmatpush1.msra.mxu0 0.0
        %1614 = vmatprep.mubr.f32.mxu0 0.0
        %1615 = vmatmul.mubr.f32.gmra.mrb[0].mxu0 %v1548
        %v1616 = vpop.f32.mrb[0].mxu0
        %v1617 = vadd.f32 0.0, %v1616
        %v1618 = vpop.f32.mrb[0].mxu0
        %v1619 = vadd.f32 0.0, %v1618
        %1620 = vdwg.mxu0
        %1621 = vmatprep.subr.mxu0 %v1534
        %1622 = vmatpush1.msra.mxu0 %v1533
        %1623 = vmatprep.subr.mxu0 %v1538
        %1624 = vmatpush1.msra.mxu0 %v1537
        %1625 = vmatprep.subr.mxu0 0.0
        %1626 = vmatpush1.msra.mxu0 0.0
        %1627 = vmatprep.subr.mxu0 0.0
        %1628 = vmatpush1.msra.mxu0 0.0
        %1629 = vmatprep.subr.mxu0 0.0
        %1630 = vmatpush1.msra.mxu0 0.0
        %1631 = vmatprep.subr.mxu0 0.0
        %1632 = vmatpush1.msra.mxu0 0.0
        %1633 = vmatprep.subr.mxu0 0.0
        %1634 = vmatpush1.msra.mxu0 0.0
        %1635 = vmatprep.subr.mxu0 0.0
        %1636 = vmatpush1.msra.mxu0 0.0
        %1637 = vmatprep.subr.mxu0 0.0
        %1638 = vmatpush1.msra.mxu0 0.0
        %1639 = vmatprep.subr.mxu0 0.0
        %1640 = vmatpush1.msra.mxu0 0.0
        %1641 = vmatprep.subr.mxu0 0.0
        %1642 = vmatpush1.msra.mxu0 0.0
        %1643 = vmatprep.subr.mxu0 0.0
        %1644 = vmatpush1.msra.mxu0 0.0
        %1645 = vmatprep.subr.mxu0 0.0
        %1646 = vmatpush1.msra.mxu0 0.0
        %1647 = vmatprep.subr.mxu0 0.0
        %1648 = vmatpush1.msra.mxu0 0.0
        %1649 = vmatprep.subr.mxu0 0.0
        %1650 = vmatpush1.msra.mxu0 0.0
        %1651 = vmatprep.subr.mxu0 0.0
        %1652 = vmatpush1.msra.mxu0 0.0
        %1653 = vmatprep.subr.mxu0 0.0
        %1654 = vmatpush1.msra.mxu0 0.0
        %1655 = vmatprep.subr.mxu0 0.0
        %1656 = vmatpush1.msra.mxu0 0.0
        %1657 = vmatprep.subr.mxu0 0.0
        %1658 = vmatpush1.msra.mxu0 0.0
        %1659 = vmatprep.subr.mxu0 0.0
        %1660 = vmatpush1.msra.mxu0 0.0
        %1661 = vmatprep.subr.mxu0 0.0
        %1662 = vmatpush1.msra.mxu0 0.0
        %1663 = vmatprep.subr.mxu0 0.0
        %1664 = vmatpush1.msra.mxu0 0.0
        %1665 = vmatprep.subr.mxu0 0.0
        %1666 = vmatpush1.msra.mxu0 0.0
        %1667 = vmatprep.subr.mxu0 0.0
        %1668 = vmatpush1.msra.mxu0 0.0
        %1669 = vmatprep.subr.mxu0 0.0
        %1670 = vmatpush1.msra.mxu0 0.0
        %1671 = vmatprep.subr.mxu0 0.0
        %1672 = vmatpush1.msra.mxu0 0.0
        %1673 = vmatprep.subr.mxu0 0.0
        %1674 = vmatpush1.msra.mxu0 0.0
        %1675 = vmatprep.subr.mxu0 0.0
        %1676 = vmatpush1.msra.mxu0 0.0
        %1677 = vmatprep.subr.mxu0 0.0
        %1678 = vmatpush1.msra.mxu0 0.0
        %1679 = vmatprep.subr.mxu0 0.0
        %1680 = vmatpush1.msra.mxu0 0.0
        %1681 = vmatprep.subr.mxu0 0.0
        %1682 = vmatpush1.msra.mxu0 0.0
        %1683 = vmatprep.subr.mxu0 0.0
        %1684 = vmatpush1.msra.mxu0 0.0
        %1685 = vmatprep.mubr.f32.mxu0 0.0
        %1686 = vmatmul.mubr.f32.gmra.mrb[0].mxu0 %v1548
        %v1687 = vpop.f32.mrb[0].mxu0
        %v1688 = vadd.f32 0.0, %v1687
        %v1689 = vpop.f32.mrb[0].mxu0
        %v1690 = vadd.f32 0.0, %v1689
        %1691 = vdwg.mxu0
        %v1692 = vadd.f32 %v1506, %v1617
        %v1693 = vadd.f32 %v1507, %v1619
        %v1694 = vadd.f32 %v1508, %v1688
        %v1695 = vadd.f32 %v1509, %v1690
        %s1696 = scalar_lea.vmem %s3, 56
        %v1697 = vld [vmem:[%s1696] sm:$0xff]
        %1698 = vrot.lane.b32.xlu0 %v420, 105
        %v1699 = vpop.permute.xlu0 %1698
        %1700 = vrot.lane.b32.xlu0 %v421, 105
        %v1701 = vpop.permute.xlu0 %1700
        %1702 = vrot.lane.b32.xlu0 %v422, 105
        %v1703 = vpop.permute.xlu0 %1702
        %1704 = vrot.lane.b32.xlu0 %v423, 105
        %v1705 = vpop.permute.xlu0 %1704
        %1706 = vrot.lane.b32.xlu0 0.0, 105
        %v1707 = vpop.permute.xlu0 %1706
        %1708 = vrot.lane.b32.xlu0 %v424, 105
        %v1709 = vpop.permute.xlu0 %1708
        %1710 = vrot.lane.b32.xlu0 %v425, 105
        %v1711 = vpop.permute.xlu0 %1710
        %1712 = vrot.lane.b32.xlu0 %v426, 105
        %v1713 = vpop.permute.xlu0 %1712
        %1714 = vrot.lane.b32.xlu0 %v427, 105
        %v1715 = vpop.permute.xlu0 %1714
        %vm1716 = vcmask 859136
        %v1717 = vsel %vm1716, %v1699, %v1701
        %v1718 = vsel %vm1716, %v1701, %v1703
        %v1719 = vsel %vm1716, %v1703, %v1705
        %v1720 = vsel %vm1716, %v1705, %v1707
        %v1721 = vsel %vm1716, %v1709, %v1711
        %v1722 = vsel %vm1716, %v1711, %v1713
        %v1723 = vsel %vm1716, %v1713, %v1715
        %v1724 = vsel %vm1716, %v1715, %v1707
        %v1734 = vsel %vm475, %v1697, 0
        %1736 = vmatprep.subr.mxu0 %v1718
        %1737 = vmatpush1.msra.mxu0 %v1717
        %1738 = vmatprep.subr.mxu0 %v1722
        %1739 = vmatpush1.msra.mxu0 %v1721
        %1740 = vmatprep.subr.mxu0 0.0
        %1741 = vmatpush1.msra.mxu0 0.0
        %1742 = vmatprep.subr.mxu0 0.0
        %1743 = vmatpush1.msra.mxu0 0.0
        %1744 = vmatprep.subr.mxu0 0.0
        %1745 = vmatpush1.msra.mxu0 0.0
        %1746 = vmatprep.subr.mxu0 0.0
        %1747 = vmatpush1.msra.mxu0 0.0
        %1748 = vmatprep.subr.mxu0 0.0
        %1749 = vmatpush1.msra.mxu0 0.0
        %1750 = vmatprep.subr.mxu0 0.0
        %1751 = vmatpush1.msra.mxu0 0.0
        %1752 = vmatprep.subr.mxu0 0.0
        %1753 = vmatpush1.msra.mxu0 0.0
        %1754 = vmatprep.subr.mxu0 0.0
        %1755 = vmatpush1.msra.mxu0 0.0
        %1756 = vmatprep.subr.mxu0 0.0
        %1757 = vmatpush1.msra.mxu0 0.0
        %1758 = vmatprep.subr.mxu0 0.0
        %1759 = vmatpush1.msra.mxu0 0.0
        %1760 = vmatprep.subr.mxu0 0.0
        %1761 = vmatpush1.msra.mxu0 0.0
        %1762 = vmatprep.subr.mxu0 0.0
        %1763 = vmatpush1.msra.mxu0 0.0
        %1764 = vmatprep.subr.mxu0 0.0
        %1765 = vmatpush1.msra.mxu0 0.0
        %1766 = vmatprep.subr.mxu0 0.0
        %1767 = vmatpush1.msra.mxu0 0.0
        %1768 = vmatprep.subr.mxu0 0.0
        %1769 = vmatpush1.msra.mxu0 0.0
        %1770 = vmatprep.subr.mxu0 0.0
        %1771 = vmatpush1.msra.mxu0 0.0
        %1772 = vmatprep.subr.mxu0 0.0
        %1773 = vmatpush1.msra.mxu0 0.0
        %1774 = vmatprep.subr.mxu0 0.0
        %1775 = vmatpush1.msra.mxu0 0.0
        %1776 = vmatprep.subr.mxu0 0.0
        %1777 = vmatpush1.msra.mxu0 0.0
        %1778 = vmatprep.subr.mxu0 0.0
        %1779 = vmatpush1.msra.mxu0 0.0
        %1780 = vmatprep.subr.mxu0 0.0
        %1781 = vmatpush1.msra.mxu0 0.0
        %1782 = vmatprep.subr.mxu0 0.0
        %1783 = vmatpush1.msra.mxu0 0.0
        %1784 = vmatprep.subr.mxu0 0.0
        %1785 = vmatpush1.msra.mxu0 0.0
        %1786 = vmatprep.subr.mxu0 0.0
        %1787 = vmatpush1.msra.mxu0 0.0
        %1788 = vmatprep.subr.mxu0 0.0
        %1789 = vmatpush1.msra.mxu0 0.0
        %1790 = vmatprep.subr.mxu0 0.0
        %1791 = vmatpush1.msra.mxu0 0.0
        %1792 = vmatprep.subr.mxu0 0.0
        %1793 = vmatpush1.msra.mxu0 0.0
        %1794 = vmatprep.subr.mxu0 0.0
        %1795 = vmatpush1.msra.mxu0 0.0
        %1796 = vmatprep.subr.mxu0 0.0
        %1797 = vmatpush1.msra.mxu0 0.0
        %1798 = vmatprep.subr.mxu0 0.0
        %1799 = vmatpush1.msra.mxu0 0.0
        %1800 = vmatprep.mubr.f32.mxu0 0.0
        %1801 = vmatmul.mubr.f32.gmra.mrb[0].mxu0 %v1734
        %v1802 = vpop.f32.mrb[0].mxu0
        %v1803 = vadd.f32 0.0, %v1802
        %v1804 = vpop.f32.mrb[0].mxu0
        %v1805 = vadd.f32 0.0, %v1804
        %1806 = vdwg.mxu0
        %1807 = vmatprep.subr.mxu0 %v1720
        %1808 = vmatpush1.msra.mxu0 %v1719
        %1809 = vmatprep.subr.mxu0 %v1724
        %1810 = vmatpush1.msra.mxu0 %v1723
        %1811 = vmatprep.subr.mxu0 0.0
        %1812 = vmatpush1.msra.mxu0 0.0
        %1813 = vmatprep.subr.mxu0 0.0
        %1814 = vmatpush1.msra.mxu0 0.0
        %1815 = vmatprep.subr.mxu0 0.0
        %1816 = vmatpush1.msra.mxu0 0.0
        %1817 = vmatprep.subr.mxu0 0.0
        %1818 = vmatpush1.msra.mxu0 0.0
        %1819 = vmatprep.subr.mxu0 0.0
        %1820 = vmatpush1.msra.mxu0 0.0
        %1821 = vmatprep.subr.mxu0 0.0
        %1822 = vmatpush1.msra.mxu0 0.0
        %1823 = vmatprep.subr.mxu0 0.0
        %1824 = vmatpush1.msra.mxu0 0.0
        %1825 = vmatprep.subr.mxu0 0.0
        %1826 = vmatpush1.msra.mxu0 0.0
        %1827 = vmatprep.subr.mxu0 0.0
        %1828 = vmatpush1.msra.mxu0 0.0
        %1829 = vmatprep.subr.mxu0 0.0
        %1830 = vmatpush1.msra.mxu0 0.0
        %1831 = vmatprep.subr.mxu0 0.0
        %1832 = vmatpush1.msra.mxu0 0.0
        %1833 = vmatprep.subr.mxu0 0.0
        %1834 = vmatpush1.msra.mxu0 0.0
        %1835 = vmatprep.subr.mxu0 0.0
        %1836 = vmatpush1.msra.mxu0 0.0
        %1837 = vmatprep.subr.mxu0 0.0
        %1838 = vmatpush1.msra.mxu0 0.0
        %1839 = vmatprep.subr.mxu0 0.0
        %1840 = vmatpush1.msra.mxu0 0.0
        %1841 = vmatprep.subr.mxu0 0.0
        %1842 = vmatpush1.msra.mxu0 0.0
        %1843 = vmatprep.subr.mxu0 0.0
        %1844 = vmatpush1.msra.mxu0 0.0
        %1845 = vmatprep.subr.mxu0 0.0
        %1846 = vmatpush1.msra.mxu0 0.0
        %1847 = vmatprep.subr.mxu0 0.0
        %1848 = vmatpush1.msra.mxu0 0.0
        %1849 = vmatprep.subr.mxu0 0.0
        %1850 = vmatpush1.msra.mxu0 0.0
        %1851 = vmatprep.subr.mxu0 0.0
        %1852 = vmatpush1.msra.mxu0 0.0
        %1853 = vmatprep.subr.mxu0 0.0
        %1854 = vmatpush1.msra.mxu0 0.0
        %1855 = vmatprep.subr.mxu0 0.0
        %1856 = vmatpush1.msra.mxu0 0.0
        %1857 = vmatprep.subr.mxu0 0.0
        %1858 = vmatpush1.msra.mxu0 0.0
        %1859 = vmatprep.subr.mxu0 0.0
        %1860 = vmatpush1.msra.mxu0 0.0
        %1861 = vmatprep.subr.mxu0 0.0
        %1862 = vmatpush1.msra.mxu0 0.0
        %1863 = vmatprep.subr.mxu0 0.0
        %1864 = vmatpush1.msra.mxu0 0.0
        %1865 = vmatprep.subr.mxu0 0.0
        %1866 = vmatpush1.msra.mxu0 0.0
        %1867 = vmatprep.subr.mxu0 0.0
        %1868 = vmatpush1.msra.mxu0 0.0
        %1869 = vmatprep.subr.mxu0 0.0
        %1870 = vmatpush1.msra.mxu0 0.0
        %1871 = vmatprep.mubr.f32.mxu0 0.0
        %1872 = vmatmul.mubr.f32.gmra.mrb[0].mxu0 %v1734
        %v1873 = vpop.f32.mrb[0].mxu0
        %v1874 = vadd.f32 0.0, %v1873
        %v1875 = vpop.f32.mrb[0].mxu0
        %v1876 = vadd.f32 0.0, %v1875
        %1877 = vdwg.mxu0
        %v1878 = vadd.f32 %v1692, %v1803
        %v1879 = vadd.f32 %v1693, %v1805
        %v1880 = vadd.f32 %v1694, %v1874
        %v1881 = vadd.f32 %v1695, %v1876
        %s1882 = scalar_lea.vmem %s3, 64
        %v1883 = vld [vmem:[%s1882] sm:$0xff]
        %1884 = vrot.lane.b32.xlu0 %v420, 104
        %v1885 = vpop.permute.xlu0 %1884
        %1886 = vrot.lane.b32.xlu0 %v421, 104
        %v1887 = vpop.permute.xlu0 %1886
        %1888 = vrot.lane.b32.xlu0 %v422, 104
        %v1889 = vpop.permute.xlu0 %1888
        %1890 = vrot.lane.b32.xlu0 %v423, 104
        %v1891 = vpop.permute.xlu0 %1890
        %1892 = vrot.lane.b32.xlu0 0.0, 104
        %v1893 = vpop.permute.xlu0 %1892
        %1894 = vrot.lane.b32.xlu0 %v424, 104
        %v1895 = vpop.permute.xlu0 %1894
        %1896 = vrot.lane.b32.xlu0 %v425, 104
        %v1897 = vpop.permute.xlu0 %1896
        %1898 = vrot.lane.b32.xlu0 %v426, 104
        %v1899 = vpop.permute.xlu0 %1898
        %1900 = vrot.lane.b32.xlu0 %v427, 104
        %v1901 = vpop.permute.xlu0 %1900
        %vm1902 = vcmask 850944
        %v1903 = vsel %vm1902, %v1885, %v1887
        %v1904 = vsel %vm1902, %v1887, %v1889
        %v1905 = vsel %vm1902, %v1889, %v1891
        %v1906 = vsel %vm1902, %v1891, %v1893
        %v1907 = vsel %vm1902, %v1895, %v1897
        %v1908 = vsel %vm1902, %v1897, %v1899
        %v1909 = vsel %vm1902, %v1899, %v1901
        %v1910 = vsel %vm1902, %v1901, %v1893
        %v1920 = vsel %vm475, %v1883, 0
        %1922 = vmatprep.subr.mxu0 %v1904
        %1923 = vmatpush1.msra.mxu0 %v1903
        %1924 = vmatprep.subr.mxu0 %v1908
        %1925 = vmatpush1.msra.mxu0 %v1907
        %1926 = vmatprep.subr.mxu0 0.0
        %1927 = vmatpush1.msra.mxu0 0.0
        %1928 = vmatprep.subr.mxu0 0.0
        %1929 = vmatpush1.msra.mxu0 0.0
        %1930 = vmatprep.subr.mxu0 0.0
        %1931 = vmatpush1.msra.mxu0 0.0
        %1932 = vmatprep.subr.mxu0 0.0
        %1933 = vmatpush1.msra.mxu0 0.0
        %1934 = vmatprep.subr.mxu0 0.0
        %1935 = vmatpush1.msra.mxu0 0.0
        %1936 = vmatprep.subr.mxu0 0.0
        %1937 = vmatpush1.msra.mxu0 0.0
        %1938 = vmatprep.subr.mxu0 0.0
        %1939 = vmatpush1.msra.mxu0 0.0
        %1940 = vmatprep.subr.mxu0 0.0
        %1941 = vmatpush1.msra.mxu0 0.0
        %1942 = vmatprep.subr.mxu0 0.0
        %1943 = vmatpush1.msra.mxu0 0.0
        %1944 = vmatprep.subr.mxu0 0.0
        %1945 = vmatpush1.msra.mxu0 0.0
        %1946 = vmatprep.subr.mxu0 0.0
        %1947 = vmatpush1.msra.mxu0 0.0
        %1948 = vmatprep.subr.mxu0 0.0
        %1949 = vmatpush1.msra.mxu0 0.0
        %1950 = vmatprep.subr.mxu0 0.0
        %1951 = vmatpush1.msra.mxu0 0.0
        %1952 = vmatprep.subr.mxu0 0.0
        %1953 = vmatpush1.msra.mxu0 0.0
        %1954 = vmatprep.subr.mxu0 0.0
        %1955 = vmatpush1.msra.mxu0 0.0
        %1956 = vmatprep.subr.mxu0 0.0
        %1957 = vmatpush1.msra.mxu0 0.0
        %1958 = vmatprep.subr.mxu0 0.0
        %1959 = vmatpush1.msra.mxu0 0.0
        %1960 = vmatprep.subr.mxu0 0.0
        %1961 = vmatpush1.msra.mxu0 0.0
        %1962 = vmatprep.subr.mxu0 0.0
        %1963 = vmatpush1.msra.mxu0 0.0
        %1964 = vmatprep.subr.mxu0 0.0
        %1965 = vmatpush1.msra.mxu0 0.0
        %1966 = vmatprep.subr.mxu0 0.0
        %1967 = vmatpush1.msra.mxu0 0.0
        %1968 = vmatprep.subr.mxu0 0.0
        %1969 = vmatpush1.msra.mxu0 0.0
        %1970 = vmatprep.subr.mxu0 0.0
        %1971 = vmatpush1.msra.mxu0 0.0
        %1972 = vmatprep.subr.mxu0 0.0
        %1973 = vmatpush1.msra.mxu0 0.0
        %1974 = vmatprep.subr.mxu0 0.0
        %1975 = vmatpush1.msra.mxu0 0.0
        %1976 = vmatprep.subr.mxu0 0.0
        %1977 = vmatpush1.msra.mxu0 0.0
        %1978 = vmatprep.subr.mxu0 0.0
        %1979 = vmatpush1.msra.mxu0 0.0
        %1980 = vmatprep.subr.mxu0 0.0
        %1981 = vmatpush1.msra.mxu0 0.0
        %1982 = vmatprep.subr.mxu0 0.0
        %1983 = vmatpush1.msra.mxu0 0.0
        %1984 = vmatprep.subr.mxu0 0.0
        %1985 = vmatpush1.msra.mxu0 0.0
        %1986 = vmatprep.mubr.f32.mxu0 0.0
        %1987 = vmatmul.mubr.f32.gmra.mrb[0].mxu0 %v1920
        %v1988 = vpop.f32.mrb[0].mxu0
        %v1989 = vadd.f32 0.0, %v1988
        %v1990 = vpop.f32.mrb[0].mxu0
        %v1991 = vadd.f32 0.0, %v1990
        %1992 = vdwg.mxu0
        %1993 = vmatprep.subr.mxu0 %v1906
        %1994 = vmatpush1.msra.mxu0 %v1905
        %1995 = vmatprep.subr.mxu0 %v1910
        %1996 = vmatpush1.msra.mxu0 %v1909
        %1997 = vmatprep.subr.mxu0 0.0
        %1998 = vmatpush1.msra.mxu0 0.0
        %1999 = vmatprep.subr.mxu0 0.0
        %2000 = vmatpush1.msra.mxu0 0.0
        %2001 = vmatprep.subr.mxu0 0.0
        %2002 = vmatpush1.msra.mxu0 0.0
        %2003 = vmatprep.subr.mxu0 0.0
        %2004 = vmatpush1.msra.mxu0 0.0
        %2005 = vmatprep.subr.mxu0 0.0
        %2006 = vmatpush1.msra.mxu0 0.0
        %2007 = vmatprep.subr.mxu0 0.0
        %2008 = vmatpush1.msra.mxu0 0.0
        %2009 = vmatprep.subr.mxu0 0.0
        %2010 = vmatpush1.msra.mxu0 0.0
        %2011 = vmatprep.subr.mxu0 0.0
        %2012 = vmatpush1.msra.mxu0 0.0
        %2013 = vmatprep.subr.mxu0 0.0
        %2014 = vmatpush1.msra.mxu0 0.0
        %2015 = vmatprep.subr.mxu0 0.0
        %2016 = vmatpush1.msra.mxu0 0.0
        %2017 = vmatprep.subr.mxu0 0.0
        %2018 = vmatpush1.msra.mxu0 0.0
        %2019 = vmatprep.subr.mxu0 0.0
        %2020 = vmatpush1.msra.mxu0 0.0
        %2021 = vmatprep.subr.mxu0 0.0
        %2022 = vmatpush1.msra.mxu0 0.0
        %2023 = vmatprep.subr.mxu0 0.0
        %2024 = vmatpush1.msra.mxu0 0.0
        %2025 = vmatprep.subr.mxu0 0.0
        %2026 = vmatpush1.msra.mxu0 0.0
        %2027 = vmatprep.subr.mxu0 0.0
        %2028 = vmatpush1.msra.mxu0 0.0
        %2029 = vmatprep.subr.mxu0 0.0
        %2030 = vmatpush1.msra.mxu0 0.0
        %2031 = vmatprep.subr.mxu0 0.0
        %2032 = vmatpush1.msra.mxu0 0.0
        %2033 = vmatprep.subr.mxu0 0.0
        %2034 = vmatpush1.msra.mxu0 0.0
        %2035 = vmatprep.subr.mxu0 0.0
        %2036 = vmatpush1.msra.mxu0 0.0
        %2037 = vmatprep.subr.mxu0 0.0
        %2038 = vmatpush1.msra.mxu0 0.0
        %2039 = vmatprep.subr.mxu0 0.0
        %2040 = vmatpush1.msra.mxu0 0.0
        %2041 = vmatprep.subr.mxu0 0.0
        %2042 = vmatpush1.msra.mxu0 0.0
        %2043 = vmatprep.subr.mxu0 0.0
        %2044 = vmatpush1.msra.mxu0 0.0
        %2045 = vmatprep.subr.mxu0 0.0
        %2046 = vmatpush1.msra.mxu0 0.0
        %2047 = vmatprep.subr.mxu0 0.0
        %2048 = vmatpush1.msra.mxu0 0.0
        %2049 = vmatprep.subr.mxu0 0.0
        %2050 = vmatpush1.msra.mxu0 0.0
        %2051 = vmatprep.subr.mxu0 0.0
        %2052 = vmatpush1.msra.mxu0 0.0
        %2053 = vmatprep.subr.mxu0 0.0
        %2054 = vmatpush1.msra.mxu0 0.0
        %2055 = vmatprep.subr.mxu0 0.0
        %2056 = vmatpush1.msra.mxu0 0.0
        %2057 = vmatprep.mubr.f32.mxu0 0.0
        %2058 = vmatmul.mubr.f32.gmra.mrb[0].mxu0 %v1920
        %v2059 = vpop.f32.mrb[0].mxu0
        %v2060 = vadd.f32 0.0, %v2059
        %v2061 = vpop.f32.mrb[0].mxu0
        %v2062 = vadd.f32 0.0, %v2061
        %2063 = vdwg.mxu0
        %v2064 = vadd.f32 %v1878, %v1989
        %v2065 = vadd.f32 %v1879, %v1991
        %v2066 = vadd.f32 %v1880, %v2060
        %v2067 = vadd.f32 %v1881, %v2062
        %s2068 = scalar_lea.vmem %s3, 72
        %v2069 = vld [vmem:[%s2068] sm:$0xff]
        %2070 = vrot.lane.b32.xlu0 %v420, 103
        %v2071 = vpop.permute.xlu0 %2070
        %2072 = vrot.lane.b32.xlu0 %v421, 103
        %v2073 = vpop.permute.xlu0 %2072
        %2074 = vrot.lane.b32.xlu0 %v422, 103
        %v2075 = vpop.permute.xlu0 %2074
        %2076 = vrot.lane.b32.xlu0 %v423, 103
        %v2077 = vpop.permute.xlu0 %2076
        %2078 = vrot.lane.b32.xlu0 0.0, 103
        %v2079 = vpop.permute.xlu0 %2078
        %2080 = vrot.lane.b32.xlu0 %v424, 103
        %v2081 = vpop.permute.xlu0 %2080
        %2082 = vrot.lane.b32.xlu0 %v425, 103
        %v2083 = vpop.permute.xlu0 %2082
        %2084 = vrot.lane.b32.xlu0 %v426, 103
        %v2085 = vpop.permute.xlu0 %2084
        %2086 = vrot.lane.b32.xlu0 %v427, 103
        %v2087 = vpop.permute.xlu0 %2086
        %vm2088 = vcmask 842752
        %v2089 = vsel %vm2088, %v2071, %v2073
        %v2090 = vsel %vm2088, %v2073, %v2075
        %v2091 = vsel %vm2088, %v2075, %v2077
        %v2092 = vsel %vm2088, %v2077, %v2079
        %v2093 = vsel %vm2088, %v2081, %v2083
        %v2094 = vsel %vm2088, %v2083, %v2085
        %v2095 = vsel %vm2088, %v2085, %v2087
        %v2096 = vsel %vm2088, %v2087, %v2079
        %v2106 = vsel %vm475, %v2069, 0
        %2108 = vmatprep.subr.mxu0 %v2090
        %2109 = vmatpush1.msra.mxu0 %v2089
        %2110 = vmatprep.subr.mxu0 %v2094
        %2111 = vmatpush1.msra.mxu0 %v2093
        %2112 = vmatprep.subr.mxu0 0.0
        %2113 = vmatpush1.msra.mxu0 0.0
        %2114 = vmatprep.subr.mxu0 0.0
        %2115 = vmatpush1.msra.mxu0 0.0
        %2116 = vmatprep.subr.mxu0 0.0
        %2117 = vmatpush1.msra.mxu0 0.0
        %2118 = vmatprep.subr.mxu0 0.0
        %2119 = vmatpush1.msra.mxu0 0.0
        %2120 = vmatprep.subr.mxu0 0.0
        %2121 = vmatpush1.msra.mxu0 0.0
        %2122 = vmatprep.subr.mxu0 0.0
        %2123 = vmatpush1.msra.mxu0 0.0
        %2124 = vmatprep.subr.mxu0 0.0
        %2125 = vmatpush1.msra.mxu0 0.0
        %2126 = vmatprep.subr.mxu0 0.0
        %2127 = vmatpush1.msra.mxu0 0.0
        %2128 = vmatprep.subr.mxu0 0.0
        %2129 = vmatpush1.msra.mxu0 0.0
        %2130 = vmatprep.subr.mxu0 0.0
        %2131 = vmatpush1.msra.mxu0 0.0
        %2132 = vmatprep.subr.mxu0 0.0
        %2133 = vmatpush1.msra.mxu0 0.0
        %2134 = vmatprep.subr.mxu0 0.0
        %2135 = vmatpush1.msra.mxu0 0.0
        %2136 = vmatprep.subr.mxu0 0.0
        %2137 = vmatpush1.msra.mxu0 0.0
        %2138 = vmatprep.subr.mxu0 0.0
        %2139 = vmatpush1.msra.mxu0 0.0
        %2140 = vmatprep.subr.mxu0 0.0
        %2141 = vmatpush1.msra.mxu0 0.0
        %2142 = vmatprep.subr.mxu0 0.0
        %2143 = vmatpush1.msra.mxu0 0.0
        %2144 = vmatprep.subr.mxu0 0.0
        %2145 = vmatpush1.msra.mxu0 0.0
        %2146 = vmatprep.subr.mxu0 0.0
        %2147 = vmatpush1.msra.mxu0 0.0
        %2148 = vmatprep.subr.mxu0 0.0
        %2149 = vmatpush1.msra.mxu0 0.0
        %2150 = vmatprep.subr.mxu0 0.0
        %2151 = vmatpush1.msra.mxu0 0.0
        %2152 = vmatprep.subr.mxu0 0.0
        %2153 = vmatpush1.msra.mxu0 0.0
        %2154 = vmatprep.subr.mxu0 0.0
        %2155 = vmatpush1.msra.mxu0 0.0
        %2156 = vmatprep.subr.mxu0 0.0
        %2157 = vmatpush1.msra.mxu0 0.0
        %2158 = vmatprep.subr.mxu0 0.0
        %2159 = vmatpush1.msra.mxu0 0.0
        %2160 = vmatprep.subr.mxu0 0.0
        %2161 = vmatpush1.msra.mxu0 0.0
        %2162 = vmatprep.subr.mxu0 0.0
        %2163 = vmatpush1.msra.mxu0 0.0
        %2164 = vmatprep.subr.mxu0 0.0
        %2165 = vmatpush1.msra.mxu0 0.0
        %2166 = vmatprep.subr.mxu0 0.0
        %2167 = vmatpush1.msra.mxu0 0.0
        %2168 = vmatprep.subr.mxu0 0.0
        %2169 = vmatpush1.msra.mxu0 0.0
        %2170 = vmatprep.subr.mxu0 0.0
        %2171 = vmatpush1.msra.mxu0 0.0
        %2172 = vmatprep.mubr.f32.mxu0 0.0
        %2173 = vmatmul.mubr.f32.gmra.mrb[0].mxu0 %v2106
        %v2174 = vpop.f32.mrb[0].mxu0
        %v2175 = vadd.f32 0.0, %v2174
        %v2176 = vpop.f32.mrb[0].mxu0
        %v2177 = vadd.f32 0.0, %v2176
        %2178 = vdwg.mxu0
        %2179 = vmatprep.subr.mxu0 %v2092
        %2180 = vmatpush1.msra.mxu0 %v2091
        %2181 = vmatprep.subr.mxu0 %v2096
        %2182 = vmatpush1.msra.mxu0 %v2095
        %2183 = vmatprep.subr.mxu0 0.0
        %2184 = vmatpush1.msra.mxu0 0.0
        %2185 = vmatprep.subr.mxu0 0.0
        %2186 = vmatpush1.msra.mxu0 0.0
        %2187 = vmatprep.subr.mxu0 0.0
        %2188 = vmatpush1.msra.mxu0 0.0
        %2189 = vmatprep.subr.mxu0 0.0
        %2190 = vmatpush1.msra.mxu0 0.0
        %2191 = vmatprep.subr.mxu0 0.0
        %2192 = vmatpush1.msra.mxu0 0.0
        %2193 = vmatprep.subr.mxu0 0.0
        %2194 = vmatpush1.msra.mxu0 0.0
        %2195 = vmatprep.subr.mxu0 0.0
        %2196 = vmatpush1.msra.mxu0 0.0
        %2197 = vmatprep.subr.mxu0 0.0
        %2198 = vmatpush1.msra.mxu0 0.0
        %2199 = vmatprep.subr.mxu0 0.0
        %2200 = vmatpush1.msra.mxu0 0.0
        %2201 = vmatprep.subr.mxu0 0.0
        %2202 = vmatpush1.msra.mxu0 0.0
        %2203 = vmatprep.subr.mxu0 0.0
        %2204 = vmatpush1.msra.mxu0 0.0
        %2205 = vmatprep.subr.mxu0 0.0
        %2206 = vmatpush1.msra.mxu0 0.0
        %2207 = vmatprep.subr.mxu0 0.0
        %2208 = vmatpush1.msra.mxu0 0.0
        %2209 = vmatprep.subr.mxu0 0.0
        %2210 = vmatpush1.msra.mxu0 0.0
        %2211 = vmatprep.subr.mxu0 0.0
        %2212 = vmatpush1.msra.mxu0 0.0
        %2213 = vmatprep.subr.mxu0 0.0
        %2214 = vmatpush1.msra.mxu0 0.0
        %2215 = vmatprep.subr.mxu0 0.0
        %2216 = vmatpush1.msra.mxu0 0.0
        %2217 = vmatprep.subr.mxu0 0.0
        %2218 = vmatpush1.msra.mxu0 0.0
        %2219 = vmatprep.subr.mxu0 0.0
        %2220 = vmatpush1.msra.mxu0 0.0
        %2221 = vmatprep.subr.mxu0 0.0
        %2222 = vmatpush1.msra.mxu0 0.0
        %2223 = vmatprep.subr.mxu0 0.0
        %2224 = vmatpush1.msra.mxu0 0.0
        %2225 = vmatprep.subr.mxu0 0.0
        %2226 = vmatpush1.msra.mxu0 0.0
        %2227 = vmatprep.subr.mxu0 0.0
        %2228 = vmatpush1.msra.mxu0 0.0
        %2229 = vmatprep.subr.mxu0 0.0
        %2230 = vmatpush1.msra.mxu0 0.0
        %2231 = vmatprep.subr.mxu0 0.0
        %2232 = vmatpush1.msra.mxu0 0.0
        %2233 = vmatprep.subr.mxu0 0.0
        %2234 = vmatpush1.msra.mxu0 0.0
        %2235 = vmatprep.subr.mxu0 0.0
        %2236 = vmatpush1.msra.mxu0 0.0
        %2237 = vmatprep.subr.mxu0 0.0
        %2238 = vmatpush1.msra.mxu0 0.0
        %2239 = vmatprep.subr.mxu0 0.0
        %2240 = vmatpush1.msra.mxu0 0.0
        %2241 = vmatprep.subr.mxu0 0.0
        %2242 = vmatpush1.msra.mxu0 0.0
        %2243 = vmatprep.mubr.f32.mxu0 0.0
        %2244 = vmatmul.mubr.f32.gmra.mrb[0].mxu0 %v2106
        %v2245 = vpop.f32.mrb[0].mxu0
        %v2246 = vadd.f32 0.0, %v2245
        %v2247 = vpop.f32.mrb[0].mxu0
        %v2248 = vadd.f32 0.0, %v2247
        %2249 = vdwg.mxu0
        %v2250 = vadd.f32 %v2064, %v2175
        %v2251 = vadd.f32 %v2065, %v2177
        %v2252 = vadd.f32 %v2066, %v2246
        %v2253 = vadd.f32 %v2067, %v2248
        %s2254 = scalar_lea.vmem %s3, 80
        %v2255 = vld [vmem:[%s2254] sm:$0xff]
        %2256 = vrot.lane.b32.xlu0 %v420, 86
        %v2257 = vpop.permute.xlu0 %2256
        %2258 = vrot.lane.b32.xlu0 %v421, 86
        %v2259 = vpop.permute.xlu0 %2258
        %2260 = vrot.lane.b32.xlu0 %v422, 86
        %v2261 = vpop.permute.xlu0 %2260
        %2262 = vrot.lane.b32.xlu0 %v423, 86
        %v2263 = vpop.permute.xlu0 %2262
        %2264 = vrot.lane.b32.xlu0 0.0, 86
        %v2265 = vpop.permute.xlu0 %2264
        %2266 = vrot.lane.b32.xlu0 %v424, 86
        %v2267 = vpop.permute.xlu0 %2266
        %2268 = vrot.lane.b32.xlu0 %v425, 86
        %v2269 = vpop.permute.xlu0 %2268
        %2270 = vrot.lane.b32.xlu0 %v426, 86
        %v2271 = vpop.permute.xlu0 %2270
        %2272 = vrot.lane.b32.xlu0 %v427, 86
        %v2273 = vpop.permute.xlu0 %2272
        %vm2274 = vcmask 703488
        %v2275 = vsel %vm2274, %v2257, %v2259
        %v2276 = vsel %vm2274, %v2259, %v2261
        %v2277 = vsel %vm2274, %v2261, %v2263
        %v2278 = vsel %vm2274, %v2263, %v2265
        %v2279 = vsel %vm2274, %v2267, %v2269
        %v2280 = vsel %vm2274, %v2269, %v2271
        %v2281 = vsel %vm2274, %v2271, %v2273
        %v2282 = vsel %vm2274, %v2273, %v2265
        %v2292 = vsel %vm475, %v2255, 0
        %2294 = vmatprep.subr.mxu0 %v2276
        %2295 = vmatpush1.msra.mxu0 %v2275
        %2296 = vmatprep.subr.mxu0 %v2280
        %2297 = vmatpush1.msra.mxu0 %v2279
        %2298 = vmatprep.subr.mxu0 0.0
        %2299 = vmatpush1.msra.mxu0 0.0
        %2300 = vmatprep.subr.mxu0 0.0
        %2301 = vmatpush1.msra.mxu0 0.0
        %2302 = vmatprep.subr.mxu0 0.0
        %2303 = vmatpush1.msra.mxu0 0.0
        %2304 = vmatprep.subr.mxu0 0.0
        %2305 = vmatpush1.msra.mxu0 0.0
        %2306 = vmatprep.subr.mxu0 0.0
        %2307 = vmatpush1.msra.mxu0 0.0
        %2308 = vmatprep.subr.mxu0 0.0
        %2309 = vmatpush1.msra.mxu0 0.0
        %2310 = vmatprep.subr.mxu0 0.0
        %2311 = vmatpush1.msra.mxu0 0.0
        %2312 = vmatprep.subr.mxu0 0.0
        %2313 = vmatpush1.msra.mxu0 0.0
        %2314 = vmatprep.subr.mxu0 0.0
        %2315 = vmatpush1.msra.mxu0 0.0
        %2316 = vmatprep.subr.mxu0 0.0
        %2317 = vmatpush1.msra.mxu0 0.0
        %2318 = vmatprep.subr.mxu0 0.0
        %2319 = vmatpush1.msra.mxu0 0.0
        %2320 = vmatprep.subr.mxu0 0.0
        %2321 = vmatpush1.msra.mxu0 0.0
        %2322 = vmatprep.subr.mxu0 0.0
        %2323 = vmatpush1.msra.mxu0 0.0
        %2324 = vmatprep.subr.mxu0 0.0
        %2325 = vmatpush1.msra.mxu0 0.0
        %2326 = vmatprep.subr.mxu0 0.0
        %2327 = vmatpush1.msra.mxu0 0.0
        %2328 = vmatprep.subr.mxu0 0.0
        %2329 = vmatpush1.msra.mxu0 0.0
        %2330 = vmatprep.subr.mxu0 0.0
        %2331 = vmatpush1.msra.mxu0 0.0
        %2332 = vmatprep.subr.mxu0 0.0
        %2333 = vmatpush1.msra.mxu0 0.0
        %2334 = vmatprep.subr.mxu0 0.0
        %2335 = vmatpush1.msra.mxu0 0.0
        %2336 = vmatprep.subr.mxu0 0.0
        %2337 = vmatpush1.msra.mxu0 0.0
        %2338 = vmatprep.subr.mxu0 0.0
        %2339 = vmatpush1.msra.mxu0 0.0
        %2340 = vmatprep.subr.mxu0 0.0
        %2341 = vmatpush1.msra.mxu0 0.0
        %2342 = vmatprep.subr.mxu0 0.0
        %2343 = vmatpush1.msra.mxu0 0.0
        %2344 = vmatprep.subr.mxu0 0.0
        %2345 = vmatpush1.msra.mxu0 0.0
        %2346 = vmatprep.subr.mxu0 0.0
        %2347 = vmatpush1.msra.mxu0 0.0
        %2348 = vmatprep.subr.mxu0 0.0
        %2349 = vmatpush1.msra.mxu0 0.0
        %2350 = vmatprep.subr.mxu0 0.0
        %2351 = vmatpush1.msra.mxu0 0.0
        %2352 = vmatprep.subr.mxu0 0.0
        %2353 = vmatpush1.msra.mxu0 0.0
        %2354 = vmatprep.subr.mxu0 0.0
        %2355 = vmatpush1.msra.mxu0 0.0
        %2356 = vmatprep.subr.mxu0 0.0
        %2357 = vmatpush1.msra.mxu0 0.0
        %2358 = vmatprep.mubr.f32.mxu0 0.0
        %2359 = vmatmul.mubr.f32.gmra.mrb[0].mxu0 %v2292
        %v2360 = vpop.f32.mrb[0].mxu0
        %v2361 = vadd.f32 0.0, %v2360
        %v2362 = vpop.f32.mrb[0].mxu0
        %v2363 = vadd.f32 0.0, %v2362
        %2364 = vdwg.mxu0
        %2365 = vmatprep.subr.mxu0 %v2278
        %2366 = vmatpush1.msra.mxu0 %v2277
        %2367 = vmatprep.subr.mxu0 %v2282
        %2368 = vmatpush1.msra.mxu0 %v2281
        %2369 = vmatprep.subr.mxu0 0.0
        %2370 = vmatpush1.msra.mxu0 0.0
        %2371 = vmatprep.subr.mxu0 0.0
        %2372 = vmatpush1.msra.mxu0 0.0
        %2373 = vmatprep.subr.mxu0 0.0
        %2374 = vmatpush1.msra.mxu0 0.0
        %2375 = vmatprep.subr.mxu0 0.0
        %2376 = vmatpush1.msra.mxu0 0.0
        %2377 = vmatprep.subr.mxu0 0.0
        %2378 = vmatpush1.msra.mxu0 0.0
        %2379 = vmatprep.subr.mxu0 0.0
        %2380 = vmatpush1.msra.mxu0 0.0
        %2381 = vmatprep.subr.mxu0 0.0
        %2382 = vmatpush1.msra.mxu0 0.0
        %2383 = vmatprep.subr.mxu0 0.0
        %2384 = vmatpush1.msra.mxu0 0.0
        %2385 = vmatprep.subr.mxu0 0.0
        %2386 = vmatpush1.msra.mxu0 0.0
        %2387 = vmatprep.subr.mxu0 0.0
        %2388 = vmatpush1.msra.mxu0 0.0
        %2389 = vmatprep.subr.mxu0 0.0
        %2390 = vmatpush1.msra.mxu0 0.0
        %2391 = vmatprep.subr.mxu0 0.0
        %2392 = vmatpush1.msra.mxu0 0.0
        %2393 = vmatprep.subr.mxu0 0.0
        %2394 = vmatpush1.msra.mxu0 0.0
        %2395 = vmatprep.subr.mxu0 0.0
        %2396 = vmatpush1.msra.mxu0 0.0
        %2397 = vmatprep.subr.mxu0 0.0
        %2398 = vmatpush1.msra.mxu0 0.0
        %2399 = vmatprep.subr.mxu0 0.0
        %2400 = vmatpush1.msra.mxu0 0.0
        %2401 = vmatprep.subr.mxu0 0.0
        %2402 = vmatpush1.msra.mxu0 0.0
        %2403 = vmatprep.subr.mxu0 0.0
        %2404 = vmatpush1.msra.mxu0 0.0
        %2405 = vmatprep.subr.mxu0 0.0
        %2406 = vmatpush1.msra.mxu0 0.0
        %2407 = vmatprep.subr.mxu0 0.0
        %2408 = vmatpush1.msra.mxu0 0.0
        %2409 = vmatprep.subr.mxu0 0.0
        %2410 = vmatpush1.msra.mxu0 0.0
        %2411 = vmatprep.subr.mxu0 0.0
        %2412 = vmatpush1.msra.mxu0 0.0
        %2413 = vmatprep.subr.mxu0 0.0
        %2414 = vmatpush1.msra.mxu0 0.0
        %2415 = vmatprep.subr.mxu0 0.0
        %2416 = vmatpush1.msra.mxu0 0.0
        %2417 = vmatprep.subr.mxu0 0.0
        %2418 = vmatpush1.msra.mxu0 0.0
        %2419 = vmatprep.subr.mxu0 0.0
        %2420 = vmatpush1.msra.mxu0 0.0
        %2421 = vmatprep.subr.mxu0 0.0
        %2422 = vmatpush1.msra.mxu0 0.0
        %2423 = vmatprep.subr.mxu0 0.0
        %2424 = vmatpush1.msra.mxu0 0.0
        %2425 = vmatprep.subr.mxu0 0.0
        %2426 = vmatpush1.msra.mxu0 0.0
        %2427 = vmatprep.subr.mxu0 0.0
        %2428 = vmatpush1.msra.mxu0 0.0
        %2429 = vmatprep.mubr.f32.mxu0 0.0
        %2430 = vmatmul.mubr.f32.gmra.mrb[0].mxu0 %v2292
        %v2431 = vpop.f32.mrb[0].mxu0
        %v2432 = vadd.f32 0.0, %v2431
        %v2433 = vpop.f32.mrb[0].mxu0
        %v2434 = vadd.f32 0.0, %v2433
        %2435 = vdwg.mxu0
        %v2436 = vadd.f32 %v2250, %v2361
        %v2437 = vadd.f32 %v2251, %v2363
        %v2438 = vadd.f32 %v2252, %v2432
        %v2439 = vadd.f32 %v2253, %v2434
        %s2440 = scalar_lea.vmem %s3, 88
        %v2441 = vld [vmem:[%s2440] sm:$0xff]
        %2442 = vrot.lane.b32.xlu0 %v420, 85
        %v2443 = vpop.permute.xlu0 %2442
        %2444 = vrot.lane.b32.xlu0 %v421, 85
        %v2445 = vpop.permute.xlu0 %2444
        %2446 = vrot.lane.b32.xlu0 %v422, 85
        %v2447 = vpop.permute.xlu0 %2446
        %2448 = vrot.lane.b32.xlu0 %v423, 85
        %v2449 = vpop.permute.xlu0 %2448
        %2450 = vrot.lane.b32.xlu0 0.0, 85
        %v2451 = vpop.permute.xlu0 %2450
        %2452 = vrot.lane.b32.xlu0 %v424, 85
        %v2453 = vpop.permute.xlu0 %2452
        %2454 = vrot.lane.b32.xlu0 %v425, 85
        %v2455 = vpop.permute.xlu0 %2454
        %2456 = vrot.lane.b32.xlu0 %v426, 85
        %v2457 = vpop.permute.xlu0 %2456
        %2458 = vrot.lane.b32.xlu0 %v427, 85
        %v2459 = vpop.permute.xlu0 %2458
        %vm2460 = vcmask 695296
        %v2461 = vsel %vm2460, %v2443, %v2445
        %v2462 = vsel %vm2460, %v2445, %v2447
        %v2463 = vsel %vm2460, %v2447, %v2449
        %v2464 = vsel %vm2460, %v2449, %v2451
        %v2465 = vsel %vm2460, %v2453, %v2455
        %v2466 = vsel %vm2460, %v2455, %v2457
        %v2467 = vsel %vm2460, %v2457, %v2459
        %v2468 = vsel %vm2460, %v2459, %v2451
        %v2478 = vsel %vm475, %v2441, 0
        %2480 = vmatprep.subr.mxu0 %v2462
        %2481 = vmatpush1.msra.mxu0 %v2461
        %2482 = vmatprep.subr.mxu0 %v2466
        %2483 = vmatpush1.msra.mxu0 %v2465
        %2484 = vmatprep.subr.mxu0 0.0
        %2485 = vmatpush1.msra.mxu0 0.0
        %2486 = vmatprep.subr.mxu0 0.0
        %2487 = vmatpush1.msra.mxu0 0.0
        %2488 = vmatprep.subr.mxu0 0.0
        %2489 = vmatpush1.msra.mxu0 0.0
        %2490 = vmatprep.subr.mxu0 0.0
        %2491 = vmatpush1.msra.mxu0 0.0
        %2492 = vmatprep.subr.mxu0 0.0
        %2493 = vmatpush1.msra.mxu0 0.0
        %2494 = vmatprep.subr.mxu0 0.0
        %2495 = vmatpush1.msra.mxu0 0.0
        %2496 = vmatprep.subr.mxu0 0.0
        %2497 = vmatpush1.msra.mxu0 0.0
        %2498 = vmatprep.subr.mxu0 0.0
        %2499 = vmatpush1.msra.mxu0 0.0
        %2500 = vmatprep.subr.mxu0 0.0
        %2501 = vmatpush1.msra.mxu0 0.0
        %2502 = vmatprep.subr.mxu0 0.0
        %2503 = vmatpush1.msra.mxu0 0.0
        %2504 = vmatprep.subr.mxu0 0.0
        %2505 = vmatpush1.msra.mxu0 0.0
        %2506 = vmatprep.subr.mxu0 0.0
        %2507 = vmatpush1.msra.mxu0 0.0
        %2508 = vmatprep.subr.mxu0 0.0
        %2509 = vmatpush1.msra.mxu0 0.0
        %2510 = vmatprep.subr.mxu0 0.0
        %2511 = vmatpush1.msra.mxu0 0.0
        %2512 = vmatprep.subr.mxu0 0.0
        %2513 = vmatpush1.msra.mxu0 0.0
        %2514 = vmatprep.subr.mxu0 0.0
        %2515 = vmatpush1.msra.mxu0 0.0
        %2516 = vmatprep.subr.mxu0 0.0
        %2517 = vmatpush1.msra.mxu0 0.0
        %2518 = vmatprep.subr.mxu0 0.0
        %2519 = vmatpush1.msra.mxu0 0.0
        %2520 = vmatprep.subr.mxu0 0.0
        %2521 = vmatpush1.msra.mxu0 0.0
        %2522 = vmatprep.subr.mxu0 0.0
        %2523 = vmatpush1.msra.mxu0 0.0
        %2524 = vmatprep.subr.mxu0 0.0
        %2525 = vmatpush1.msra.mxu0 0.0
        %2526 = vmatprep.subr.mxu0 0.0
        %2527 = vmatpush1.msra.mxu0 0.0
        %2528 = vmatprep.subr.mxu0 0.0
        %2529 = vmatpush1.msra.mxu0 0.0
        %2530 = vmatprep.subr.mxu0 0.0
        %2531 = vmatpush1.msra.mxu0 0.0
        %2532 = vmatprep.subr.mxu0 0.0
        %2533 = vmatpush1.msra.mxu0 0.0
        %2534 = vmatprep.subr.mxu0 0.0
        %2535 = vmatpush1.msra.mxu0 0.0
        %2536 = vmatprep.subr.mxu0 0.0
        %2537 = vmatpush1.msra.mxu0 0.0
        %2538 = vmatprep.subr.mxu0 0.0
        %2539 = vmatpush1.msra.mxu0 0.0
        %2540 = vmatprep.subr.mxu0 0.0
        %2541 = vmatpush1.msra.mxu0 0.0
        %2542 = vmatprep.subr.mxu0 0.0
        %2543 = vmatpush1.msra.mxu0 0.0
        %2544 = vmatprep.mubr.f32.mxu0 0.0
        %2545 = vmatmul.mubr.f32.gmra.mrb[0].mxu0 %v2478
        %v2546 = vpop.f32.mrb[0].mxu0
        %v2547 = vadd.f32 0.0, %v2546
        %v2548 = vpop.f32.mrb[0].mxu0
        %v2549 = vadd.f32 0.0, %v2548
        %2550 = vdwg.mxu0
        %2551 = vmatprep.subr.mxu0 %v2464
        %2552 = vmatpush1.msra.mxu0 %v2463
        %2553 = vmatprep.subr.mxu0 %v2468
        %2554 = vmatpush1.msra.mxu0 %v2467
        %2555 = vmatprep.subr.mxu0 0.0
        %2556 = vmatpush1.msra.mxu0 0.0
        %2557 = vmatprep.subr.mxu0 0.0
        %2558 = vmatpush1.msra.mxu0 0.0
        %2559 = vmatprep.subr.mxu0 0.0
        %2560 = vmatpush1.msra.mxu0 0.0
        %2561 = vmatprep.subr.mxu0 0.0
        %2562 = vmatpush1.msra.mxu0 0.0
        %2563 = vmatprep.subr.mxu0 0.0
        %2564 = vmatpush1.msra.mxu0 0.0
        %2565 = vmatprep.subr.mxu0 0.0
        %2566 = vmatpush1.msra.mxu0 0.0
        %2567 = vmatprep.subr.mxu0 0.0
        %2568 = vmatpush1.msra.mxu0 0.0
        %2569 = vmatprep.subr.mxu0 0.0
        %2570 = vmatpush1.msra.mxu0 0.0
        %2571 = vmatprep.subr.mxu0 0.0
        %2572 = vmatpush1.msra.mxu0 0.0
        %2573 = vmatprep.subr.mxu0 0.0
        %2574 = vmatpush1.msra.mxu0 0.0
        %2575 = vmatprep.subr.mxu0 0.0
        %2576 = vmatpush1.msra.mxu0 0.0
        %2577 = vmatprep.subr.mxu0 0.0
        %2578 = vmatpush1.msra.mxu0 0.0
        %2579 = vmatprep.subr.mxu0 0.0
        %2580 = vmatpush1.msra.mxu0 0.0
        %2581 = vmatprep.subr.mxu0 0.0
        %2582 = vmatpush1.msra.mxu0 0.0
        %2583 = vmatprep.subr.mxu0 0.0
        %2584 = vmatpush1.msra.mxu0 0.0
        %2585 = vmatprep.subr.mxu0 0.0
        %2586 = vmatpush1.msra.mxu0 0.0
        %2587 = vmatprep.subr.mxu0 0.0
        %2588 = vmatpush1.msra.mxu0 0.0
        %2589 = vmatprep.subr.mxu0 0.0
        %2590 = vmatpush1.msra.mxu0 0.0
        %2591 = vmatprep.subr.mxu0 0.0
        %2592 = vmatpush1.msra.mxu0 0.0
        %2593 = vmatprep.subr.mxu0 0.0
        %2594 = vmatpush1.msra.mxu0 0.0
        %2595 = vmatprep.subr.mxu0 0.0
        %2596 = vmatpush1.msra.mxu0 0.0
        %2597 = vmatprep.subr.mxu0 0.0
        %2598 = vmatpush1.msra.mxu0 0.0
        %2599 = vmatprep.subr.mxu0 0.0
        %2600 = vmatpush1.msra.mxu0 0.0
        %2601 = vmatprep.subr.mxu0 0.0
        %2602 = vmatpush1.msra.mxu0 0.0
        %2603 = vmatprep.subr.mxu0 0.0
        %2604 = vmatpush1.msra.mxu0 0.0
        %2605 = vmatprep.subr.mxu0 0.0
        %2606 = vmatpush1.msra.mxu0 0.0
        %2607 = vmatprep.subr.mxu0 0.0
        %2608 = vmatpush1.msra.mxu0 0.0
        %2609 = vmatprep.subr.mxu0 0.0
        %2610 = vmatpush1.msra.mxu0 0.0
        %2611 = vmatprep.subr.mxu0 0.0
        %2612 = vmatpush1.msra.mxu0 0.0
        %2613 = vmatprep.subr.mxu0 0.0
        %2614 = vmatpush1.msra.mxu0 0.0
        %2615 = vmatprep.mubr.f32.mxu0 0.0
        %2616 = vmatmul.mubr.f32.gmra.mrb[0].mxu0 %v2478
        %v2617 = vpop.f32.mrb[0].mxu0
        %v2618 = vadd.f32 0.0, %v2617
        %v2619 = vpop.f32.mrb[0].mxu0
        %v2620 = vadd.f32 0.0, %v2619
        %2621 = vdwg.mxu0
        %v2622 = vadd.f32 %v2436, %v2547
        %v2623 = vadd.f32 %v2437, %v2549
        %v2624 = vadd.f32 %v2438, %v2618
        %v2625 = vadd.f32 %v2439, %v2620
        %s2626 = scalar_lea.vmem %s3, 96
        %v2627 = vld [vmem:[%s2626] sm:$0xff]
        %2628 = vrot.lane.b32.xlu0 %v420, 84
        %v2629 = vpop.permute.xlu0 %2628
        %2630 = vrot.lane.b32.xlu0 %v421, 84
        %v2631 = vpop.permute.xlu0 %2630
        %2632 = vrot.lane.b32.xlu0 %v422, 84
        %v2633 = vpop.permute.xlu0 %2632
        %2634 = vrot.lane.b32.xlu0 %v423, 84
        %v2635 = vpop.permute.xlu0 %2634
        %2636 = vrot.lane.b32.xlu0 0.0, 84
        %v2637 = vpop.permute.xlu0 %2636
        %2638 = vrot.lane.b32.xlu0 %v424, 84
        %v2639 = vpop.permute.xlu0 %2638
        %2640 = vrot.lane.b32.xlu0 %v425, 84
        %v2641 = vpop.permute.xlu0 %2640
        %2642 = vrot.lane.b32.xlu0 %v426, 84
        %v2643 = vpop.permute.xlu0 %2642
        %2644 = vrot.lane.b32.xlu0 %v427, 84
        %v2645 = vpop.permute.xlu0 %2644
        %vm2646 = vcmask 687104
        %v2647 = vsel %vm2646, %v2629, %v2631
        %v2648 = vsel %vm2646, %v2631, %v2633
        %v2649 = vsel %vm2646, %v2633, %v2635
        %v2650 = vsel %vm2646, %v2635, %v2637
        %v2651 = vsel %vm2646, %v2639, %v2641
        %v2652 = vsel %vm2646, %v2641, %v2643
        %v2653 = vsel %vm2646, %v2643, %v2645
        %v2654 = vsel %vm2646, %v2645, %v2637
        %v2664 = vsel %vm475, %v2627, 0
        %2666 = vmatprep.subr.mxu0 %v2648
        %2667 = vmatpush1.msra.mxu0 %v2647
        %2668 = vmatprep.subr.mxu0 %v2652
        %2669 = vmatpush1.msra.mxu0 %v2651
        %2670 = vmatprep.subr.mxu0 0.0
        %2671 = vmatpush1.msra.mxu0 0.0
        %2672 = vmatprep.subr.mxu0 0.0
        %2673 = vmatpush1.msra.mxu0 0.0
        %2674 = vmatprep.subr.mxu0 0.0
        %2675 = vmatpush1.msra.mxu0 0.0
        %2676 = vmatprep.subr.mxu0 0.0
        %2677 = vmatpush1.msra.mxu0 0.0
        %2678 = vmatprep.subr.mxu0 0.0
        %2679 = vmatpush1.msra.mxu0 0.0
        %2680 = vmatprep.subr.mxu0 0.0
        %2681 = vmatpush1.msra.mxu0 0.0
        %2682 = vmatprep.subr.mxu0 0.0
        %2683 = vmatpush1.msra.mxu0 0.0
        %2684 = vmatprep.subr.mxu0 0.0
        %2685 = vmatpush1.msra.mxu0 0.0
        %2686 = vmatprep.subr.mxu0 0.0
        %2687 = vmatpush1.msra.mxu0 0.0
        %2688 = vmatprep.subr.mxu0 0.0
        %2689 = vmatpush1.msra.mxu0 0.0
        %2690 = vmatprep.subr.mxu0 0.0
        %2691 = vmatpush1.msra.mxu0 0.0
        %2692 = vmatprep.subr.mxu0 0.0
        %2693 = vmatpush1.msra.mxu0 0.0
        %2694 = vmatprep.subr.mxu0 0.0
        %2695 = vmatpush1.msra.mxu0 0.0
        %2696 = vmatprep.subr.mxu0 0.0
        %2697 = vmatpush1.msra.mxu0 0.0
        %2698 = vmatprep.subr.mxu0 0.0
        %2699 = vmatpush1.msra.mxu0 0.0
        %2700 = vmatprep.subr.mxu0 0.0
        %2701 = vmatpush1.msra.mxu0 0.0
        %2702 = vmatprep.subr.mxu0 0.0
        %2703 = vmatpush1.msra.mxu0 0.0
        %2704 = vmatprep.subr.mxu0 0.0
        %2705 = vmatpush1.msra.mxu0 0.0
        %2706 = vmatprep.subr.mxu0 0.0
        %2707 = vmatpush1.msra.mxu0 0.0
        %2708 = vmatprep.subr.mxu0 0.0
        %2709 = vmatpush1.msra.mxu0 0.0
        %2710 = vmatprep.subr.mxu0 0.0
        %2711 = vmatpush1.msra.mxu0 0.0
        %2712 = vmatprep.subr.mxu0 0.0
        %2713 = vmatpush1.msra.mxu0 0.0
        %2714 = vmatprep.subr.mxu0 0.0
        %2715 = vmatpush1.msra.mxu0 0.0
        %2716 = vmatprep.subr.mxu0 0.0
        %2717 = vmatpush1.msra.mxu0 0.0
        %2718 = vmatprep.subr.mxu0 0.0
        %2719 = vmatpush1.msra.mxu0 0.0
        %2720 = vmatprep.subr.mxu0 0.0
        %2721 = vmatpush1.msra.mxu0 0.0
        %2722 = vmatprep.subr.mxu0 0.0
        %2723 = vmatpush1.msra.mxu0 0.0
        %2724 = vmatprep.subr.mxu0 0.0
        %2725 = vmatpush1.msra.mxu0 0.0
        %2726 = vmatprep.subr.mxu0 0.0
        %2727 = vmatpush1.msra.mxu0 0.0
        %2728 = vmatprep.subr.mxu0 0.0
        %2729 = vmatpush1.msra.mxu0 0.0
        %2730 = vmatprep.mubr.f32.mxu0 0.0
        %2731 = vmatmul.mubr.f32.gmra.mrb[0].mxu0 %v2664
        %v2732 = vpop.f32.mrb[0].mxu0
        %v2733 = vadd.f32 0.0, %v2732
        %v2734 = vpop.f32.mrb[0].mxu0
        %v2735 = vadd.f32 0.0, %v2734
        %2736 = vdwg.mxu0
        %2737 = vmatprep.subr.mxu0 %v2650
        %2738 = vmatpush1.msra.mxu0 %v2649
        %2739 = vmatprep.subr.mxu0 %v2654
        %2740 = vmatpush1.msra.mxu0 %v2653
        %2741 = vmatprep.subr.mxu0 0.0
        %2742 = vmatpush1.msra.mxu0 0.0
        %2743 = vmatprep.subr.mxu0 0.0
        %2744 = vmatpush1.msra.mxu0 0.0
        %2745 = vmatprep.subr.mxu0 0.0
        %2746 = vmatpush1.msra.mxu0 0.0
        %2747 = vmatprep.subr.mxu0 0.0
        %2748 = vmatpush1.msra.mxu0 0.0
        %2749 = vmatprep.subr.mxu0 0.0
        %2750 = vmatpush1.msra.mxu0 0.0
        %2751 = vmatprep.subr.mxu0 0.0
        %2752 = vmatpush1.msra.mxu0 0.0
        %2753 = vmatprep.subr.mxu0 0.0
        %2754 = vmatpush1.msra.mxu0 0.0
        %2755 = vmatprep.subr.mxu0 0.0
        %2756 = vmatpush1.msra.mxu0 0.0
        %2757 = vmatprep.subr.mxu0 0.0
        %2758 = vmatpush1.msra.mxu0 0.0
        %2759 = vmatprep.subr.mxu0 0.0
        %2760 = vmatpush1.msra.mxu0 0.0
        %2761 = vmatprep.subr.mxu0 0.0
        %2762 = vmatpush1.msra.mxu0 0.0
        %2763 = vmatprep.subr.mxu0 0.0
        %2764 = vmatpush1.msra.mxu0 0.0
        %2765 = vmatprep.subr.mxu0 0.0
        %2766 = vmatpush1.msra.mxu0 0.0
        %2767 = vmatprep.subr.mxu0 0.0
        %2768 = vmatpush1.msra.mxu0 0.0
        %2769 = vmatprep.subr.mxu0 0.0
        %2770 = vmatpush1.msra.mxu0 0.0
        %2771 = vmatprep.subr.mxu0 0.0
        %2772 = vmatpush1.msra.mxu0 0.0
        %2773 = vmatprep.subr.mxu0 0.0
        %2774 = vmatpush1.msra.mxu0 0.0
        %2775 = vmatprep.subr.mxu0 0.0
        %2776 = vmatpush1.msra.mxu0 0.0
        %2777 = vmatprep.subr.mxu0 0.0
        %2778 = vmatpush1.msra.mxu0 0.0
        %2779 = vmatprep.subr.mxu0 0.0
        %2780 = vmatpush1.msra.mxu0 0.0
        %2781 = vmatprep.subr.mxu0 0.0
        %2782 = vmatpush1.msra.mxu0 0.0
        %2783 = vmatprep.subr.mxu0 0.0
        %2784 = vmatpush1.msra.mxu0 0.0
        %2785 = vmatprep.subr.mxu0 0.0
        %2786 = vmatpush1.msra.mxu0 0.0
        %2787 = vmatprep.subr.mxu0 0.0
        %2788 = vmatpush1.msra.mxu0 0.0
        %2789 = vmatprep.subr.mxu0 0.0
        %2790 = vmatpush1.msra.mxu0 0.0
        %2791 = vmatprep.subr.mxu0 0.0
        %2792 = vmatpush1.msra.mxu0 0.0
        %2793 = vmatprep.subr.mxu0 0.0
        %2794 = vmatpush1.msra.mxu0 0.0
        %2795 = vmatprep.subr.mxu0 0.0
        %2796 = vmatpush1.msra.mxu0 0.0
        %2797 = vmatprep.subr.mxu0 0.0
        %2798 = vmatpush1.msra.mxu0 0.0
        %2799 = vmatprep.subr.mxu0 0.0
        %2800 = vmatpush1.msra.mxu0 0.0
        %2801 = vmatprep.mubr.f32.mxu0 0.0
        %2802 = vmatmul.mubr.f32.gmra.mrb[0].mxu0 %v2664
        %v2803 = vpop.f32.mrb[0].mxu0
        %v2804 = vadd.f32 0.0, %v2803
        %v2805 = vpop.f32.mrb[0].mxu0
        %v2806 = vadd.f32 0.0, %v2805
        %2807 = vdwg.mxu0
        %v2808 = vadd.f32 %v2622, %v2733
        %v2809 = vadd.f32 %v2623, %v2735
        %v2810 = vadd.f32 %v2624, %v2804
        %v2811 = vadd.f32 %v2625, %v2806
        %s2812 = scalar_lea.vmem %s3, 104
        %v2813 = vld [vmem:[%s2812] sm:$0xff]
        %2814 = vrot.lane.b32.xlu0 %v420, 83
        %v2815 = vpop.permute.xlu0 %2814
        %2816 = vrot.lane.b32.xlu0 %v421, 83
        %v2817 = vpop.permute.xlu0 %2816
        %2818 = vrot.lane.b32.xlu0 %v422, 83
        %v2819 = vpop.permute.xlu0 %2818
        %2820 = vrot.lane.b32.xlu0 %v423, 83
        %v2821 = vpop.permute.xlu0 %2820
        %2822 = vrot.lane.b32.xlu0 0.0, 83
        %v2823 = vpop.permute.xlu0 %2822
        %2824 = vrot.lane.b32.xlu0 %v424, 83
        %v2825 = vpop.permute.xlu0 %2824
        %2826 = vrot.lane.b32.xlu0 %v425, 83
        %v2827 = vpop.permute.xlu0 %2826
        %2828 = vrot.lane.b32.xlu0 %v426, 83
        %v2829 = vpop.permute.xlu0 %2828
        %2830 = vrot.lane.b32.xlu0 %v427, 83
        %v2831 = vpop.permute.xlu0 %2830
        %vm2832 = vcmask 678912
        %v2833 = vsel %vm2832, %v2815, %v2817
        %v2834 = vsel %vm2832, %v2817, %v2819
        %v2835 = vsel %vm2832, %v2819, %v2821
        %v2836 = vsel %vm2832, %v2821, %v2823
        %v2837 = vsel %vm2832, %v2825, %v2827
        %v2838 = vsel %vm2832, %v2827, %v2829
        %v2839 = vsel %vm2832, %v2829, %v2831
        %v2840 = vsel %vm2832, %v2831, %v2823
        %v2850 = vsel %vm475, %v2813, 0
        %2852 = vmatprep.subr.mxu0 %v2834
        %2853 = vmatpush1.msra.mxu0 %v2833
        %2854 = vmatprep.subr.mxu0 %v2838
        %2855 = vmatpush1.msra.mxu0 %v2837
        %2856 = vmatprep.subr.mxu0 0.0
        %2857 = vmatpush1.msra.mxu0 0.0
        %2858 = vmatprep.subr.mxu0 0.0
        %2859 = vmatpush1.msra.mxu0 0.0
        %2860 = vmatprep.subr.mxu0 0.0
        %2861 = vmatpush1.msra.mxu0 0.0
        %2862 = vmatprep.subr.mxu0 0.0
        %2863 = vmatpush1.msra.mxu0 0.0
        %2864 = vmatprep.subr.mxu0 0.0
        %2865 = vmatpush1.msra.mxu0 0.0
        %2866 = vmatprep.subr.mxu0 0.0
        %2867 = vmatpush1.msra.mxu0 0.0
        %2868 = vmatprep.subr.mxu0 0.0
        %2869 = vmatpush1.msra.mxu0 0.0
        %2870 = vmatprep.subr.mxu0 0.0
        %2871 = vmatpush1.msra.mxu0 0.0
        %2872 = vmatprep.subr.mxu0 0.0
        %2873 = vmatpush1.msra.mxu0 0.0
        %2874 = vmatprep.subr.mxu0 0.0
        %2875 = vmatpush1.msra.mxu0 0.0
        %2876 = vmatprep.subr.mxu0 0.0
        %2877 = vmatpush1.msra.mxu0 0.0
        %2878 = vmatprep.subr.mxu0 0.0
        %2879 = vmatpush1.msra.mxu0 0.0
        %2880 = vmatprep.subr.mxu0 0.0
        %2881 = vmatpush1.msra.mxu0 0.0
        %2882 = vmatprep.subr.mxu0 0.0
        %2883 = vmatpush1.msra.mxu0 0.0
        %2884 = vmatprep.subr.mxu0 0.0
        %2885 = vmatpush1.msra.mxu0 0.0
        %2886 = vmatprep.subr.mxu0 0.0
        %2887 = vmatpush1.msra.mxu0 0.0
        %2888 = vmatprep.subr.mxu0 0.0
        %2889 = vmatpush1.msra.mxu0 0.0
        %2890 = vmatprep.subr.mxu0 0.0
        %2891 = vmatpush1.msra.mxu0 0.0
        %2892 = vmatprep.subr.mxu0 0.0
        %2893 = vmatpush1.msra.mxu0 0.0
        %2894 = vmatprep.subr.mxu0 0.0
        %2895 = vmatpush1.msra.mxu0 0.0
        %2896 = vmatprep.subr.mxu0 0.0
        %2897 = vmatpush1.msra.mxu0 0.0
        %2898 = vmatprep.subr.mxu0 0.0
        %2899 = vmatpush1.msra.mxu0 0.0
        %2900 = vmatprep.subr.mxu0 0.0
        %2901 = vmatpush1.msra.mxu0 0.0
        %2902 = vmatprep.subr.mxu0 0.0
        %2903 = vmatpush1.msra.mxu0 0.0
        %2904 = vmatprep.subr.mxu0 0.0
        %2905 = vmatpush1.msra.mxu0 0.0
        %2906 = vmatprep.subr.mxu0 0.0
        %2907 = vmatpush1.msra.mxu0 0.0
        %2908 = vmatprep.subr.mxu0 0.0
        %2909 = vmatpush1.msra.mxu0 0.0
        %2910 = vmatprep.subr.mxu0 0.0
        %2911 = vmatpush1.msra.mxu0 0.0
        %2912 = vmatprep.subr.mxu0 0.0
        %2913 = vmatpush1.msra.mxu0 0.0
        %2914 = vmatprep.subr.mxu0 0.0
        %2915 = vmatpush1.msra.mxu0 0.0
        %2916 = vmatprep.mubr.f32.mxu0 0.0
        %2917 = vmatmul.mubr.f32.gmra.mrb[0].mxu0 %v2850
        %v2918 = vpop.f32.mrb[0].mxu0
        %v2919 = vadd.f32 0.0, %v2918
        %v2920 = vpop.f32.mrb[0].mxu0
        %v2921 = vadd.f32 0.0, %v2920
        %2922 = vdwg.mxu0
        %2923 = vmatprep.subr.mxu0 %v2836
        %2924 = vmatpush1.msra.mxu0 %v2835
        %2925 = vmatprep.subr.mxu0 %v2840
        %2926 = vmatpush1.msra.mxu0 %v2839
        %2927 = vmatprep.subr.mxu0 0.0
        %2928 = vmatpush1.msra.mxu0 0.0
        %2929 = vmatprep.subr.mxu0 0.0
        %2930 = vmatpush1.msra.mxu0 0.0
        %2931 = vmatprep.subr.mxu0 0.0
        %2932 = vmatpush1.msra.mxu0 0.0
        %2933 = vmatprep.subr.mxu0 0.0
        %2934 = vmatpush1.msra.mxu0 0.0
        %2935 = vmatprep.subr.mxu0 0.0
        %2936 = vmatpush1.msra.mxu0 0.0
        %2937 = vmatprep.subr.mxu0 0.0
        %2938 = vmatpush1.msra.mxu0 0.0
        %2939 = vmatprep.subr.mxu0 0.0
        %2940 = vmatpush1.msra.mxu0 0.0
        %2941 = vmatprep.subr.mxu0 0.0
        %2942 = vmatpush1.msra.mxu0 0.0
        %2943 = vmatprep.subr.mxu0 0.0
        %2944 = vmatpush1.msra.mxu0 0.0
        %2945 = vmatprep.subr.mxu0 0.0
        %2946 = vmatpush1.msra.mxu0 0.0
        %2947 = vmatprep.subr.mxu0 0.0
        %2948 = vmatpush1.msra.mxu0 0.0
        %2949 = vmatprep.subr.mxu0 0.0
        %2950 = vmatpush1.msra.mxu0 0.0
        %2951 = vmatprep.subr.mxu0 0.0
        %2952 = vmatpush1.msra.mxu0 0.0
        %2953 = vmatprep.subr.mxu0 0.0
        %2954 = vmatpush1.msra.mxu0 0.0
        %2955 = vmatprep.subr.mxu0 0.0
        %2956 = vmatpush1.msra.mxu0 0.0
        %2957 = vmatprep.subr.mxu0 0.0
        %2958 = vmatpush1.msra.mxu0 0.0
        %2959 = vmatprep.subr.mxu0 0.0
        %2960 = vmatpush1.msra.mxu0 0.0
        %2961 = vmatprep.subr.mxu0 0.0
        %2962 = vmatpush1.msra.mxu0 0.0
        %2963 = vmatprep.subr.mxu0 0.0
        %2964 = vmatpush1.msra.mxu0 0.0
        %2965 = vmatprep.subr.mxu0 0.0
        %2966 = vmatpush1.msra.mxu0 0.0
        %2967 = vmatprep.subr.mxu0 0.0
        %2968 = vmatpush1.msra.mxu0 0.0
        %2969 = vmatprep.subr.mxu0 0.0
        %2970 = vmatpush1.msra.mxu0 0.0
        %2971 = vmatprep.subr.mxu0 0.0
        %2972 = vmatpush1.msra.mxu0 0.0
        %2973 = vmatprep.subr.mxu0 0.0
        %2974 = vmatpush1.msra.mxu0 0.0
        %2975 = vmatprep.subr.mxu0 0.0
        %2976 = vmatpush1.msra.mxu0 0.0
        %2977 = vmatprep.subr.mxu0 0.0
        %2978 = vmatpush1.msra.mxu0 0.0
        %2979 = vmatprep.subr.mxu0 0.0
        %2980 = vmatpush1.msra.mxu0 0.0
        %2981 = vmatprep.subr.mxu0 0.0
        %2982 = vmatpush1.msra.mxu0 0.0
        %2983 = vmatprep.subr.mxu0 0.0
        %2984 = vmatpush1.msra.mxu0 0.0
        %2985 = vmatprep.subr.mxu0 0.0
        %2986 = vmatpush1.msra.mxu0 0.0
        %2987 = vmatprep.mubr.f32.mxu0 0.0
        %2988 = vmatmul.mubr.f32.gmra.mrb[0].mxu0 %v2850
        %v2989 = vpop.f32.mrb[0].mxu0
        %v2990 = vadd.f32 0.0, %v2989
        %v2991 = vpop.f32.mrb[0].mxu0
        %v2992 = vadd.f32 0.0, %v2991
        %2993 = vdwg.mxu0
        %v2994 = vadd.f32 %v2808, %v2919
        %v2995 = vadd.f32 %v2809, %v2921
        %v2996 = vadd.f32 %v2810, %v2990
        %v2997 = vadd.f32 %v2811, %v2992
        %s2998 = scalar_lea.vmem %s3, 112
        %v2999 = vld [vmem:[%s2998] sm:$0xff]
        %3000 = vrot.lane.b32.xlu0 %v420, 82
        %v3001 = vpop.permute.xlu0 %3000
        %3002 = vrot.lane.b32.xlu0 %v421, 82
        %v3003 = vpop.permute.xlu0 %3002
        %3004 = vrot.lane.b32.xlu0 %v422, 82
        %v3005 = vpop.permute.xlu0 %3004
        %3006 = vrot.lane.b32.xlu0 %v423, 82
        %v3007 = vpop.permute.xlu0 %3006
        %3008 = vrot.lane.b32.xlu0 0.0, 82
        %v3009 = vpop.permute.xlu0 %3008
        %3010 = vrot.lane.b32.xlu0 %v424, 82
        %v3011 = vpop.permute.xlu0 %3010
        %3012 = vrot.lane.b32.xlu0 %v425, 82
        %v3013 = vpop.permute.xlu0 %3012
        %3014 = vrot.lane.b32.xlu0 %v426, 82
        %v3015 = vpop.permute.xlu0 %3014
        %3016 = vrot.lane.b32.xlu0 %v427, 82
        %v3017 = vpop.permute.xlu0 %3016
        %vm3018 = vcmask 670720
        %v3019 = vsel %vm3018, %v3001, %v3003
        %v3020 = vsel %vm3018, %v3003, %v3005
        %v3021 = vsel %vm3018, %v3005, %v3007
        %v3022 = vsel %vm3018, %v3007, %v3009
        %v3023 = vsel %vm3018, %v3011, %v3013
        %v3024 = vsel %vm3018, %v3013, %v3015
        %v3025 = vsel %vm3018, %v3015, %v3017
        %v3026 = vsel %vm3018, %v3017, %v3009
        %v3036 = vsel %vm475, %v2999, 0
        %3038 = vmatprep.subr.mxu0 %v3020
        %3039 = vmatpush1.msra.mxu0 %v3019
        %3040 = vmatprep.subr.mxu0 %v3024
        %3041 = vmatpush1.msra.mxu0 %v3023
        %3042 = vmatprep.subr.mxu0 0.0
        %3043 = vmatpush1.msra.mxu0 0.0
        %3044 = vmatprep.subr.mxu0 0.0
        %3045 = vmatpush1.msra.mxu0 0.0
        %3046 = vmatprep.subr.mxu0 0.0
        %3047 = vmatpush1.msra.mxu0 0.0
        %3048 = vmatprep.subr.mxu0 0.0
        %3049 = vmatpush1.msra.mxu0 0.0
        %3050 = vmatprep.subr.mxu0 0.0
        %3051 = vmatpush1.msra.mxu0 0.0
        %3052 = vmatprep.subr.mxu0 0.0
        %3053 = vmatpush1.msra.mxu0 0.0
        %3054 = vmatprep.subr.mxu0 0.0
        %3055 = vmatpush1.msra.mxu0 0.0
        %3056 = vmatprep.subr.mxu0 0.0
        %3057 = vmatpush1.msra.mxu0 0.0
        %3058 = vmatprep.subr.mxu0 0.0
        %3059 = vmatpush1.msra.mxu0 0.0
        %3060 = vmatprep.subr.mxu0 0.0
        %3061 = vmatpush1.msra.mxu0 0.0
        %3062 = vmatprep.subr.mxu0 0.0
        %3063 = vmatpush1.msra.mxu0 0.0
        %3064 = vmatprep.subr.mxu0 0.0
        %3065 = vmatpush1.msra.mxu0 0.0
        %3066 = vmatprep.subr.mxu0 0.0
        %3067 = vmatpush1.msra.mxu0 0.0
        %3068 = vmatprep.subr.mxu0 0.0
        %3069 = vmatpush1.msra.mxu0 0.0
        %3070 = vmatprep.subr.mxu0 0.0
        %3071 = vmatpush1.msra.mxu0 0.0
        %3072 = vmatprep.subr.mxu0 0.0
        %3073 = vmatpush1.msra.mxu0 0.0
        %3074 = vmatprep.subr.mxu0 0.0
        %3075 = vmatpush1.msra.mxu0 0.0
        %3076 = vmatprep.subr.mxu0 0.0
        %3077 = vmatpush1.msra.mxu0 0.0
        %3078 = vmatprep.subr.mxu0 0.0
        %3079 = vmatpush1.msra.mxu0 0.0
        %3080 = vmatprep.subr.mxu0 0.0
        %3081 = vmatpush1.msra.mxu0 0.0
        %3082 = vmatprep.subr.mxu0 0.0
        %3083 = vmatpush1.msra.mxu0 0.0
        %3084 = vmatprep.subr.mxu0 0.0
        %3085 = vmatpush1.msra.mxu0 0.0
        %3086 = vmatprep.subr.mxu0 0.0
        %3087 = vmatpush1.msra.mxu0 0.0
        %3088 = vmatprep.subr.mxu0 0.0
        %3089 = vmatpush1.msra.mxu0 0.0
        %3090 = vmatprep.subr.mxu0 0.0
        %3091 = vmatpush1.msra.mxu0 0.0
        %3092 = vmatprep.subr.mxu0 0.0
        %3093 = vmatpush1.msra.mxu0 0.0
        %3094 = vmatprep.subr.mxu0 0.0
        %3095 = vmatpush1.msra.mxu0 0.0
        %3096 = vmatprep.subr.mxu0 0.0
        %3097 = vmatpush1.msra.mxu0 0.0
        %3098 = vmatprep.subr.mxu0 0.0
        %3099 = vmatpush1.msra.mxu0 0.0
        %3100 = vmatprep.subr.mxu0 0.0
        %3101 = vmatpush1.msra.mxu0 0.0
        %3102 = vmatprep.mubr.f32.mxu0 0.0
        %3103 = vmatmul.mubr.f32.gmra.mrb[0].mxu0 %v3036
        %v3104 = vpop.f32.mrb[0].mxu0
        %v3105 = vadd.f32 0.0, %v3104
        %v3106 = vpop.f32.mrb[0].mxu0
        %v3107 = vadd.f32 0.0, %v3106
        %3108 = vdwg.mxu0
        %3109 = vmatprep.subr.mxu0 %v3022
        %3110 = vmatpush1.msra.mxu0 %v3021
        %3111 = vmatprep.subr.mxu0 %v3026
        %3112 = vmatpush1.msra.mxu0 %v3025
        %3113 = vmatprep.subr.mxu0 0.0
        %3114 = vmatpush1.msra.mxu0 0.0
        %3115 = vmatprep.subr.mxu0 0.0
        %3116 = vmatpush1.msra.mxu0 0.0
        %3117 = vmatprep.subr.mxu0 0.0
        %3118 = vmatpush1.msra.mxu0 0.0
        %3119 = vmatprep.subr.mxu0 0.0
        %3120 = vmatpush1.msra.mxu0 0.0
        %3121 = vmatprep.subr.mxu0 0.0
        %3122 = vmatpush1.msra.mxu0 0.0
        %3123 = vmatprep.subr.mxu0 0.0
        %3124 = vmatpush1.msra.mxu0 0.0
        %3125 = vmatprep.subr.mxu0 0.0
        %3126 = vmatpush1.msra.mxu0 0.0
        %3127 = vmatprep.subr.mxu0 0.0
        %3128 = vmatpush1.msra.mxu0 0.0
        %3129 = vmatprep.subr.mxu0 0.0
        %3130 = vmatpush1.msra.mxu0 0.0
        %3131 = vmatprep.subr.mxu0 0.0
        %3132 = vmatpush1.msra.mxu0 0.0
        %3133 = vmatprep.subr.mxu0 0.0
        %3134 = vmatpush1.msra.mxu0 0.0
        %3135 = vmatprep.subr.mxu0 0.0
        %3136 = vmatpush1.msra.mxu0 0.0
        %3137 = vmatprep.subr.mxu0 0.0
        %3138 = vmatpush1.msra.mxu0 0.0
        %3139 = vmatprep.subr.mxu0 0.0
        %3140 = vmatpush1.msra.mxu0 0.0
        %3141 = vmatprep.subr.mxu0 0.0
        %3142 = vmatpush1.msra.mxu0 0.0
        %3143 = vmatprep.subr.mxu0 0.0
        %3144 = vmatpush1.msra.mxu0 0.0
        %3145 = vmatprep.subr.mxu0 0.0
        %3146 = vmatpush1.msra.mxu0 0.0
        %3147 = vmatprep.subr.mxu0 0.0
        %3148 = vmatpush1.msra.mxu0 0.0
        %3149 = vmatprep.subr.mxu0 0.0
        %3150 = vmatpush1.msra.mxu0 0.0
        %3151 = vmatprep.subr.mxu0 0.0
        %3152 = vmatpush1.msra.mxu0 0.0
        %3153 = vmatprep.subr.mxu0 0.0
        %3154 = vmatpush1.msra.mxu0 0.0
        %3155 = vmatprep.subr.mxu0 0.0
        %3156 = vmatpush1.msra.mxu0 0.0
        %3157 = vmatprep.subr.mxu0 0.0
        %3158 = vmatpush1.msra.mxu0 0.0
        %3159 = vmatprep.subr.mxu0 0.0
        %3160 = vmatpush1.msra.mxu0 0.0
        %3161 = vmatprep.subr.mxu0 0.0
        %3162 = vmatpush1.msra.mxu0 0.0
        %3163 = vmatprep.subr.mxu0 0.0
        %3164 = vmatpush1.msra.mxu0 0.0
        %3165 = vmatprep.subr.mxu0 0.0
        %3166 = vmatpush1.msra.mxu0 0.0
        %3167 = vmatprep.subr.mxu0 0.0
        %3168 = vmatpush1.msra.mxu0 0.0
        %3169 = vmatprep.subr.mxu0 0.0
        %3170 = vmatpush1.msra.mxu0 0.0
        %3171 = vmatprep.subr.mxu0 0.0
        %3172 = vmatpush1.msra.mxu0 0.0
        %3173 = vmatprep.mubr.f32.mxu0 0.0
        %3174 = vmatmul.mubr.f32.gmra.mrb[0].mxu0 %v3036
        %v3175 = vpop.f32.mrb[0].mxu0
        %v3176 = vadd.f32 0.0, %v3175
        %v3177 = vpop.f32.mrb[0].mxu0
        %v3178 = vadd.f32 0.0, %v3177
        %3179 = vdwg.mxu0
        %v3180 = vadd.f32 %v2994, %v3105
        %v3181 = vadd.f32 %v2995, %v3107
        %v3182 = vadd.f32 %v2996, %v3176
        %v3183 = vadd.f32 %v2997, %v3178
        %s3184 = scalar_lea.vmem %s3, 120
        %v3185 = vld [vmem:[%s3184] sm:$0xff]
        %3186 = vrot.lane.b32.xlu0 %v420, 65
        %v3187 = vpop.permute.xlu0 %3186
        %3188 = vrot.lane.b32.xlu0 %v421, 65
        %v3189 = vpop.permute.xlu0 %3188
        %3190 = vrot.lane.b32.xlu0 %v422, 65
        %v3191 = vpop.permute.xlu0 %3190
        %3192 = vrot.lane.b32.xlu0 %v423, 65
        %v3193 = vpop.permute.xlu0 %3192
        %3194 = vrot.lane.b32.xlu0 0.0, 65
        %v3195 = vpop.permute.xlu0 %3194
        %3196 = vrot.lane.b32.xlu0 %v424, 65
        %v3197 = vpop.permute.xlu0 %3196
        %3198 = vrot.lane.b32.xlu0 %v425, 65
        %v3199 = vpop.permute.xlu0 %3198
        %3200 = vrot.lane.b32.xlu0 %v426, 65
        %v3201 = vpop.permute.xlu0 %3200
        %3202 = vrot.lane.b32.xlu0 %v427, 65
        %v3203 = vpop.permute.xlu0 %3202
        %vm3204 = vcmask 531456
        %v3205 = vsel %vm3204, %v3187, %v3189
        %v3206 = vsel %vm3204, %v3189, %v3191
        %v3207 = vsel %vm3204, %v3191, %v3193
        %v3208 = vsel %vm3204, %v3193, %v3195
        %v3209 = vsel %vm3204, %v3197, %v3199
        %v3210 = vsel %vm3204, %v3199, %v3201
        %v3211 = vsel %vm3204, %v3201, %v3203
        %v3212 = vsel %vm3204, %v3203, %v3195
        %v3222 = vsel %vm475, %v3185, 0
        %3224 = vmatprep.subr.mxu0 %v3206
        %3225 = vmatpush1.msra.mxu0 %v3205
        %3226 = vmatprep.subr.mxu0 %v3210
        %3227 = vmatpush1.msra.mxu0 %v3209
        %3228 = vmatprep.subr.mxu0 0.0
        %3229 = vmatpush1.msra.mxu0 0.0
        %3230 = vmatprep.subr.mxu0 0.0
        %3231 = vmatpush1.msra.mxu0 0.0
        %3232 = vmatprep.subr.mxu0 0.0
        %3233 = vmatpush1.msra.mxu0 0.0
        %3234 = vmatprep.subr.mxu0 0.0
        %3235 = vmatpush1.msra.mxu0 0.0
        %3236 = vmatprep.subr.mxu0 0.0
        %3237 = vmatpush1.msra.mxu0 0.0
        %3238 = vmatprep.subr.mxu0 0.0
        %3239 = vmatpush1.msra.mxu0 0.0
        %3240 = vmatprep.subr.mxu0 0.0
        %3241 = vmatpush1.msra.mxu0 0.0
        %3242 = vmatprep.subr.mxu0 0.0
        %3243 = vmatpush1.msra.mxu0 0.0
        %3244 = vmatprep.subr.mxu0 0.0
        %3245 = vmatpush1.msra.mxu0 0.0
        %3246 = vmatprep.subr.mxu0 0.0
        %3247 = vmatpush1.msra.mxu0 0.0
        %3248 = vmatprep.subr.mxu0 0.0
        %3249 = vmatpush1.msra.mxu0 0.0
        %3250 = vmatprep.subr.mxu0 0.0
        %3251 = vmatpush1.msra.mxu0 0.0
        %3252 = vmatprep.subr.mxu0 0.0
        %3253 = vmatpush1.msra.mxu0 0.0
        %3254 = vmatprep.subr.mxu0 0.0
        %3255 = vmatpush1.msra.mxu0 0.0
        %3256 = vmatprep.subr.mxu0 0.0
        %3257 = vmatpush1.msra.mxu0 0.0
        %3258 = vmatprep.subr.mxu0 0.0
        %3259 = vmatpush1.msra.mxu0 0.0
        %3260 = vmatprep.subr.mxu0 0.0
        %3261 = vmatpush1.msra.mxu0 0.0
        %3262 = vmatprep.subr.mxu0 0.0
        %3263 = vmatpush1.msra.mxu0 0.0
        %3264 = vmatprep.subr.mxu0 0.0
        %3265 = vmatpush1.msra.mxu0 0.0
        %3266 = vmatprep.subr.mxu0 0.0
        %3267 = vmatpush1.msra.mxu0 0.0
        %3268 = vmatprep.subr.mxu0 0.0
        %3269 = vmatpush1.msra.mxu0 0.0
        %3270 = vmatprep.subr.mxu0 0.0
        %3271 = vmatpush1.msra.mxu0 0.0
        %3272 = vmatprep.subr.mxu0 0.0
        %3273 = vmatpush1.msra.mxu0 0.0
        %3274 = vmatprep.subr.mxu0 0.0
        %3275 = vmatpush1.msra.mxu0 0.0
        %3276 = vmatprep.subr.mxu0 0.0
        %3277 = vmatpush1.msra.mxu0 0.0
        %3278 = vmatprep.subr.mxu0 0.0
        %3279 = vmatpush1.msra.mxu0 0.0
        %3280 = vmatprep.subr.mxu0 0.0
        %3281 = vmatpush1.msra.mxu0 0.0
        %3282 = vmatprep.subr.mxu0 0.0
        %3283 = vmatpush1.msra.mxu0 0.0
        %3284 = vmatprep.subr.mxu0 0.0
        %3285 = vmatpush1.msra.mxu0 0.0
        %3286 = vmatprep.subr.mxu0 0.0
        %3287 = vmatpush1.msra.mxu0 0.0
        %3288 = vmatprep.mubr.f32.mxu0 0.0
        %3289 = vmatmul.mubr.f32.gmra.mrb[0].mxu0 %v3222
        %v3290 = vpop.f32.mrb[0].mxu0
        %v3291 = vadd.f32 0.0, %v3290
        %v3292 = vpop.f32.mrb[0].mxu0
        %v3293 = vadd.f32 0.0, %v3292
        %3294 = vdwg.mxu0
        %3295 = vmatprep.subr.mxu0 %v3208
        %3296 = vmatpush1.msra.mxu0 %v3207
        %3297 = vmatprep.subr.mxu0 %v3212
        %3298 = vmatpush1.msra.mxu0 %v3211
        %3299 = vmatprep.subr.mxu0 0.0
        %3300 = vmatpush1.msra.mxu0 0.0
        %3301 = vmatprep.subr.mxu0 0.0
        %3302 = vmatpush1.msra.mxu0 0.0
        %3303 = vmatprep.subr.mxu0 0.0
        %3304 = vmatpush1.msra.mxu0 0.0
        %3305 = vmatprep.subr.mxu0 0.0
        %3306 = vmatpush1.msra.mxu0 0.0
        %3307 = vmatprep.subr.mxu0 0.0
        %3308 = vmatpush1.msra.mxu0 0.0
        %3309 = vmatprep.subr.mxu0 0.0
        %3310 = vmatpush1.msra.mxu0 0.0
        %3311 = vmatprep.subr.mxu0 0.0
        %3312 = vmatpush1.msra.mxu0 0.0
        %3313 = vmatprep.subr.mxu0 0.0
        %3314 = vmatpush1.msra.mxu0 0.0
        %3315 = vmatprep.subr.mxu0 0.0
        %3316 = vmatpush1.msra.mxu0 0.0
        %3317 = vmatprep.subr.mxu0 0.0
        %3318 = vmatpush1.msra.mxu0 0.0
        %3319 = vmatprep.subr.mxu0 0.0
        %3320 = vmatpush1.msra.mxu0 0.0
        %3321 = vmatprep.subr.mxu0 0.0
        %3322 = vmatpush1.msra.mxu0 0.0
        %3323 = vmatprep.subr.mxu0 0.0
        %3324 = vmatpush1.msra.mxu0 0.0
        %3325 = vmatprep.subr.mxu0 0.0
        %3326 = vmatpush1.msra.mxu0 0.0
        %3327 = vmatprep.subr.mxu0 0.0
        %3328 = vmatpush1.msra.mxu0 0.0
        %3329 = vmatprep.subr.mxu0 0.0
        %3330 = vmatpush1.msra.mxu0 0.0
        %3331 = vmatprep.subr.mxu0 0.0
        %3332 = vmatpush1.msra.mxu0 0.0
        %3333 = vmatprep.subr.mxu0 0.0
        %3334 = vmatpush1.msra.mxu0 0.0
        %3335 = vmatprep.subr.mxu0 0.0
        %3336 = vmatpush1.msra.mxu0 0.0
        %3337 = vmatprep.subr.mxu0 0.0
        %3338 = vmatpush1.msra.mxu0 0.0
        %3339 = vmatprep.subr.mxu0 0.0
        %3340 = vmatpush1.msra.mxu0 0.0
        %3341 = vmatprep.subr.mxu0 0.0
        %3342 = vmatpush1.msra.mxu0 0.0
        %3343 = vmatprep.subr.mxu0 0.0
        %3344 = vmatpush1.msra.mxu0 0.0
        %3345 = vmatprep.subr.mxu0 0.0
        %3346 = vmatpush1.msra.mxu0 0.0
        %3347 = vmatprep.subr.mxu0 0.0
        %3348 = vmatpush1.msra.mxu0 0.0
        %3349 = vmatprep.subr.mxu0 0.0
        %3350 = vmatpush1.msra.mxu0 0.0
        %3351 = vmatprep.subr.mxu0 0.0
        %3352 = vmatpush1.msra.mxu0 0.0
        %3353 = vmatprep.subr.mxu0 0.0
        %3354 = vmatpush1.msra.mxu0 0.0
        %3355 = vmatprep.subr.mxu0 0.0
        %3356 = vmatpush1.msra.mxu0 0.0
        %3357 = vmatprep.subr.mxu0 0.0
        %3358 = vmatpush1.msra.mxu0 0.0
        %3359 = vmatprep.mubr.f32.mxu0 0.0
        %3360 = vmatmul.mubr.f32.gmra.mrb[0].mxu0 %v3222
        %v3361 = vpop.f32.mrb[0].mxu0
        %v3362 = vadd.f32 0.0, %v3361
        %v3363 = vpop.f32.mrb[0].mxu0
        %v3364 = vadd.f32 0.0, %v3363
        %3365 = vdwg.mxu0
        %v3366 = vadd.f32 %v3180, %v3291
        %v3367 = vadd.f32 %v3181, %v3293
        %v3368 = vadd.f32 %v3182, %v3362
        %v3369 = vadd.f32 %v3183, %v3364
        %s3370 = scalar_lea.vmem %s3, 128
        %v3371 = vld [vmem:[%s3370] sm:$0xff]
        %3372 = vrot.lane.b32.xlu0 %v420, 64
        %v3373 = vpop.permute.xlu0 %3372
        %3374 = vrot.lane.b32.xlu0 %v421, 64
        %v3375 = vpop.permute.xlu0 %3374
        %3376 = vrot.lane.b32.xlu0 %v422, 64
        %v3377 = vpop.permute.xlu0 %3376
        %3378 = vrot.lane.b32.xlu0 %v423, 64
        %v3379 = vpop.permute.xlu0 %3378
        %3380 = vrot.lane.b32.xlu0 0.0, 64
        %v3381 = vpop.permute.xlu0 %3380
        %3382 = vrot.lane.b32.xlu0 %v424, 64
        %v3383 = vpop.permute.xlu0 %3382
        %3384 = vrot.lane.b32.xlu0 %v425, 64
        %v3385 = vpop.permute.xlu0 %3384
        %3386 = vrot.lane.b32.xlu0 %v426, 64
        %v3387 = vpop.permute.xlu0 %3386
        %3388 = vrot.lane.b32.xlu0 %v427, 64
        %v3389 = vpop.permute.xlu0 %3388
        %vm3390 = vcmask 523264
        %v3391 = vsel %vm3390, %v3373, %v3375
        %v3392 = vsel %vm3390, %v3375, %v3377
        %v3393 = vsel %vm3390, %v3377, %v3379
        %v3394 = vsel %vm3390, %v3379, %v3381
        %v3395 = vsel %vm3390, %v3383, %v3385
        %v3396 = vsel %vm3390, %v3385, %v3387
        %v3397 = vsel %vm3390, %v3387, %v3389
        %v3398 = vsel %vm3390, %v3389, %v3381
        %v3408 = vsel %vm475, %v3371, 0
        %3410 = vmatprep.subr.mxu0 %v3392
        %3411 = vmatpush1.msra.mxu0 %v3391
        %3412 = vmatprep.subr.mxu0 %v3396
        %3413 = vmatpush1.msra.mxu0 %v3395
        %3414 = vmatprep.subr.mxu0 0.0
        %3415 = vmatpush1.msra.mxu0 0.0
        %3416 = vmatprep.subr.mxu0 0.0
        %3417 = vmatpush1.msra.mxu0 0.0
        %3418 = vmatprep.subr.mxu0 0.0
        %3419 = vmatpush1.msra.mxu0 0.0
        %3420 = vmatprep.subr.mxu0 0.0
        %3421 = vmatpush1.msra.mxu0 0.0
        %3422 = vmatprep.subr.mxu0 0.0
        %3423 = vmatpush1.msra.mxu0 0.0
        %3424 = vmatprep.subr.mxu0 0.0
        %3425 = vmatpush1.msra.mxu0 0.0
        %3426 = vmatprep.subr.mxu0 0.0
        %3427 = vmatpush1.msra.mxu0 0.0
        %3428 = vmatprep.subr.mxu0 0.0
        %3429 = vmatpush1.msra.mxu0 0.0
        %3430 = vmatprep.subr.mxu0 0.0
        %3431 = vmatpush1.msra.mxu0 0.0
        %3432 = vmatprep.subr.mxu0 0.0
        %3433 = vmatpush1.msra.mxu0 0.0
        %3434 = vmatprep.subr.mxu0 0.0
        %3435 = vmatpush1.msra.mxu0 0.0
        %3436 = vmatprep.subr.mxu0 0.0
        %3437 = vmatpush1.msra.mxu0 0.0
        %3438 = vmatprep.subr.mxu0 0.0
        %3439 = vmatpush1.msra.mxu0 0.0
        %3440 = vmatprep.subr.mxu0 0.0
        %3441 = vmatpush1.msra.mxu0 0.0
        %3442 = vmatprep.subr.mxu0 0.0
        %3443 = vmatpush1.msra.mxu0 0.0
        %3444 = vmatprep.subr.mxu0 0.0
        %3445 = vmatpush1.msra.mxu0 0.0
        %3446 = vmatprep.subr.mxu0 0.0
        %3447 = vmatpush1.msra.mxu0 0.0
        %3448 = vmatprep.subr.mxu0 0.0
        %3449 = vmatpush1.msra.mxu0 0.0
        %3450 = vmatprep.subr.mxu0 0.0
        %3451 = vmatpush1.msra.mxu0 0.0
        %3452 = vmatprep.subr.mxu0 0.0
        %3453 = vmatpush1.msra.mxu0 0.0
        %3454 = vmatprep.subr.mxu0 0.0
        %3455 = vmatpush1.msra.mxu0 0.0
        %3456 = vmatprep.subr.mxu0 0.0
        %3457 = vmatpush1.msra.mxu0 0.0
        %3458 = vmatprep.subr.mxu0 0.0
        %3459 = vmatpush1.msra.mxu0 0.0
        %3460 = vmatprep.subr.mxu0 0.0
        %3461 = vmatpush1.msra.mxu0 0.0
        %3462 = vmatprep.subr.mxu0 0.0
        %3463 = vmatpush1.msra.mxu0 0.0
        %3464 = vmatprep.subr.mxu0 0.0
        %3465 = vmatpush1.msra.mxu0 0.0
        %3466 = vmatprep.subr.mxu0 0.0
        %3467 = vmatpush1.msra.mxu0 0.0
        %3468 = vmatprep.subr.mxu0 0.0
        %3469 = vmatpush1.msra.mxu0 0.0
        %3470 = vmatprep.subr.mxu0 0.0
        %3471 = vmatpush1.msra.mxu0 0.0
        %3472 = vmatprep.subr.mxu0 0.0
        %3473 = vmatpush1.msra.mxu0 0.0
        %3474 = vmatprep.mubr.f32.mxu0 0.0
        %3475 = vmatmul.mubr.f32.gmra.mrb[0].mxu0 %v3408
        %v3476 = vpop.f32.mrb[0].mxu0
        %v3477 = vadd.f32 0.0, %v3476
        %v3478 = vpop.f32.mrb[0].mxu0
        %v3479 = vadd.f32 0.0, %v3478
        %3480 = vdwg.mxu0
        %3481 = vmatprep.subr.mxu0 %v3394
        %3482 = vmatpush1.msra.mxu0 %v3393
        %3483 = vmatprep.subr.mxu0 %v3398
        %3484 = vmatpush1.msra.mxu0 %v3397
        %3485 = vmatprep.subr.mxu0 0.0
        %3486 = vmatpush1.msra.mxu0 0.0
        %3487 = vmatprep.subr.mxu0 0.0
        %3488 = vmatpush1.msra.mxu0 0.0
        %3489 = vmatprep.subr.mxu0 0.0
        %3490 = vmatpush1.msra.mxu0 0.0
        %3491 = vmatprep.subr.mxu0 0.0
        %3492 = vmatpush1.msra.mxu0 0.0
        %3493 = vmatprep.subr.mxu0 0.0
        %3494 = vmatpush1.msra.mxu0 0.0
        %3495 = vmatprep.subr.mxu0 0.0
        %3496 = vmatpush1.msra.mxu0 0.0
        %3497 = vmatprep.subr.mxu0 0.0
        %3498 = vmatpush1.msra.mxu0 0.0
        %3499 = vmatprep.subr.mxu0 0.0
        %3500 = vmatpush1.msra.mxu0 0.0
        %3501 = vmatprep.subr.mxu0 0.0
        %3502 = vmatpush1.msra.mxu0 0.0
        %3503 = vmatprep.subr.mxu0 0.0
        %3504 = vmatpush1.msra.mxu0 0.0
        %3505 = vmatprep.subr.mxu0 0.0
        %3506 = vmatpush1.msra.mxu0 0.0
        %3507 = vmatprep.subr.mxu0 0.0
        %3508 = vmatpush1.msra.mxu0 0.0
        %3509 = vmatprep.subr.mxu0 0.0
        %3510 = vmatpush1.msra.mxu0 0.0
        %3511 = vmatprep.subr.mxu0 0.0
        %3512 = vmatpush1.msra.mxu0 0.0
        %3513 = vmatprep.subr.mxu0 0.0
        %3514 = vmatpush1.msra.mxu0 0.0
        %3515 = vmatprep.subr.mxu0 0.0
        %3516 = vmatpush1.msra.mxu0 0.0
        %3517 = vmatprep.subr.mxu0 0.0
        %3518 = vmatpush1.msra.mxu0 0.0
        %3519 = vmatprep.subr.mxu0 0.0
        %3520 = vmatpush1.msra.mxu0 0.0
        %3521 = vmatprep.subr.mxu0 0.0
        %3522 = vmatpush1.msra.mxu0 0.0
        %3523 = vmatprep.subr.mxu0 0.0
        %3524 = vmatpush1.msra.mxu0 0.0
        %3525 = vmatprep.subr.mxu0 0.0
        %3526 = vmatpush1.msra.mxu0 0.0
        %3527 = vmatprep.subr.mxu0 0.0
        %3528 = vmatpush1.msra.mxu0 0.0
        %3529 = vmatprep.subr.mxu0 0.0
        %3530 = vmatpush1.msra.mxu0 0.0
        %3531 = vmatprep.subr.mxu0 0.0
        %3532 = vmatpush1.msra.mxu0 0.0
        %3533 = vmatprep.subr.mxu0 0.0
        %3534 = vmatpush1.msra.mxu0 0.0
        %3535 = vmatprep.subr.mxu0 0.0
        %3536 = vmatpush1.msra.mxu0 0.0
        %3537 = vmatprep.subr.mxu0 0.0
        %3538 = vmatpush1.msra.mxu0 0.0
        %3539 = vmatprep.subr.mxu0 0.0
        %3540 = vmatpush1.msra.mxu0 0.0
        %3541 = vmatprep.subr.mxu0 0.0
        %3542 = vmatpush1.msra.mxu0 0.0
        %3543 = vmatprep.subr.mxu0 0.0
        %3544 = vmatpush1.msra.mxu0 0.0
        %3545 = vmatprep.mubr.f32.mxu0 0.0
        %3546 = vmatmul.mubr.f32.gmra.mrb[0].mxu0 %v3408
        %v3547 = vpop.f32.mrb[0].mxu0
        %v3548 = vadd.f32 0.0, %v3547
        %v3549 = vpop.f32.mrb[0].mxu0
        %v3550 = vadd.f32 0.0, %v3549
        %3551 = vdwg.mxu0
        %v3552 = vadd.f32 %v3366, %v3477
        %v3553 = vadd.f32 %v3367, %v3479
        %v3554 = vadd.f32 %v3368, %v3548
        %v3555 = vadd.f32 %v3369, %v3550
        %s3556 = scalar_lea.vmem %s3, 136
        %v3557 = vld [vmem:[%s3556] sm:$0xff]
        %3558 = vrot.lane.b32.xlu0 %v420, 63
        %v3559 = vpop.permute.xlu0 %3558
        %3560 = vrot.lane.b32.xlu0 %v421, 63
        %v3561 = vpop.permute.xlu0 %3560
        %3562 = vrot.lane.b32.xlu0 %v422, 63
        %v3563 = vpop.permute.xlu0 %3562
        %3564 = vrot.lane.b32.xlu0 %v423, 63
        %v3565 = vpop.permute.xlu0 %3564
        %3566 = vrot.lane.b32.xlu0 0.0, 63
        %v3567 = vpop.permute.xlu0 %3566
        %3568 = vrot.lane.b32.xlu0 %v424, 63
        %v3569 = vpop.permute.xlu0 %3568
        %3570 = vrot.lane.b32.xlu0 %v425, 63
        %v3571 = vpop.permute.xlu0 %3570
        %3572 = vrot.lane.b32.xlu0 %v426, 63
        %v3573 = vpop.permute.xlu0 %3572
        %3574 = vrot.lane.b32.xlu0 %v427, 63
        %v3575 = vpop.permute.xlu0 %3574
        %vm3576 = vcmask 515072
        %v3577 = vsel %vm3576, %v3559, %v3561
        %v3578 = vsel %vm3576, %v3561, %v3563
        %v3579 = vsel %vm3576, %v3563, %v3565
        %v3580 = vsel %vm3576, %v3565, %v3567
        %v3581 = vsel %vm3576, %v3569, %v3571
        %v3582 = vsel %vm3576, %v3571, %v3573
        %v3583 = vsel %vm3576, %v3573, %v3575
        %v3584 = vsel %vm3576, %v3575, %v3567
        %v3594 = vsel %vm475, %v3557, 0
        %3596 = vmatprep.subr.mxu0 %v3578
        %3597 = vmatpush1.msra.mxu0 %v3577
        %3598 = vmatprep.subr.mxu0 %v3582
        %3599 = vmatpush1.msra.mxu0 %v3581
        %3600 = vmatprep.subr.mxu0 0.0
        %3601 = vmatpush1.msra.mxu0 0.0
        %3602 = vmatprep.subr.mxu0 0.0
        %3603 = vmatpush1.msra.mxu0 0.0
        %3604 = vmatprep.subr.mxu0 0.0
        %3605 = vmatpush1.msra.mxu0 0.0
        %3606 = vmatprep.subr.mxu0 0.0
        %3607 = vmatpush1.msra.mxu0 0.0
        %3608 = vmatprep.subr.mxu0 0.0
        %3609 = vmatpush1.msra.mxu0 0.0
        %3610 = vmatprep.subr.mxu0 0.0
        %3611 = vmatpush1.msra.mxu0 0.0
        %3612 = vmatprep.subr.mxu0 0.0
        %3613 = vmatpush1.msra.mxu0 0.0
        %3614 = vmatprep.subr.mxu0 0.0
        %3615 = vmatpush1.msra.mxu0 0.0
        %3616 = vmatprep.subr.mxu0 0.0
        %3617 = vmatpush1.msra.mxu0 0.0
        %3618 = vmatprep.subr.mxu0 0.0
        %3619 = vmatpush1.msra.mxu0 0.0
        %3620 = vmatprep.subr.mxu0 0.0
        %3621 = vmatpush1.msra.mxu0 0.0
        %3622 = vmatprep.subr.mxu0 0.0
        %3623 = vmatpush1.msra.mxu0 0.0
        %3624 = vmatprep.subr.mxu0 0.0
        %3625 = vmatpush1.msra.mxu0 0.0
        %3626 = vmatprep.subr.mxu0 0.0
        %3627 = vmatpush1.msra.mxu0 0.0
        %3628 = vmatprep.subr.mxu0 0.0
        %3629 = vmatpush1.msra.mxu0 0.0
        %3630 = vmatprep.subr.mxu0 0.0
        %3631 = vmatpush1.msra.mxu0 0.0
        %3632 = vmatprep.subr.mxu0 0.0
        %3633 = vmatpush1.msra.mxu0 0.0
        %3634 = vmatprep.subr.mxu0 0.0
        %3635 = vmatpush1.msra.mxu0 0.0
        %3636 = vmatprep.subr.mxu0 0.0
        %3637 = vmatpush1.msra.mxu0 0.0
        %3638 = vmatprep.subr.mxu0 0.0
        %3639 = vmatpush1.msra.mxu0 0.0
        %3640 = vmatprep.subr.mxu0 0.0
        %3641 = vmatpush1.msra.mxu0 0.0
        %3642 = vmatprep.subr.mxu0 0.0
        %3643 = vmatpush1.msra.mxu0 0.0
        %3644 = vmatprep.subr.mxu0 0.0
        %3645 = vmatpush1.msra.mxu0 0.0
        %3646 = vmatprep.subr.mxu0 0.0
        %3647 = vmatpush1.msra.mxu0 0.0
        %3648 = vmatprep.subr.mxu0 0.0
        %3649 = vmatpush1.msra.mxu0 0.0
        %3650 = vmatprep.subr.mxu0 0.0
        %3651 = vmatpush1.msra.mxu0 0.0
        %3652 = vmatprep.subr.mxu0 0.0
        %3653 = vmatpush1.msra.mxu0 0.0
        %3654 = vmatprep.subr.mxu0 0.0
        %3655 = vmatpush1.msra.mxu0 0.0
        %3656 = vmatprep.subr.mxu0 0.0
        %3657 = vmatpush1.msra.mxu0 0.0
        %3658 = vmatprep.subr.mxu0 0.0
        %3659 = vmatpush1.msra.mxu0 0.0
        %3660 = vmatprep.mubr.f32.mxu0 0.0
        %3661 = vmatmul.mubr.f32.gmra.mrb[0].mxu0 %v3594
        %v3662 = vpop.f32.mrb[0].mxu0
        %v3663 = vadd.f32 0.0, %v3662
        %v3664 = vpop.f32.mrb[0].mxu0
        %v3665 = vadd.f32 0.0, %v3664
        %3666 = vdwg.mxu0
        %3667 = vmatprep.subr.mxu0 %v3580
        %3668 = vmatpush1.msra.mxu0 %v3579
        %3669 = vmatprep.subr.mxu0 %v3584
        %3670 = vmatpush1.msra.mxu0 %v3583
        %3671 = vmatprep.subr.mxu0 0.0
        %3672 = vmatpush1.msra.mxu0 0.0
        %3673 = vmatprep.subr.mxu0 0.0
        %3674 = vmatpush1.msra.mxu0 0.0
        %3675 = vmatprep.subr.mxu0 0.0
        %3676 = vmatpush1.msra.mxu0 0.0
        %3677 = vmatprep.subr.mxu0 0.0
        %3678 = vmatpush1.msra.mxu0 0.0
        %3679 = vmatprep.subr.mxu0 0.0
        %3680 = vmatpush1.msra.mxu0 0.0
        %3681 = vmatprep.subr.mxu0 0.0
        %3682 = vmatpush1.msra.mxu0 0.0
        %3683 = vmatprep.subr.mxu0 0.0
        %3684 = vmatpush1.msra.mxu0 0.0
        %3685 = vmatprep.subr.mxu0 0.0
        %3686 = vmatpush1.msra.mxu0 0.0
        %3687 = vmatprep.subr.mxu0 0.0
        %3688 = vmatpush1.msra.mxu0 0.0
        %3689 = vmatprep.subr.mxu0 0.0
        %3690 = vmatpush1.msra.mxu0 0.0
        %3691 = vmatprep.subr.mxu0 0.0
        %3692 = vmatpush1.msra.mxu0 0.0
        %3693 = vmatprep.subr.mxu0 0.0
        %3694 = vmatpush1.msra.mxu0 0.0
        %3695 = vmatprep.subr.mxu0 0.0
        %3696 = vmatpush1.msra.mxu0 0.0
        %3697 = vmatprep.subr.mxu0 0.0
        %3698 = vmatpush1.msra.mxu0 0.0
        %3699 = vmatprep.subr.mxu0 0.0
        %3700 = vmatpush1.msra.mxu0 0.0
        %3701 = vmatprep.subr.mxu0 0.0
        %3702 = vmatpush1.msra.mxu0 0.0
        %3703 = vmatprep.subr.mxu0 0.0
        %3704 = vmatpush1.msra.mxu0 0.0
        %3705 = vmatprep.subr.mxu0 0.0
        %3706 = vmatpush1.msra.mxu0 0.0
        %3707 = vmatprep.subr.mxu0 0.0
        %3708 = vmatpush1.msra.mxu0 0.0
        %3709 = vmatprep.subr.mxu0 0.0
        %3710 = vmatpush1.msra.mxu0 0.0
        %3711 = vmatprep.subr.mxu0 0.0
        %3712 = vmatpush1.msra.mxu0 0.0
        %3713 = vmatprep.subr.mxu0 0.0
        %3714 = vmatpush1.msra.mxu0 0.0
        %3715 = vmatprep.subr.mxu0 0.0
        %3716 = vmatpush1.msra.mxu0 0.0
        %3717 = vmatprep.subr.mxu0 0.0
        %3718 = vmatpush1.msra.mxu0 0.0
        %3719 = vmatprep.subr.mxu0 0.0
        %3720 = vmatpush1.msra.mxu0 0.0
        %3721 = vmatprep.subr.mxu0 0.0
        %3722 = vmatpush1.msra.mxu0 0.0
        %3723 = vmatprep.subr.mxu0 0.0
        %3724 = vmatpush1.msra.mxu0 0.0
        %3725 = vmatprep.subr.mxu0 0.0
        %3726 = vmatpush1.msra.mxu0 0.0
        %3727 = vmatprep.subr.mxu0 0.0
        %3728 = vmatpush1.msra.mxu0 0.0
        %3729 = vmatprep.subr.mxu0 0.0
        %3730 = vmatpush1.msra.mxu0 0.0
        %3731 = vmatprep.mubr.f32.mxu0 0.0
        %3732 = vmatmul.mubr.f32.gmra.mrb[0].mxu0 %v3594
        %v3733 = vpop.f32.mrb[0].mxu0
        %v3734 = vadd.f32 0.0, %v3733
        %v3735 = vpop.f32.mrb[0].mxu0
        %v3736 = vadd.f32 0.0, %v3735
        %3737 = vdwg.mxu0
        %v3738 = vadd.f32 %v3552, %v3663
        %v3739 = vadd.f32 %v3553, %v3665
        %v3740 = vadd.f32 %v3554, %v3734
        %v3741 = vadd.f32 %v3555, %v3736
        %s3742 = scalar_lea.vmem %s3, 144
        %v3743 = vld [vmem:[%s3742] sm:$0xff]
        %3744 = vrot.lane.b32.xlu0 %v420, 62
        %v3745 = vpop.permute.xlu0 %3744
        %3746 = vrot.lane.b32.xlu0 %v421, 62
        %v3747 = vpop.permute.xlu0 %3746
        %3748 = vrot.lane.b32.xlu0 %v422, 62
        %v3749 = vpop.permute.xlu0 %3748
        %3750 = vrot.lane.b32.xlu0 %v423, 62
        %v3751 = vpop.permute.xlu0 %3750
        %3752 = vrot.lane.b32.xlu0 0.0, 62
        %v3753 = vpop.permute.xlu0 %3752
        %3754 = vrot.lane.b32.xlu0 %v424, 62
        %v3755 = vpop.permute.xlu0 %3754
        %3756 = vrot.lane.b32.xlu0 %v425, 62
        %v3757 = vpop.permute.xlu0 %3756
        %3758 = vrot.lane.b32.xlu0 %v426, 62
        %v3759 = vpop.permute.xlu0 %3758
        %3760 = vrot.lane.b32.xlu0 %v427, 62
        %v3761 = vpop.permute.xlu0 %3760
        %vm3762 = vcmask 506880
        %v3763 = vsel %vm3762, %v3745, %v3747
        %v3764 = vsel %vm3762, %v3747, %v3749
        %v3765 = vsel %vm3762, %v3749, %v3751
        %v3766 = vsel %vm3762, %v3751, %v3753
        %v3767 = vsel %vm3762, %v3755, %v3757
        %v3768 = vsel %vm3762, %v3757, %v3759
        %v3769 = vsel %vm3762, %v3759, %v3761
        %v3770 = vsel %vm3762, %v3761, %v3753
        %v3780 = vsel %vm475, %v3743, 0
        %3782 = vmatprep.subr.mxu0 %v3764
        %3783 = vmatpush1.msra.mxu0 %v3763
        %3784 = vmatprep.subr.mxu0 %v3768
        %3785 = vmatpush1.msra.mxu0 %v3767
        %3786 = vmatprep.subr.mxu0 0.0
        %3787 = vmatpush1.msra.mxu0 0.0
        %3788 = vmatprep.subr.mxu0 0.0
        %3789 = vmatpush1.msra.mxu0 0.0
        %3790 = vmatprep.subr.mxu0 0.0
        %3791 = vmatpush1.msra.mxu0 0.0
        %3792 = vmatprep.subr.mxu0 0.0
        %3793 = vmatpush1.msra.mxu0 0.0
        %3794 = vmatprep.subr.mxu0 0.0
        %3795 = vmatpush1.msra.mxu0 0.0
        %3796 = vmatprep.subr.mxu0 0.0
        %3797 = vmatpush1.msra.mxu0 0.0
        %3798 = vmatprep.subr.mxu0 0.0
        %3799 = vmatpush1.msra.mxu0 0.0
        %3800 = vmatprep.subr.mxu0 0.0
        %3801 = vmatpush1.msra.mxu0 0.0
        %3802 = vmatprep.subr.mxu0 0.0
        %3803 = vmatpush1.msra.mxu0 0.0
        %3804 = vmatprep.subr.mxu0 0.0
        %3805 = vmatpush1.msra.mxu0 0.0
        %3806 = vmatprep.subr.mxu0 0.0
        %3807 = vmatpush1.msra.mxu0 0.0
        %3808 = vmatprep.subr.mxu0 0.0
        %3809 = vmatpush1.msra.mxu0 0.0
        %3810 = vmatprep.subr.mxu0 0.0
        %3811 = vmatpush1.msra.mxu0 0.0
        %3812 = vmatprep.subr.mxu0 0.0
        %3813 = vmatpush1.msra.mxu0 0.0
        %3814 = vmatprep.subr.mxu0 0.0
        %3815 = vmatpush1.msra.mxu0 0.0
        %3816 = vmatprep.subr.mxu0 0.0
        %3817 = vmatpush1.msra.mxu0 0.0
        %3818 = vmatprep.subr.mxu0 0.0
        %3819 = vmatpush1.msra.mxu0 0.0
        %3820 = vmatprep.subr.mxu0 0.0
        %3821 = vmatpush1.msra.mxu0 0.0
        %3822 = vmatprep.subr.mxu0 0.0
        %3823 = vmatpush1.msra.mxu0 0.0
        %3824 = vmatprep.subr.mxu0 0.0
        %3825 = vmatpush1.msra.mxu0 0.0
        %3826 = vmatprep.subr.mxu0 0.0
        %3827 = vmatpush1.msra.mxu0 0.0
        %3828 = vmatprep.subr.mxu0 0.0
        %3829 = vmatpush1.msra.mxu0 0.0
        %3830 = vmatprep.subr.mxu0 0.0
        %3831 = vmatpush1.msra.mxu0 0.0
        %3832 = vmatprep.subr.mxu0 0.0
        %3833 = vmatpush1.msra.mxu0 0.0
        %3834 = vmatprep.subr.mxu0 0.0
        %3835 = vmatpush1.msra.mxu0 0.0
        %3836 = vmatprep.subr.mxu0 0.0
        %3837 = vmatpush1.msra.mxu0 0.0
        %3838 = vmatprep.subr.mxu0 0.0
        %3839 = vmatpush1.msra.mxu0 0.0
        %3840 = vmatprep.subr.mxu0 0.0
        %3841 = vmatpush1.msra.mxu0 0.0
        %3842 = vmatprep.subr.mxu0 0.0
        %3843 = vmatpush1.msra.mxu0 0.0
        %3844 = vmatprep.subr.mxu0 0.0
        %3845 = vmatpush1.msra.mxu0 0.0
        %3846 = vmatprep.mubr.f32.mxu0 0.0
        %3847 = vmatmul.mubr.f32.gmra.mrb[0].mxu0 %v3780
        %v3848 = vpop.f32.mrb[0].mxu0
        %v3849 = vadd.f32 0.0, %v3848
        %v3850 = vpop.f32.mrb[0].mxu0
        %v3851 = vadd.f32 0.0, %v3850
        %3852 = vdwg.mxu0
        %3853 = vmatprep.subr.mxu0 %v3766
        %3854 = vmatpush1.msra.mxu0 %v3765
        %3855 = vmatprep.subr.mxu0 %v3770
        %3856 = vmatpush1.msra.mxu0 %v3769
        %3857 = vmatprep.subr.mxu0 0.0
        %3858 = vmatpush1.msra.mxu0 0.0
        %3859 = vmatprep.subr.mxu0 0.0
        %3860 = vmatpush1.msra.mxu0 0.0
        %3861 = vmatprep.subr.mxu0 0.0
        %3862 = vmatpush1.msra.mxu0 0.0
        %3863 = vmatprep.subr.mxu0 0.0
        %3864 = vmatpush1.msra.mxu0 0.0
        %3865 = vmatprep.subr.mxu0 0.0
        %3866 = vmatpush1.msra.mxu0 0.0
        %3867 = vmatprep.subr.mxu0 0.0
        %3868 = vmatpush1.msra.mxu0 0.0
        %3869 = vmatprep.subr.mxu0 0.0
        %3870 = vmatpush1.msra.mxu0 0.0
        %3871 = vmatprep.subr.mxu0 0.0
        %3872 = vmatpush1.msra.mxu0 0.0
        %3873 = vmatprep.subr.mxu0 0.0
        %3874 = vmatpush1.msra.mxu0 0.0
        %3875 = vmatprep.subr.mxu0 0.0
        %3876 = vmatpush1.msra.mxu0 0.0
        %3877 = vmatprep.subr.mxu0 0.0
        %3878 = vmatpush1.msra.mxu0 0.0
        %3879 = vmatprep.subr.mxu0 0.0
        %3880 = vmatpush1.msra.mxu0 0.0
        %3881 = vmatprep.subr.mxu0 0.0
        %3882 = vmatpush1.msra.mxu0 0.0
        %3883 = vmatprep.subr.mxu0 0.0
        %3884 = vmatpush1.msra.mxu0 0.0
        %3885 = vmatprep.subr.mxu0 0.0
        %3886 = vmatpush1.msra.mxu0 0.0
        %3887 = vmatprep.subr.mxu0 0.0
        %3888 = vmatpush1.msra.mxu0 0.0
        %3889 = vmatprep.subr.mxu0 0.0
        %3890 = vmatpush1.msra.mxu0 0.0
        %3891 = vmatprep.subr.mxu0 0.0
        %3892 = vmatpush1.msra.mxu0 0.0
        %3893 = vmatprep.subr.mxu0 0.0
        %3894 = vmatpush1.msra.mxu0 0.0
        %3895 = vmatprep.subr.mxu0 0.0
        %3896 = vmatpush1.msra.mxu0 0.0
        %3897 = vmatprep.subr.mxu0 0.0
        %3898 = vmatpush1.msra.mxu0 0.0
        %3899 = vmatprep.subr.mxu0 0.0
        %3900 = vmatpush1.msra.mxu0 0.0
        %3901 = vmatprep.subr.mxu0 0.0
        %3902 = vmatpush1.msra.mxu0 0.0
        %3903 = vmatprep.subr.mxu0 0.0
        %3904 = vmatpush1.msra.mxu0 0.0
        %3905 = vmatprep.subr.mxu0 0.0
        %3906 = vmatpush1.msra.mxu0 0.0
        %3907 = vmatprep.subr.mxu0 0.0
        %3908 = vmatpush1.msra.mxu0 0.0
        %3909 = vmatprep.subr.mxu0 0.0
        %3910 = vmatpush1.msra.mxu0 0.0
        %3911 = vmatprep.subr.mxu0 0.0
        %3912 = vmatpush1.msra.mxu0 0.0
        %3913 = vmatprep.subr.mxu0 0.0
        %3914 = vmatpush1.msra.mxu0 0.0
        %3915 = vmatprep.subr.mxu0 0.0
        %3916 = vmatpush1.msra.mxu0 0.0
        %3917 = vmatprep.mubr.f32.mxu0 0.0
        %3918 = vmatmul.mubr.f32.gmra.mrb[0].mxu0 %v3780
        %v3919 = vpop.f32.mrb[0].mxu0
        %v3920 = vadd.f32 0.0, %v3919
        %v3921 = vpop.f32.mrb[0].mxu0
        %v3922 = vadd.f32 0.0, %v3921
        %3923 = vdwg.mxu0
        %v3924 = vadd.f32 %v3738, %v3849
        %v3925 = vadd.f32 %v3739, %v3851
        %v3926 = vadd.f32 %v3740, %v3920
        %v3927 = vadd.f32 %v3741, %v3922
        %s3928 = scalar_lea.vmem %s3, 152
        %v3929 = vld [vmem:[%s3928] sm:$0xff]
        %3930 = vrot.lane.b32.xlu0 %v420, 61
        %v3931 = vpop.permute.xlu0 %3930
        %3932 = vrot.lane.b32.xlu0 %v421, 61
        %v3933 = vpop.permute.xlu0 %3932
        %3934 = vrot.lane.b32.xlu0 %v422, 61
        %v3935 = vpop.permute.xlu0 %3934
        %3936 = vrot.lane.b32.xlu0 %v423, 61
        %v3937 = vpop.permute.xlu0 %3936
        %3938 = vrot.lane.b32.xlu0 0.0, 61
        %v3939 = vpop.permute.xlu0 %3938
        %3940 = vrot.lane.b32.xlu0 %v424, 61
        %v3941 = vpop.permute.xlu0 %3940
        %3942 = vrot.lane.b32.xlu0 %v425, 61
        %v3943 = vpop.permute.xlu0 %3942
        %3944 = vrot.lane.b32.xlu0 %v426, 61
        %v3945 = vpop.permute.xlu0 %3944
        %3946 = vrot.lane.b32.xlu0 %v427, 61
        %v3947 = vpop.permute.xlu0 %3946
        %vm3948 = vcmask 498688
        %v3949 = vsel %vm3948, %v3931, %v3933
        %v3950 = vsel %vm3948, %v3933, %v3935
        %v3951 = vsel %vm3948, %v3935, %v3937
        %v3952 = vsel %vm3948, %v3937, %v3939
        %v3953 = vsel %vm3948, %v3941, %v3943
        %v3954 = vsel %vm3948, %v3943, %v3945
        %v3955 = vsel %vm3948, %v3945, %v3947
        %v3956 = vsel %vm3948, %v3947, %v3939
        %v3966 = vsel %vm475, %v3929, 0
        %3968 = vmatprep.subr.mxu0 %v3950
        %3969 = vmatpush1.msra.mxu0 %v3949
        %3970 = vmatprep.subr.mxu0 %v3954
        %3971 = vmatpush1.msra.mxu0 %v3953
        %3972 = vmatprep.subr.mxu0 0.0
        %3973 = vmatpush1.msra.mxu0 0.0
        %3974 = vmatprep.subr.mxu0 0.0
        %3975 = vmatpush1.msra.mxu0 0.0
        %3976 = vmatprep.subr.mxu0 0.0
        %3977 = vmatpush1.msra.mxu0 0.0
        %3978 = vmatprep.subr.mxu0 0.0
        %3979 = vmatpush1.msra.mxu0 0.0
        %3980 = vmatprep.subr.mxu0 0.0
        %3981 = vmatpush1.msra.mxu0 0.0
        %3982 = vmatprep.subr.mxu0 0.0
        %3983 = vmatpush1.msra.mxu0 0.0
        %3984 = vmatprep.subr.mxu0 0.0
        %3985 = vmatpush1.msra.mxu0 0.0
        %3986 = vmatprep.subr.mxu0 0.0
        %3987 = vmatpush1.msra.mxu0 0.0
        %3988 = vmatprep.subr.mxu0 0.0
        %3989 = vmatpush1.msra.mxu0 0.0
        %3990 = vmatprep.subr.mxu0 0.0
        %3991 = vmatpush1.msra.mxu0 0.0
        %3992 = vmatprep.subr.mxu0 0.0
        %3993 = vmatpush1.msra.mxu0 0.0
        %3994 = vmatprep.subr.mxu0 0.0
        %3995 = vmatpush1.msra.mxu0 0.0
        %3996 = vmatprep.subr.mxu0 0.0
        %3997 = vmatpush1.msra.mxu0 0.0
        %3998 = vmatprep.subr.mxu0 0.0
        %3999 = vmatpush1.msra.mxu0 0.0
        %4000 = vmatprep.subr.mxu0 0.0
        %4001 = vmatpush1.msra.mxu0 0.0
        %4002 = vmatprep.subr.mxu0 0.0
        %4003 = vmatpush1.msra.mxu0 0.0
        %4004 = vmatprep.subr.mxu0 0.0
        %4005 = vmatpush1.msra.mxu0 0.0
        %4006 = vmatprep.subr.mxu0 0.0
        %4007 = vmatpush1.msra.mxu0 0.0
        %4008 = vmatprep.subr.mxu0 0.0
        %4009 = vmatpush1.msra.mxu0 0.0
        %4010 = vmatprep.subr.mxu0 0.0
        %4011 = vmatpush1.msra.mxu0 0.0
        %4012 = vmatprep.subr.mxu0 0.0
        %4013 = vmatpush1.msra.mxu0 0.0
        %4014 = vmatprep.subr.mxu0 0.0
        %4015 = vmatpush1.msra.mxu0 0.0
        %4016 = vmatprep.subr.mxu0 0.0
        %4017 = vmatpush1.msra.mxu0 0.0
        %4018 = vmatprep.subr.mxu0 0.0
        %4019 = vmatpush1.msra.mxu0 0.0
        %4020 = vmatprep.subr.mxu0 0.0
        %4021 = vmatpush1.msra.mxu0 0.0
        %4022 = vmatprep.subr.mxu0 0.0
        %4023 = vmatpush1.msra.mxu0 0.0
        %4024 = vmatprep.subr.mxu0 0.0
        %4025 = vmatpush1.msra.mxu0 0.0
        %4026 = vmatprep.subr.mxu0 0.0
        %4027 = vmatpush1.msra.mxu0 0.0
        %4028 = vmatprep.subr.mxu0 0.0
        %4029 = vmatpush1.msra.mxu0 0.0
        %4030 = vmatprep.subr.mxu0 0.0
        %4031 = vmatpush1.msra.mxu0 0.0
        %4032 = vmatprep.mubr.f32.mxu0 0.0
        %4033 = vmatmul.mubr.f32.gmra.mrb[0].mxu0 %v3966
        %v4034 = vpop.f32.mrb[0].mxu0
        %v4035 = vadd.f32 0.0, %v4034
        %v4036 = vpop.f32.mrb[0].mxu0
        %v4037 = vadd.f32 0.0, %v4036
        %4038 = vdwg.mxu0
        %4039 = vmatprep.subr.mxu0 %v3952
        %4040 = vmatpush1.msra.mxu0 %v3951
        %4041 = vmatprep.subr.mxu0 %v3956
        %4042 = vmatpush1.msra.mxu0 %v3955
        %4043 = vmatprep.subr.mxu0 0.0
        %4044 = vmatpush1.msra.mxu0 0.0
        %4045 = vmatprep.subr.mxu0 0.0
        %4046 = vmatpush1.msra.mxu0 0.0
        %4047 = vmatprep.subr.mxu0 0.0
        %4048 = vmatpush1.msra.mxu0 0.0
        %4049 = vmatprep.subr.mxu0 0.0
        %4050 = vmatpush1.msra.mxu0 0.0
        %4051 = vmatprep.subr.mxu0 0.0
        %4052 = vmatpush1.msra.mxu0 0.0
        %4053 = vmatprep.subr.mxu0 0.0
        %4054 = vmatpush1.msra.mxu0 0.0
        %4055 = vmatprep.subr.mxu0 0.0
        %4056 = vmatpush1.msra.mxu0 0.0
        %4057 = vmatprep.subr.mxu0 0.0
        %4058 = vmatpush1.msra.mxu0 0.0
        %4059 = vmatprep.subr.mxu0 0.0
        %4060 = vmatpush1.msra.mxu0 0.0
        %4061 = vmatprep.subr.mxu0 0.0
        %4062 = vmatpush1.msra.mxu0 0.0
        %4063 = vmatprep.subr.mxu0 0.0
        %4064 = vmatpush1.msra.mxu0 0.0
        %4065 = vmatprep.subr.mxu0 0.0
        %4066 = vmatpush1.msra.mxu0 0.0
        %4067 = vmatprep.subr.mxu0 0.0
        %4068 = vmatpush1.msra.mxu0 0.0
        %4069 = vmatprep.subr.mxu0 0.0
        %4070 = vmatpush1.msra.mxu0 0.0
        %4071 = vmatprep.subr.mxu0 0.0
        %4072 = vmatpush1.msra.mxu0 0.0
        %4073 = vmatprep.subr.mxu0 0.0
        %4074 = vmatpush1.msra.mxu0 0.0
        %4075 = vmatprep.subr.mxu0 0.0
        %4076 = vmatpush1.msra.mxu0 0.0
        %4077 = vmatprep.subr.mxu0 0.0
        %4078 = vmatpush1.msra.mxu0 0.0
        %4079 = vmatprep.subr.mxu0 0.0
        %4080 = vmatpush1.msra.mxu0 0.0
        %4081 = vmatprep.subr.mxu0 0.0
        %4082 = vmatpush1.msra.mxu0 0.0
        %4083 = vmatprep.subr.mxu0 0.0
        %4084 = vmatpush1.msra.mxu0 0.0
        %4085 = vmatprep.subr.mxu0 0.0
        %4086 = vmatpush1.msra.mxu0 0.0
        %4087 = vmatprep.subr.mxu0 0.0
        %4088 = vmatpush1.msra.mxu0 0.0
        %4089 = vmatprep.subr.mxu0 0.0
        %4090 = vmatpush1.msra.mxu0 0.0
        %4091 = vmatprep.subr.mxu0 0.0
        %4092 = vmatpush1.msra.mxu0 0.0
        %4093 = vmatprep.subr.mxu0 0.0
        %4094 = vmatpush1.msra.mxu0 0.0
        %4095 = vmatprep.subr.mxu0 0.0
        %4096 = vmatpush1.msra.mxu0 0.0
        %4097 = vmatprep.subr.mxu0 0.0
        %4098 = vmatpush1.msra.mxu0 0.0
        %4099 = vmatprep.subr.mxu0 0.0
        %4100 = vmatpush1.msra.mxu0 0.0
        %4101 = vmatprep.subr.mxu0 0.0
        %4102 = vmatpush1.msra.mxu0 0.0
        %4103 = vmatprep.mubr.f32.mxu0 0.0
        %4104 = vmatmul.mubr.f32.gmra.mrb[0].mxu0 %v3966
        %v4105 = vpop.f32.mrb[0].mxu0
        %v4106 = vadd.f32 0.0, %v4105
        %v4107 = vpop.f32.mrb[0].mxu0
        %v4108 = vadd.f32 0.0, %v4107
        %4109 = vdwg.mxu0
        %v4110 = vadd.f32 %v3924, %v4035
        %v4111 = vadd.f32 %v3925, %v4037
        %v4112 = vadd.f32 %v3926, %v4106
        %v4113 = vadd.f32 %v3927, %v4108
        %s4114 = scalar_lea.vmem %s3, 160
        %v4115 = vld [vmem:[%s4114] sm:$0xff]
        %4116 = vrot.lane.b32.xlu0 %v420, 44
        %v4117 = vpop.permute.xlu0 %4116
        %4118 = vrot.lane.b32.xlu0 %v421, 44
        %v4119 = vpop.permute.xlu0 %4118
        %4120 = vrot.lane.b32.xlu0 %v422, 44
        %v4121 = vpop.permute.xlu0 %4120
        %4122 = vrot.lane.b32.xlu0 %v423, 44
        %v4123 = vpop.permute.xlu0 %4122
        %4124 = vrot.lane.b32.xlu0 0.0, 44
        %v4125 = vpop.permute.xlu0 %4124
        %4126 = vrot.lane.b32.xlu0 %v424, 44
        %v4127 = vpop.permute.xlu0 %4126
        %4128 = vrot.lane.b32.xlu0 %v425, 44
        %v4129 = vpop.permute.xlu0 %4128
        %4130 = vrot.lane.b32.xlu0 %v426, 44
        %v4131 = vpop.permute.xlu0 %4130
        %4132 = vrot.lane.b32.xlu0 %v427, 44
        %v4133 = vpop.permute.xlu0 %4132
        %vm4134 = vcmask 359424
        %v4135 = vsel %vm4134, %v4117, %v4119
        %v4136 = vsel %vm4134, %v4119, %v4121
        %v4137 = vsel %vm4134, %v4121, %v4123
        %v4138 = vsel %vm4134, %v4123, %v4125
        %v4139 = vsel %vm4134, %v4127, %v4129
        %v4140 = vsel %vm4134, %v4129, %v4131
        %v4141 = vsel %vm4134, %v4131, %v4133
        %v4142 = vsel %vm4134, %v4133, %v4125
        %v4152 = vsel %vm475, %v4115, 0
        %4154 = vmatprep.subr.mxu0 %v4136
        %4155 = vmatpush1.msra.mxu0 %v4135
        %4156 = vmatprep.subr.mxu0 %v4140
        %4157 = vmatpush1.msra.mxu0 %v4139
        %4158 = vmatprep.subr.mxu0 0.0
        %4159 = vmatpush1.msra.mxu0 0.0
        %4160 = vmatprep.subr.mxu0 0.0
        %4161 = vmatpush1.msra.mxu0 0.0
        %4162 = vmatprep.subr.mxu0 0.0
        %4163 = vmatpush1.msra.mxu0 0.0
        %4164 = vmatprep.subr.mxu0 0.0
        %4165 = vmatpush1.msra.mxu0 0.0
        %4166 = vmatprep.subr.mxu0 0.0
        %4167 = vmatpush1.msra.mxu0 0.0
        %4168 = vmatprep.subr.mxu0 0.0
        %4169 = vmatpush1.msra.mxu0 0.0
        %4170 = vmatprep.subr.mxu0 0.0
        %4171 = vmatpush1.msra.mxu0 0.0
        %4172 = vmatprep.subr.mxu0 0.0
        %4173 = vmatpush1.msra.mxu0 0.0
        %4174 = vmatprep.subr.mxu0 0.0
        %4175 = vmatpush1.msra.mxu0 0.0
        %4176 = vmatprep.subr.mxu0 0.0
        %4177 = vmatpush1.msra.mxu0 0.0
        %4178 = vmatprep.subr.mxu0 0.0
        %4179 = vmatpush1.msra.mxu0 0.0
        %4180 = vmatprep.subr.mxu0 0.0
        %4181 = vmatpush1.msra.mxu0 0.0
        %4182 = vmatprep.subr.mxu0 0.0
        %4183 = vmatpush1.msra.mxu0 0.0
        %4184 = vmatprep.subr.mxu0 0.0
        %4185 = vmatpush1.msra.mxu0 0.0
        %4186 = vmatprep.subr.mxu0 0.0
        %4187 = vmatpush1.msra.mxu0 0.0
        %4188 = vmatprep.subr.mxu0 0.0
        %4189 = vmatpush1.msra.mxu0 0.0
        %4190 = vmatprep.subr.mxu0 0.0
        %4191 = vmatpush1.msra.mxu0 0.0
        %4192 = vmatprep.subr.mxu0 0.0
        %4193 = vmatpush1.msra.mxu0 0.0
        %4194 = vmatprep.subr.mxu0 0.0
        %4195 = vmatpush1.msra.mxu0 0.0
        %4196 = vmatprep.subr.mxu0 0.0
        %4197 = vmatpush1.msra.mxu0 0.0
        %4198 = vmatprep.subr.mxu0 0.0
        %4199 = vmatpush1.msra.mxu0 0.0
        %4200 = vmatprep.subr.mxu0 0.0
        %4201 = vmatpush1.msra.mxu0 0.0
        %4202 = vmatprep.subr.mxu0 0.0
        %4203 = vmatpush1.msra.mxu0 0.0
        %4204 = vmatprep.subr.mxu0 0.0
        %4205 = vmatpush1.msra.mxu0 0.0
        %4206 = vmatprep.subr.mxu0 0.0
        %4207 = vmatpush1.msra.mxu0 0.0
        %4208 = vmatprep.subr.mxu0 0.0
        %4209 = vmatpush1.msra.mxu0 0.0
        %4210 = vmatprep.subr.mxu0 0.0
        %4211 = vmatpush1.msra.mxu0 0.0
        %4212 = vmatprep.subr.mxu0 0.0
        %4213 = vmatpush1.msra.mxu0 0.0
        %4214 = vmatprep.subr.mxu0 0.0
        %4215 = vmatpush1.msra.mxu0 0.0
        %4216 = vmatprep.subr.mxu0 0.0
        %4217 = vmatpush1.msra.mxu0 0.0
        %4218 = vmatprep.mubr.f32.mxu0 0.0
        %4219 = vmatmul.mubr.f32.gmra.mrb[0].mxu0 %v4152
        %v4220 = vpop.f32.mrb[0].mxu0
        %v4221 = vadd.f32 0.0, %v4220
        %v4222 = vpop.f32.mrb[0].mxu0
        %v4223 = vadd.f32 0.0, %v4222
        %4224 = vdwg.mxu0
        %4225 = vmatprep.subr.mxu0 %v4138
        %4226 = vmatpush1.msra.mxu0 %v4137
        %4227 = vmatprep.subr.mxu0 %v4142
        %4228 = vmatpush1.msra.mxu0 %v4141
        %4229 = vmatprep.subr.mxu0 0.0
        %4230 = vmatpush1.msra.mxu0 0.0
        %4231 = vmatprep.subr.mxu0 0.0
        %4232 = vmatpush1.msra.mxu0 0.0
        %4233 = vmatprep.subr.mxu0 0.0
        %4234 = vmatpush1.msra.mxu0 0.0
        %4235 = vmatprep.subr.mxu0 0.0
        %4236 = vmatpush1.msra.mxu0 0.0
        %4237 = vmatprep.subr.mxu0 0.0
        %4238 = vmatpush1.msra.mxu0 0.0
        %4239 = vmatprep.subr.mxu0 0.0
        %4240 = vmatpush1.msra.mxu0 0.0
        %4241 = vmatprep.subr.mxu0 0.0
        %4242 = vmatpush1.msra.mxu0 0.0
        %4243 = vmatprep.subr.mxu0 0.0
        %4244 = vmatpush1.msra.mxu0 0.0
        %4245 = vmatprep.subr.mxu0 0.0
        %4246 = vmatpush1.msra.mxu0 0.0
        %4247 = vmatprep.subr.mxu0 0.0
        %4248 = vmatpush1.msra.mxu0 0.0
        %4249 = vmatprep.subr.mxu0 0.0
        %4250 = vmatpush1.msra.mxu0 0.0
        %4251 = vmatprep.subr.mxu0 0.0
        %4252 = vmatpush1.msra.mxu0 0.0
        %4253 = vmatprep.subr.mxu0 0.0
        %4254 = vmatpush1.msra.mxu0 0.0
        %4255 = vmatprep.subr.mxu0 0.0
        %4256 = vmatpush1.msra.mxu0 0.0
        %4257 = vmatprep.subr.mxu0 0.0
        %4258 = vmatpush1.msra.mxu0 0.0
        %4259 = vmatprep.subr.mxu0 0.0
        %4260 = vmatpush1.msra.mxu0 0.0
        %4261 = vmatprep.subr.mxu0 0.0
        %4262 = vmatpush1.msra.mxu0 0.0
        %4263 = vmatprep.subr.mxu0 0.0
        %4264 = vmatpush1.msra.mxu0 0.0
        %4265 = vmatprep.subr.mxu0 0.0
        %4266 = vmatpush1.msra.mxu0 0.0
        %4267 = vmatprep.subr.mxu0 0.0
        %4268 = vmatpush1.msra.mxu0 0.0
        %4269 = vmatprep.subr.mxu0 0.0
        %4270 = vmatpush1.msra.mxu0 0.0
        %4271 = vmatprep.subr.mxu0 0.0
        %4272 = vmatpush1.msra.mxu0 0.0
        %4273 = vmatprep.subr.mxu0 0.0
        %4274 = vmatpush1.msra.mxu0 0.0
        %4275 = vmatprep.subr.mxu0 0.0
        %4276 = vmatpush1.msra.mxu0 0.0
        %4277 = vmatprep.subr.mxu0 0.0
        %4278 = vmatpush1.msra.mxu0 0.0
        %4279 = vmatprep.subr.mxu0 0.0
        %4280 = vmatpush1.msra.mxu0 0.0
        %4281 = vmatprep.subr.mxu0 0.0
        %4282 = vmatpush1.msra.mxu0 0.0
        %4283 = vmatprep.subr.mxu0 0.0
        %4284 = vmatpush1.msra.mxu0 0.0
        %4285 = vmatprep.subr.mxu0 0.0
        %4286 = vmatpush1.msra.mxu0 0.0
        %4287 = vmatprep.subr.mxu0 0.0
        %4288 = vmatpush1.msra.mxu0 0.0
        %4289 = vmatprep.mubr.f32.mxu0 0.0
        %4290 = vmatmul.mubr.f32.gmra.mrb[0].mxu0 %v4152
        %v4291 = vpop.f32.mrb[0].mxu0
        %v4292 = vadd.f32 0.0, %v4291
        %v4293 = vpop.f32.mrb[0].mxu0
        %v4294 = vadd.f32 0.0, %v4293
        %4295 = vdwg.mxu0
        %v4296 = vadd.f32 %v4110, %v4221
        %v4297 = vadd.f32 %v4111, %v4223
        %v4298 = vadd.f32 %v4112, %v4292
        %v4299 = vadd.f32 %v4113, %v4294
        %s4300 = scalar_lea.vmem %s3, 168
        %v4301 = vld [vmem:[%s4300] sm:$0xff]
        %4302 = vrot.lane.b32.xlu0 %v420, 43
        %v4303 = vpop.permute.xlu0 %4302
        %4304 = vrot.lane.b32.xlu0 %v421, 43
        %v4305 = vpop.permute.xlu0 %4304
        %4306 = vrot.lane.b32.xlu0 %v422, 43
        %v4307 = vpop.permute.xlu0 %4306
        %4308 = vrot.lane.b32.xlu0 %v423, 43
        %v4309 = vpop.permute.xlu0 %4308
        %4310 = vrot.lane.b32.xlu0 0.0, 43
        %v4311 = vpop.permute.xlu0 %4310
        %4312 = vrot.lane.b32.xlu0 %v424, 43
        %v4313 = vpop.permute.xlu0 %4312
        %4314 = vrot.lane.b32.xlu0 %v425, 43
        %v4315 = vpop.permute.xlu0 %4314
        %4316 = vrot.lane.b32.xlu0 %v426, 43
        %v4317 = vpop.permute.xlu0 %4316
        %4318 = vrot.lane.b32.xlu0 %v427, 43
        %v4319 = vpop.permute.xlu0 %4318
        %vm4320 = vcmask 351232
        %v4321 = vsel %vm4320, %v4303, %v4305
        %v4322 = vsel %vm4320, %v4305, %v4307
        %v4323 = vsel %vm4320, %v4307, %v4309
        %v4324 = vsel %vm4320, %v4309, %v4311
        %v4325 = vsel %vm4320, %v4313, %v4315
        %v4326 = vsel %vm4320, %v4315, %v4317
        %v4327 = vsel %vm4320, %v4317, %v4319
        %v4328 = vsel %vm4320, %v4319, %v4311
        %v4338 = vsel %vm475, %v4301, 0
        %4340 = vmatprep.subr.mxu0 %v4322
        %4341 = vmatpush1.msra.mxu0 %v4321
        %4342 = vmatprep.subr.mxu0 %v4326
        %4343 = vmatpush1.msra.mxu0 %v4325
        %4344 = vmatprep.subr.mxu0 0.0
        %4345 = vmatpush1.msra.mxu0 0.0
        %4346 = vmatprep.subr.mxu0 0.0
        %4347 = vmatpush1.msra.mxu0 0.0
        %4348 = vmatprep.subr.mxu0 0.0
        %4349 = vmatpush1.msra.mxu0 0.0
        %4350 = vmatprep.subr.mxu0 0.0
        %4351 = vmatpush1.msra.mxu0 0.0
        %4352 = vmatprep.subr.mxu0 0.0
        %4353 = vmatpush1.msra.mxu0 0.0
        %4354 = vmatprep.subr.mxu0 0.0
        %4355 = vmatpush1.msra.mxu0 0.0
        %4356 = vmatprep.subr.mxu0 0.0
        %4357 = vmatpush1.msra.mxu0 0.0
        %4358 = vmatprep.subr.mxu0 0.0
        %4359 = vmatpush1.msra.mxu0 0.0
        %4360 = vmatprep.subr.mxu0 0.0
        %4361 = vmatpush1.msra.mxu0 0.0
        %4362 = vmatprep.subr.mxu0 0.0
        %4363 = vmatpush1.msra.mxu0 0.0
        %4364 = vmatprep.subr.mxu0 0.0
        %4365 = vmatpush1.msra.mxu0 0.0
        %4366 = vmatprep.subr.mxu0 0.0
        %4367 = vmatpush1.msra.mxu0 0.0
        %4368 = vmatprep.subr.mxu0 0.0
        %4369 = vmatpush1.msra.mxu0 0.0
        %4370 = vmatprep.subr.mxu0 0.0
        %4371 = vmatpush1.msra.mxu0 0.0
        %4372 = vmatprep.subr.mxu0 0.0
        %4373 = vmatpush1.msra.mxu0 0.0
        %4374 = vmatprep.subr.mxu0 0.0
        %4375 = vmatpush1.msra.mxu0 0.0
        %4376 = vmatprep.subr.mxu0 0.0
        %4377 = vmatpush1.msra.mxu0 0.0
        %4378 = vmatprep.subr.mxu0 0.0
        %4379 = vmatpush1.msra.mxu0 0.0
        %4380 = vmatprep.subr.mxu0 0.0
        %4381 = vmatpush1.msra.mxu0 0.0
        %4382 = vmatprep.subr.mxu0 0.0
        %4383 = vmatpush1.msra.mxu0 0.0
        %4384 = vmatprep.subr.mxu0 0.0
        %4385 = vmatpush1.msra.mxu0 0.0
        %4386 = vmatprep.subr.mxu0 0.0
        %4387 = vmatpush1.msra.mxu0 0.0
        %4388 = vmatprep.subr.mxu0 0.0
        %4389 = vmatpush1.msra.mxu0 0.0
        %4390 = vmatprep.subr.mxu0 0.0
        %4391 = vmatpush1.msra.mxu0 0.0
        %4392 = vmatprep.subr.mxu0 0.0
        %4393 = vmatpush1.msra.mxu0 0.0
        %4394 = vmatprep.subr.mxu0 0.0
        %4395 = vmatpush1.msra.mxu0 0.0
        %4396 = vmatprep.subr.mxu0 0.0
        %4397 = vmatpush1.msra.mxu0 0.0
        %4398 = vmatprep.subr.mxu0 0.0
        %4399 = vmatpush1.msra.mxu0 0.0
        %4400 = vmatprep.subr.mxu0 0.0
        %4401 = vmatpush1.msra.mxu0 0.0
        %4402 = vmatprep.subr.mxu0 0.0
        %4403 = vmatpush1.msra.mxu0 0.0
        %4404 = vmatprep.mubr.f32.mxu0 0.0
        %4405 = vmatmul.mubr.f32.gmra.mrb[0].mxu0 %v4338
        %v4406 = vpop.f32.mrb[0].mxu0
        %v4407 = vadd.f32 0.0, %v4406
        %v4408 = vpop.f32.mrb[0].mxu0
        %v4409 = vadd.f32 0.0, %v4408
        %4410 = vdwg.mxu0
        %4411 = vmatprep.subr.mxu0 %v4324
        %4412 = vmatpush1.msra.mxu0 %v4323
        %4413 = vmatprep.subr.mxu0 %v4328
        %4414 = vmatpush1.msra.mxu0 %v4327
        %4415 = vmatprep.subr.mxu0 0.0
        %4416 = vmatpush1.msra.mxu0 0.0
        %4417 = vmatprep.subr.mxu0 0.0
        %4418 = vmatpush1.msra.mxu0 0.0
        %4419 = vmatprep.subr.mxu0 0.0
        %4420 = vmatpush1.msra.mxu0 0.0
        %4421 = vmatprep.subr.mxu0 0.0
        %4422 = vmatpush1.msra.mxu0 0.0
        %4423 = vmatprep.subr.mxu0 0.0
        %4424 = vmatpush1.msra.mxu0 0.0
        %4425 = vmatprep.subr.mxu0 0.0
        %4426 = vmatpush1.msra.mxu0 0.0
        %4427 = vmatprep.subr.mxu0 0.0
        %4428 = vmatpush1.msra.mxu0 0.0
        %4429 = vmatprep.subr.mxu0 0.0
        %4430 = vmatpush1.msra.mxu0 0.0
        %4431 = vmatprep.subr.mxu0 0.0
        %4432 = vmatpush1.msra.mxu0 0.0
        %4433 = vmatprep.subr.mxu0 0.0
        %4434 = vmatpush1.msra.mxu0 0.0
        %4435 = vmatprep.subr.mxu0 0.0
        %4436 = vmatpush1.msra.mxu0 0.0
        %4437 = vmatprep.subr.mxu0 0.0
        %4438 = vmatpush1.msra.mxu0 0.0
        %4439 = vmatprep.subr.mxu0 0.0
        %4440 = vmatpush1.msra.mxu0 0.0
        %4441 = vmatprep.subr.mxu0 0.0
        %4442 = vmatpush1.msra.mxu0 0.0
        %4443 = vmatprep.subr.mxu0 0.0
        %4444 = vmatpush1.msra.mxu0 0.0
        %4445 = vmatprep.subr.mxu0 0.0
        %4446 = vmatpush1.msra.mxu0 0.0
        %4447 = vmatprep.subr.mxu0 0.0
        %4448 = vmatpush1.msra.mxu0 0.0
        %4449 = vmatprep.subr.mxu0 0.0
        %4450 = vmatpush1.msra.mxu0 0.0
        %4451 = vmatprep.subr.mxu0 0.0
        %4452 = vmatpush1.msra.mxu0 0.0
        %4453 = vmatprep.subr.mxu0 0.0
        %4454 = vmatpush1.msra.mxu0 0.0
        %4455 = vmatprep.subr.mxu0 0.0
        %4456 = vmatpush1.msra.mxu0 0.0
        %4457 = vmatprep.subr.mxu0 0.0
        %4458 = vmatpush1.msra.mxu0 0.0
        %4459 = vmatprep.subr.mxu0 0.0
        %4460 = vmatpush1.msra.mxu0 0.0
        %4461 = vmatprep.subr.mxu0 0.0
        %4462 = vmatpush1.msra.mxu0 0.0
        %4463 = vmatprep.subr.mxu0 0.0
        %4464 = vmatpush1.msra.mxu0 0.0
        %4465 = vmatprep.subr.mxu0 0.0
        %4466 = vmatpush1.msra.mxu0 0.0
        %4467 = vmatprep.subr.mxu0 0.0
        %4468 = vmatpush1.msra.mxu0 0.0
        %4469 = vmatprep.subr.mxu0 0.0
        %4470 = vmatpush1.msra.mxu0 0.0
        %4471 = vmatprep.subr.mxu0 0.0
        %4472 = vmatpush1.msra.mxu0 0.0
        %4473 = vmatprep.subr.mxu0 0.0
        %4474 = vmatpush1.msra.mxu0 0.0
        %4475 = vmatprep.mubr.f32.mxu0 0.0
        %4476 = vmatmul.mubr.f32.gmra.mrb[0].mxu0 %v4338
        %v4477 = vpop.f32.mrb[0].mxu0
        %v4478 = vadd.f32 0.0, %v4477
        %v4479 = vpop.f32.mrb[0].mxu0
        %v4480 = vadd.f32 0.0, %v4479
        %4481 = vdwg.mxu0
        %v4482 = vadd.f32 %v4296, %v4407
        %v4483 = vadd.f32 %v4297, %v4409
        %v4484 = vadd.f32 %v4298, %v4478
        %v4485 = vadd.f32 %v4299, %v4480
        %s4486 = scalar_lea.vmem %s3, 176
        %v4487 = vld [vmem:[%s4486] sm:$0xff]
        %4488 = vrot.lane.b32.xlu0 %v420, 42
        %v4489 = vpop.permute.xlu0 %4488
        %4490 = vrot.lane.b32.xlu0 %v421, 42
        %v4491 = vpop.permute.xlu0 %4490
        %4492 = vrot.lane.b32.xlu0 %v422, 42
        %v4493 = vpop.permute.xlu0 %4492
        %4494 = vrot.lane.b32.xlu0 %v423, 42
        %v4495 = vpop.permute.xlu0 %4494
        %4496 = vrot.lane.b32.xlu0 0.0, 42
        %v4497 = vpop.permute.xlu0 %4496
        %4498 = vrot.lane.b32.xlu0 %v424, 42
        %v4499 = vpop.permute.xlu0 %4498
        %4500 = vrot.lane.b32.xlu0 %v425, 42
        %v4501 = vpop.permute.xlu0 %4500
        %4502 = vrot.lane.b32.xlu0 %v426, 42
        %v4503 = vpop.permute.xlu0 %4502
        %4504 = vrot.lane.b32.xlu0 %v427, 42
        %v4505 = vpop.permute.xlu0 %4504
        %vm4506 = vcmask 343040
        %v4507 = vsel %vm4506, %v4489, %v4491
        %v4508 = vsel %vm4506, %v4491, %v4493
        %v4509 = vsel %vm4506, %v4493, %v4495
        %v4510 = vsel %vm4506, %v4495, %v4497
        %v4511 = vsel %vm4506, %v4499, %v4501
        %v4512 = vsel %vm4506, %v4501, %v4503
        %v4513 = vsel %vm4506, %v4503, %v4505
        %v4514 = vsel %vm4506, %v4505, %v4497
        %v4524 = vsel %vm475, %v4487, 0
        %4526 = vmatprep.subr.mxu0 %v4508
        %4527 = vmatpush1.msra.mxu0 %v4507
        %4528 = vmatprep.subr.mxu0 %v4512
        %4529 = vmatpush1.msra.mxu0 %v4511
        %4530 = vmatprep.subr.mxu0 0.0
        %4531 = vmatpush1.msra.mxu0 0.0
        %4532 = vmatprep.subr.mxu0 0.0
        %4533 = vmatpush1.msra.mxu0 0.0
        %4534 = vmatprep.subr.mxu0 0.0
        %4535 = vmatpush1.msra.mxu0 0.0
        %4536 = vmatprep.subr.mxu0 0.0
        %4537 = vmatpush1.msra.mxu0 0.0
        %4538 = vmatprep.subr.mxu0 0.0
        %4539 = vmatpush1.msra.mxu0 0.0
        %4540 = vmatprep.subr.mxu0 0.0
        %4541 = vmatpush1.msra.mxu0 0.0
        %4542 = vmatprep.subr.mxu0 0.0
        %4543 = vmatpush1.msra.mxu0 0.0
        %4544 = vmatprep.subr.mxu0 0.0
        %4545 = vmatpush1.msra.mxu0 0.0
        %4546 = vmatprep.subr.mxu0 0.0
        %4547 = vmatpush1.msra.mxu0 0.0
        %4548 = vmatprep.subr.mxu0 0.0
        %4549 = vmatpush1.msra.mxu0 0.0
        %4550 = vmatprep.subr.mxu0 0.0
        %4551 = vmatpush1.msra.mxu0 0.0
        %4552 = vmatprep.subr.mxu0 0.0
        %4553 = vmatpush1.msra.mxu0 0.0
        %4554 = vmatprep.subr.mxu0 0.0
        %4555 = vmatpush1.msra.mxu0 0.0
        %4556 = vmatprep.subr.mxu0 0.0
        %4557 = vmatpush1.msra.mxu0 0.0
        %4558 = vmatprep.subr.mxu0 0.0
        %4559 = vmatpush1.msra.mxu0 0.0
        %4560 = vmatprep.subr.mxu0 0.0
        %4561 = vmatpush1.msra.mxu0 0.0
        %4562 = vmatprep.subr.mxu0 0.0
        %4563 = vmatpush1.msra.mxu0 0.0
        %4564 = vmatprep.subr.mxu0 0.0
        %4565 = vmatpush1.msra.mxu0 0.0
        %4566 = vmatprep.subr.mxu0 0.0
        %4567 = vmatpush1.msra.mxu0 0.0
        %4568 = vmatprep.subr.mxu0 0.0
        %4569 = vmatpush1.msra.mxu0 0.0
        %4570 = vmatprep.subr.mxu0 0.0
        %4571 = vmatpush1.msra.mxu0 0.0
        %4572 = vmatprep.subr.mxu0 0.0
        %4573 = vmatpush1.msra.mxu0 0.0
        %4574 = vmatprep.subr.mxu0 0.0
        %4575 = vmatpush1.msra.mxu0 0.0
        %4576 = vmatprep.subr.mxu0 0.0
        %4577 = vmatpush1.msra.mxu0 0.0
        %4578 = vmatprep.subr.mxu0 0.0
        %4579 = vmatpush1.msra.mxu0 0.0
        %4580 = vmatprep.subr.mxu0 0.0
        %4581 = vmatpush1.msra.mxu0 0.0
        %4582 = vmatprep.subr.mxu0 0.0
        %4583 = vmatpush1.msra.mxu0 0.0
        %4584 = vmatprep.subr.mxu0 0.0
        %4585 = vmatpush1.msra.mxu0 0.0
        %4586 = vmatprep.subr.mxu0 0.0
        %4587 = vmatpush1.msra.mxu0 0.0
        %4588 = vmatprep.subr.mxu0 0.0
        %4589 = vmatpush1.msra.mxu0 0.0
        %4590 = vmatprep.mubr.f32.mxu0 0.0
        %4591 = vmatmul.mubr.f32.gmra.mrb[0].mxu0 %v4524
        %v4592 = vpop.f32.mrb[0].mxu0
        %v4593 = vadd.f32 0.0, %v4592
        %v4594 = vpop.f32.mrb[0].mxu0
        %v4595 = vadd.f32 0.0, %v4594
        %4596 = vdwg.mxu0
        %4597 = vmatprep.subr.mxu0 %v4510
        %4598 = vmatpush1.msra.mxu0 %v4509
        %4599 = vmatprep.subr.mxu0 %v4514
        %4600 = vmatpush1.msra.mxu0 %v4513
        %4601 = vmatprep.subr.mxu0 0.0
        %4602 = vmatpush1.msra.mxu0 0.0
        %4603 = vmatprep.subr.mxu0 0.0
        %4604 = vmatpush1.msra.mxu0 0.0
        %4605 = vmatprep.subr.mxu0 0.0
        %4606 = vmatpush1.msra.mxu0 0.0
        %4607 = vmatprep.subr.mxu0 0.0
        %4608 = vmatpush1.msra.mxu0 0.0
        %4609 = vmatprep.subr.mxu0 0.0
        %4610 = vmatpush1.msra.mxu0 0.0
        %4611 = vmatprep.subr.mxu0 0.0
        %4612 = vmatpush1.msra.mxu0 0.0
        %4613 = vmatprep.subr.mxu0 0.0
        %4614 = vmatpush1.msra.mxu0 0.0
        %4615 = vmatprep.subr.mxu0 0.0
        %4616 = vmatpush1.msra.mxu0 0.0
        %4617 = vmatprep.subr.mxu0 0.0
        %4618 = vmatpush1.msra.mxu0 0.0
        %4619 = vmatprep.subr.mxu0 0.0
        %4620 = vmatpush1.msra.mxu0 0.0
        %4621 = vmatprep.subr.mxu0 0.0
        %4622 = vmatpush1.msra.mxu0 0.0
        %4623 = vmatprep.subr.mxu0 0.0
        %4624 = vmatpush1.msra.mxu0 0.0
        %4625 = vmatprep.subr.mxu0 0.0
        %4626 = vmatpush1.msra.mxu0 0.0
        %4627 = vmatprep.subr.mxu0 0.0
        %4628 = vmatpush1.msra.mxu0 0.0
        %4629 = vmatprep.subr.mxu0 0.0
        %4630 = vmatpush1.msra.mxu0 0.0
        %4631 = vmatprep.subr.mxu0 0.0
        %4632 = vmatpush1.msra.mxu0 0.0
        %4633 = vmatprep.subr.mxu0 0.0
        %4634 = vmatpush1.msra.mxu0 0.0
        %4635 = vmatprep.subr.mxu0 0.0
        %4636 = vmatpush1.msra.mxu0 0.0
        %4637 = vmatprep.subr.mxu0 0.0
        %4638 = vmatpush1.msra.mxu0 0.0
        %4639 = vmatprep.subr.mxu0 0.0
        %4640 = vmatpush1.msra.mxu0 0.0
        %4641 = vmatprep.subr.mxu0 0.0
        %4642 = vmatpush1.msra.mxu0 0.0
        %4643 = vmatprep.subr.mxu0 0.0
        %4644 = vmatpush1.msra.mxu0 0.0
        %4645 = vmatprep.subr.mxu0 0.0
        %4646 = vmatpush1.msra.mxu0 0.0
        %4647 = vmatprep.subr.mxu0 0.0
        %4648 = vmatpush1.msra.mxu0 0.0
        %4649 = vmatprep.subr.mxu0 0.0
        %4650 = vmatpush1.msra.mxu0 0.0
        %4651 = vmatprep.subr.mxu0 0.0
        %4652 = vmatpush1.msra.mxu0 0.0
        %4653 = vmatprep.subr.mxu0 0.0
        %4654 = vmatpush1.msra.mxu0 0.0
        %4655 = vmatprep.subr.mxu0 0.0
        %4656 = vmatpush1.msra.mxu0 0.0
        %4657 = vmatprep.subr.mxu0 0.0
        %4658 = vmatpush1.msra.mxu0 0.0
        %4659 = vmatprep.subr.mxu0 0.0
        %4660 = vmatpush1.msra.mxu0 0.0
        %4661 = vmatprep.mubr.f32.mxu0 0.0
        %4662 = vmatmul.mubr.f32.gmra.mrb[0].mxu0 %v4524
        %v4663 = vpop.f32.mrb[0].mxu0
        %v4664 = vadd.f32 0.0, %v4663
        %v4665 = vpop.f32.mrb[0].mxu0
        %v4666 = vadd.f32 0.0, %v4665
        %4667 = vdwg.mxu0
        %v4668 = vadd.f32 %v4482, %v4593
        %v4669 = vadd.f32 %v4483, %v4595
        %v4670 = vadd.f32 %v4484, %v4664
        %v4671 = vadd.f32 %v4485, %v4666
        %s4672 = scalar_lea.vmem %s3, 184
        %v4673 = vld [vmem:[%s4672] sm:$0xff]
        %4674 = vrot.lane.b32.xlu0 %v420, 41
        %v4675 = vpop.permute.xlu0 %4674
        %4676 = vrot.lane.b32.xlu0 %v421, 41
        %v4677 = vpop.permute.xlu0 %4676
        %4678 = vrot.lane.b32.xlu0 %v422, 41
        %v4679 = vpop.permute.xlu0 %4678
        %4680 = vrot.lane.b32.xlu0 %v423, 41
        %v4681 = vpop.permute.xlu0 %4680
        %4682 = vrot.lane.b32.xlu0 0.0, 41
        %v4683 = vpop.permute.xlu0 %4682
        %4684 = vrot.lane.b32.xlu0 %v424, 41
        %v4685 = vpop.permute.xlu0 %4684
        %4686 = vrot.lane.b32.xlu0 %v425, 41
        %v4687 = vpop.permute.xlu0 %4686
        %4688 = vrot.lane.b32.xlu0 %v426, 41
        %v4689 = vpop.permute.xlu0 %4688
        %4690 = vrot.lane.b32.xlu0 %v427, 41
        %v4691 = vpop.permute.xlu0 %4690
        %vm4692 = vcmask 334848
        %v4693 = vsel %vm4692, %v4675, %v4677
        %v4694 = vsel %vm4692, %v4677, %v4679
        %v4695 = vsel %vm4692, %v4679, %v4681
        %v4696 = vsel %vm4692, %v4681, %v4683
        %v4697 = vsel %vm4692, %v4685, %v4687
        %v4698 = vsel %vm4692, %v4687, %v4689
        %v4699 = vsel %vm4692, %v4689, %v4691
        %v4700 = vsel %vm4692, %v4691, %v4683
        %v4710 = vsel %vm475, %v4673, 0
        %4712 = vmatprep.subr.mxu0 %v4694
        %4713 = vmatpush1.msra.mxu0 %v4693
        %4714 = vmatprep.subr.mxu0 %v4698
        %4715 = vmatpush1.msra.mxu0 %v4697
        %4716 = vmatprep.subr.mxu0 0.0
        %4717 = vmatpush1.msra.mxu0 0.0
        %4718 = vmatprep.subr.mxu0 0.0
        %4719 = vmatpush1.msra.mxu0 0.0
        %4720 = vmatprep.subr.mxu0 0.0
        %4721 = vmatpush1.msra.mxu0 0.0
        %4722 = vmatprep.subr.mxu0 0.0
        %4723 = vmatpush1.msra.mxu0 0.0
        %4724 = vmatprep.subr.mxu0 0.0
        %4725 = vmatpush1.msra.mxu0 0.0
        %4726 = vmatprep.subr.mxu0 0.0
        %4727 = vmatpush1.msra.mxu0 0.0
        %4728 = vmatprep.subr.mxu0 0.0
        %4729 = vmatpush1.msra.mxu0 0.0
        %4730 = vmatprep.subr.mxu0 0.0
        %4731 = vmatpush1.msra.mxu0 0.0
        %4732 = vmatprep.subr.mxu0 0.0
        %4733 = vmatpush1.msra.mxu0 0.0
        %4734 = vmatprep.subr.mxu0 0.0
        %4735 = vmatpush1.msra.mxu0 0.0
        %4736 = vmatprep.subr.mxu0 0.0
        %4737 = vmatpush1.msra.mxu0 0.0
        %4738 = vmatprep.subr.mxu0 0.0
        %4739 = vmatpush1.msra.mxu0 0.0
        %4740 = vmatprep.subr.mxu0 0.0
        %4741 = vmatpush1.msra.mxu0 0.0
        %4742 = vmatprep.subr.mxu0 0.0
        %4743 = vmatpush1.msra.mxu0 0.0
        %4744 = vmatprep.subr.mxu0 0.0
        %4745 = vmatpush1.msra.mxu0 0.0
        %4746 = vmatprep.subr.mxu0 0.0
        %4747 = vmatpush1.msra.mxu0 0.0
        %4748 = vmatprep.subr.mxu0 0.0
        %4749 = vmatpush1.msra.mxu0 0.0
        %4750 = vmatprep.subr.mxu0 0.0
        %4751 = vmatpush1.msra.mxu0 0.0
        %4752 = vmatprep.subr.mxu0 0.0
        %4753 = vmatpush1.msra.mxu0 0.0
        %4754 = vmatprep.subr.mxu0 0.0
        %4755 = vmatpush1.msra.mxu0 0.0
        %4756 = vmatprep.subr.mxu0 0.0
        %4757 = vmatpush1.msra.mxu0 0.0
        %4758 = vmatprep.subr.mxu0 0.0
        %4759 = vmatpush1.msra.mxu0 0.0
        %4760 = vmatprep.subr.mxu0 0.0
        %4761 = vmatpush1.msra.mxu0 0.0
        %4762 = vmatprep.subr.mxu0 0.0
        %4763 = vmatpush1.msra.mxu0 0.0
        %4764 = vmatprep.subr.mxu0 0.0
        %4765 = vmatpush1.msra.mxu0 0.0
        %4766 = vmatprep.subr.mxu0 0.0
        %4767 = vmatpush1.msra.mxu0 0.0
        %4768 = vmatprep.subr.mxu0 0.0
        %4769 = vmatpush1.msra.mxu0 0.0
        %4770 = vmatprep.subr.mxu0 0.0
        %4771 = vmatpush1.msra.mxu0 0.0
        %4772 = vmatprep.subr.mxu0 0.0
        %4773 = vmatpush1.msra.mxu0 0.0
        %4774 = vmatprep.subr.mxu0 0.0
        %4775 = vmatpush1.msra.mxu0 0.0
        %4776 = vmatprep.mubr.f32.mxu0 0.0
        %4777 = vmatmul.mubr.f32.gmra.mrb[0].mxu0 %v4710
        %v4778 = vpop.f32.mrb[0].mxu0
        %v4779 = vadd.f32 0.0, %v4778
        %v4780 = vpop.f32.mrb[0].mxu0
        %v4781 = vadd.f32 0.0, %v4780
        %4782 = vdwg.mxu0
        %4783 = vmatprep.subr.mxu0 %v4696
        %4784 = vmatpush1.msra.mxu0 %v4695
        %4785 = vmatprep.subr.mxu0 %v4700
        %4786 = vmatpush1.msra.mxu0 %v4699
        %4787 = vmatprep.subr.mxu0 0.0
        %4788 = vmatpush1.msra.mxu0 0.0
        %4789 = vmatprep.subr.mxu0 0.0
        %4790 = vmatpush1.msra.mxu0 0.0
        %4791 = vmatprep.subr.mxu0 0.0
        %4792 = vmatpush1.msra.mxu0 0.0
        %4793 = vmatprep.subr.mxu0 0.0
        %4794 = vmatpush1.msra.mxu0 0.0
        %4795 = vmatprep.subr.mxu0 0.0
        %4796 = vmatpush1.msra.mxu0 0.0
        %4797 = vmatprep.subr.mxu0 0.0
        %4798 = vmatpush1.msra.mxu0 0.0
        %4799 = vmatprep.subr.mxu0 0.0
        %4800 = vmatpush1.msra.mxu0 0.0
        %4801 = vmatprep.subr.mxu0 0.0
        %4802 = vmatpush1.msra.mxu0 0.0
        %4803 = vmatprep.subr.mxu0 0.0
        %4804 = vmatpush1.msra.mxu0 0.0
        %4805 = vmatprep.subr.mxu0 0.0
        %4806 = vmatpush1.msra.mxu0 0.0
        %4807 = vmatprep.subr.mxu0 0.0
        %4808 = vmatpush1.msra.mxu0 0.0
        %4809 = vmatprep.subr.mxu0 0.0
        %4810 = vmatpush1.msra.mxu0 0.0
        %4811 = vmatprep.subr.mxu0 0.0
        %4812 = vmatpush1.msra.mxu0 0.0
        %4813 = vmatprep.subr.mxu0 0.0
        %4814 = vmatpush1.msra.mxu0 0.0
        %4815 = vmatprep.subr.mxu0 0.0
        %4816 = vmatpush1.msra.mxu0 0.0
        %4817 = vmatprep.subr.mxu0 0.0
        %4818 = vmatpush1.msra.mxu0 0.0
        %4819 = vmatprep.subr.mxu0 0.0
        %4820 = vmatpush1.msra.mxu0 0.0
        %4821 = vmatprep.subr.mxu0 0.0
        %4822 = vmatpush1.msra.mxu0 0.0
        %4823 = vmatprep.subr.mxu0 0.0
        %4824 = vmatpush1.msra.mxu0 0.0
        %4825 = vmatprep.subr.mxu0 0.0
        %4826 = vmatpush1.msra.mxu0 0.0
        %4827 = vmatprep.subr.mxu0 0.0
        %4828 = vmatpush1.msra.mxu0 0.0
        %4829 = vmatprep.subr.mxu0 0.0
        %4830 = vmatpush1.msra.mxu0 0.0
        %4831 = vmatprep.subr.mxu0 0.0
        %4832 = vmatpush1.msra.mxu0 0.0
        %4833 = vmatprep.subr.mxu0 0.0
        %4834 = vmatpush1.msra.mxu0 0.0
        %4835 = vmatprep.subr.mxu0 0.0
        %4836 = vmatpush1.msra.mxu0 0.0
        %4837 = vmatprep.subr.mxu0 0.0
        %4838 = vmatpush1.msra.mxu0 0.0
        %4839 = vmatprep.subr.mxu0 0.0
        %4840 = vmatpush1.msra.mxu0 0.0
        %4841 = vmatprep.subr.mxu0 0.0
        %4842 = vmatpush1.msra.mxu0 0.0
        %4843 = vmatprep.subr.mxu0 0.0
        %4844 = vmatpush1.msra.mxu0 0.0
        %4845 = vmatprep.subr.mxu0 0.0
        %4846 = vmatpush1.msra.mxu0 0.0
        %4847 = vmatprep.mubr.f32.mxu0 0.0
        %4848 = vmatmul.mubr.f32.gmra.mrb[0].mxu0 %v4710
        %v4849 = vpop.f32.mrb[0].mxu0
        %v4850 = vadd.f32 0.0, %v4849
        %v4851 = vpop.f32.mrb[0].mxu0
        %v4852 = vadd.f32 0.0, %v4851
        %4853 = vdwg.mxu0
        %v4854 = vadd.f32 %v4668, %v4779
        %v4855 = vadd.f32 %v4669, %v4781
        %v4856 = vadd.f32 %v4670, %v4850
        %v4857 = vadd.f32 %v4671, %v4852
        %s4858 = scalar_lea.vmem %s3, 192
        %v4859 = vld [vmem:[%s4858] sm:$0xff]
        %4860 = vrot.lane.b32.xlu0 %v420, 40
        %v4861 = vpop.permute.xlu0 %4860
        %4862 = vrot.lane.b32.xlu0 %v421, 40
        %v4863 = vpop.permute.xlu0 %4862
        %4864 = vrot.lane.b32.xlu0 %v422, 40
        %v4865 = vpop.permute.xlu0 %4864
        %4866 = vrot.lane.b32.xlu0 %v423, 40
        %v4867 = vpop.permute.xlu0 %4866
        %4868 = vrot.lane.b32.xlu0 0.0, 40
        %v4869 = vpop.permute.xlu0 %4868
        %4870 = vrot.lane.b32.xlu0 %v424, 40
        %v4871 = vpop.permute.xlu0 %4870
        %4872 = vrot.lane.b32.xlu0 %v425, 40
        %v4873 = vpop.permute.xlu0 %4872
        %4874 = vrot.lane.b32.xlu0 %v426, 40
        %v4875 = vpop.permute.xlu0 %4874
        %4876 = vrot.lane.b32.xlu0 %v427, 40
        %v4877 = vpop.permute.xlu0 %4876
        %vm4878 = vcmask 326656
        %v4879 = vsel %vm4878, %v4861, %v4863
        %v4880 = vsel %vm4878, %v4863, %v4865
        %v4881 = vsel %vm4878, %v4865, %v4867
        %v4882 = vsel %vm4878, %v4867, %v4869
        %v4883 = vsel %vm4878, %v4871, %v4873
        %v4884 = vsel %vm4878, %v4873, %v4875
        %v4885 = vsel %vm4878, %v4875, %v4877
        %v4886 = vsel %vm4878, %v4877, %v4869
        %v4896 = vsel %vm475, %v4859, 0
        %4898 = vmatprep.subr.mxu0 %v4880
        %4899 = vmatpush1.msra.mxu0 %v4879
        %4900 = vmatprep.subr.mxu0 %v4884
        %4901 = vmatpush1.msra.mxu0 %v4883
        %4902 = vmatprep.subr.mxu0 0.0
        %4903 = vmatpush1.msra.mxu0 0.0
        %4904 = vmatprep.subr.mxu0 0.0
        %4905 = vmatpush1.msra.mxu0 0.0
        %4906 = vmatprep.subr.mxu0 0.0
        %4907 = vmatpush1.msra.mxu0 0.0
        %4908 = vmatprep.subr.mxu0 0.0
        %4909 = vmatpush1.msra.mxu0 0.0
        %4910 = vmatprep.subr.mxu0 0.0
        %4911 = vmatpush1.msra.mxu0 0.0
        %4912 = vmatprep.subr.mxu0 0.0
        %4913 = vmatpush1.msra.mxu0 0.0
        %4914 = vmatprep.subr.mxu0 0.0
        %4915 = vmatpush1.msra.mxu0 0.0
        %4916 = vmatprep.subr.mxu0 0.0
        %4917 = vmatpush1.msra.mxu0 0.0
        %4918 = vmatprep.subr.mxu0 0.0
        %4919 = vmatpush1.msra.mxu0 0.0
        %4920 = vmatprep.subr.mxu0 0.0
        %4921 = vmatpush1.msra.mxu0 0.0
        %4922 = vmatprep.subr.mxu0 0.0
        %4923 = vmatpush1.msra.mxu0 0.0
        %4924 = vmatprep.subr.mxu0 0.0
        %4925 = vmatpush1.msra.mxu0 0.0
        %4926 = vmatprep.subr.mxu0 0.0
        %4927 = vmatpush1.msra.mxu0 0.0
        %4928 = vmatprep.subr.mxu0 0.0
        %4929 = vmatpush1.msra.mxu0 0.0
        %4930 = vmatprep.subr.mxu0 0.0
        %4931 = vmatpush1.msra.mxu0 0.0
        %4932 = vmatprep.subr.mxu0 0.0
        %4933 = vmatpush1.msra.mxu0 0.0
        %4934 = vmatprep.subr.mxu0 0.0
        %4935 = vmatpush1.msra.mxu0 0.0
        %4936 = vmatprep.subr.mxu0 0.0
        %4937 = vmatpush1.msra.mxu0 0.0
        %4938 = vmatprep.subr.mxu0 0.0
        %4939 = vmatpush1.msra.mxu0 0.0
        %4940 = vmatprep.subr.mxu0 0.0
        %4941 = vmatpush1.msra.mxu0 0.0
        %4942 = vmatprep.subr.mxu0 0.0
        %4943 = vmatpush1.msra.mxu0 0.0
        %4944 = vmatprep.subr.mxu0 0.0
        %4945 = vmatpush1.msra.mxu0 0.0
        %4946 = vmatprep.subr.mxu0 0.0
        %4947 = vmatpush1.msra.mxu0 0.0
        %4948 = vmatprep.subr.mxu0 0.0
        %4949 = vmatpush1.msra.mxu0 0.0
        %4950 = vmatprep.subr.mxu0 0.0
        %4951 = vmatpush1.msra.mxu0 0.0
        %4952 = vmatprep.subr.mxu0 0.0
        %4953 = vmatpush1.msra.mxu0 0.0
        %4954 = vmatprep.subr.mxu0 0.0
        %4955 = vmatpush1.msra.mxu0 0.0
        %4956 = vmatprep.subr.mxu0 0.0
        %4957 = vmatpush1.msra.mxu0 0.0
        %4958 = vmatprep.subr.mxu0 0.0
        %4959 = vmatpush1.msra.mxu0 0.0
        %4960 = vmatprep.subr.mxu0 0.0
        %4961 = vmatpush1.msra.mxu0 0.0
        %4962 = vmatprep.mubr.f32.mxu0 0.0
        %4963 = vmatmul.mubr.f32.gmra.mrb[0].mxu0 %v4896
        %v4964 = vpop.f32.mrb[0].mxu0
        %v4965 = vadd.f32 0.0, %v4964
        %v4966 = vpop.f32.mrb[0].mxu0
        %v4967 = vadd.f32 0.0, %v4966
        %4968 = vdwg.mxu0
        %4969 = vmatprep.subr.mxu0 %v4882
        %4970 = vmatpush1.msra.mxu0 %v4881
        %4971 = vmatprep.subr.mxu0 %v4886
        %4972 = vmatpush1.msra.mxu0 %v4885
        %4973 = vmatprep.subr.mxu0 0.0
        %4974 = vmatpush1.msra.mxu0 0.0
        %4975 = vmatprep.subr.mxu0 0.0
        %4976 = vmatpush1.msra.mxu0 0.0
        %4977 = vmatprep.subr.mxu0 0.0
        %4978 = vmatpush1.msra.mxu0 0.0
        %4979 = vmatprep.subr.mxu0 0.0
        %4980 = vmatpush1.msra.mxu0 0.0
        %4981 = vmatprep.subr.mxu0 0.0
        %4982 = vmatpush1.msra.mxu0 0.0
        %4983 = vmatprep.subr.mxu0 0.0
        %4984 = vmatpush1.msra.mxu0 0.0
        %4985 = vmatprep.subr.mxu0 0.0
        %4986 = vmatpush1.msra.mxu0 0.0
        %4987 = vmatprep.subr.mxu0 0.0
        %4988 = vmatpush1.msra.mxu0 0.0
        %4989 = vmatprep.subr.mxu0 0.0
        %4990 = vmatpush1.msra.mxu0 0.0
        %4991 = vmatprep.subr.mxu0 0.0
        %4992 = vmatpush1.msra.mxu0 0.0
        %4993 = vmatprep.subr.mxu0 0.0
        %4994 = vmatpush1.msra.mxu0 0.0
        %4995 = vmatprep.subr.mxu0 0.0
        %4996 = vmatpush1.msra.mxu0 0.0
        %4997 = vmatprep.subr.mxu0 0.0
        %4998 = vmatpush1.msra.mxu0 0.0
        %4999 = vmatprep.subr.mxu0 0.0
        %5000 = vmatpush1.msra.mxu0 0.0
        %5001 = vmatprep.subr.mxu0 0.0
        %5002 = vmatpush1.msra.mxu0 0.0
        %5003 = vmatprep.subr.mxu0 0.0
        %5004 = vmatpush1.msra.mxu0 0.0
        %5005 = vmatprep.subr.mxu0 0.0
        %5006 = vmatpush1.msra.mxu0 0.0
        %5007 = vmatprep.subr.mxu0 0.0
        %5008 = vmatpush1.msra.mxu0 0.0
        %5009 = vmatprep.subr.mxu0 0.0
        %5010 = vmatpush1.msra.mxu0 0.0
        %5011 = vmatprep.subr.mxu0 0.0
        %5012 = vmatpush1.msra.mxu0 0.0
        %5013 = vmatprep.subr.mxu0 0.0
        %5014 = vmatpush1.msra.mxu0 0.0
        %5015 = vmatprep.subr.mxu0 0.0
        %5016 = vmatpush1.msra.mxu0 0.0
        %5017 = vmatprep.subr.mxu0 0.0
        %5018 = vmatpush1.msra.mxu0 0.0
        %5019 = vmatprep.subr.mxu0 0.0
        %5020 = vmatpush1.msra.mxu0 0.0
        %5021 = vmatprep.subr.mxu0 0.0
        %5022 = vmatpush1.msra.mxu0 0.0
        %5023 = vmatprep.subr.mxu0 0.0
        %5024 = vmatpush1.msra.mxu0 0.0
        %5025 = vmatprep.subr.mxu0 0.0
        %5026 = vmatpush1.msra.mxu0 0.0
        %5027 = vmatprep.subr.mxu0 0.0
        %5028 = vmatpush1.msra.mxu0 0.0
        %5029 = vmatprep.subr.mxu0 0.0
        %5030 = vmatpush1.msra.mxu0 0.0
        %5031 = vmatprep.subr.mxu0 0.0
        %5032 = vmatpush1.msra.mxu0 0.0
        %5033 = vmatprep.mubr.f32.mxu0 0.0
        %5034 = vmatmul.mubr.f32.gmra.mrb[0].mxu0 %v4896
        %v5035 = vpop.f32.mrb[0].mxu0
        %v5036 = vadd.f32 0.0, %v5035
        %v5037 = vpop.f32.mrb[0].mxu0
        %v5038 = vadd.f32 0.0, %v5037
        %5039 = vdwg.mxu0
        %v5040 = vadd.f32 %v4854, %v4965
        %v5041 = vadd.f32 %v4855, %v4967
        %v5042 = vadd.f32 %v4856, %v5036
        %v5043 = vadd.f32 %v4857, %v5038
        %v5044 = vld [vmem:[%s4] sm:$0xff]
        %5046 = vset.pattern.permute.xlu0 0
        %5047 = vperm.xlu0 %5046, %v5044
        %v5048 = vpop.permute.xlu0 %5047
        %v5050 = vadd.f32 %v5040, %v5048
        %v5051 = vadd.f32 %v5041, %v5048
        %v5052 = vadd.f32 %v5042, %v5048
        %v5053 = vadd.f32 %v5043, %v5048
        %v5054 = vmax.f32 %v5050, 0.0
        %v5055 = vmax.f32 %v5051, 0.0
        %v5056 = vmax.f32 %v5052, 0.0
        %v5057 = vmax.f32 %v5053, 0.0
        %v5058 = vld [vmem:[%s5] sm:$0x7]
        %v5059 = vld [vmem:[%s6] sm:$0x7]
        %5061 = vset.pattern.permute.xlu0 0
        %5062 = vperm.xlu0 %5061, %v5059
        %v5063 = vpop.permute.xlu0 %5062
        %vm5065 = vcmask 64512
        %v5067 = vsel %vm5065, %v5058, 0
        %5069 = vmatprep.subr.mxu0 %v5055
        %5070 = vmatpush1.msra.mxu0 %v5054
        %5071 = vmatprep.subr.mxu0 0.0
        %5072 = vmatpush1.msra.mxu0 0.0
        %5073 = vmatprep.subr.mxu0 0.0
        %5074 = vmatpush1.msra.mxu0 0.0
        %5075 = vmatprep.subr.mxu0 0.0
        %5076 = vmatpush1.msra.mxu0 0.0
        %5077 = vmatprep.subr.mxu0 0.0
        %5078 = vmatpush1.msra.mxu0 0.0
        %5079 = vmatprep.subr.mxu0 0.0
        %5080 = vmatpush1.msra.mxu0 0.0
        %5081 = vmatprep.subr.mxu0 0.0
        %5082 = vmatpush1.msra.mxu0 0.0
        %5083 = vmatprep.subr.mxu0 0.0
        %5084 = vmatpush1.msra.mxu0 0.0
        %5085 = vmatprep.subr.mxu0 0.0
        %5086 = vmatpush1.msra.mxu0 0.0
        %5087 = vmatprep.subr.mxu0 0.0
        %5088 = vmatpush1.msra.mxu0 0.0
        %5089 = vmatprep.subr.mxu0 0.0
        %5090 = vmatpush1.msra.mxu0 0.0
        %5091 = vmatprep.subr.mxu0 0.0
        %5092 = vmatpush1.msra.mxu0 0.0
        %5093 = vmatprep.subr.mxu0 0.0
        %5094 = vmatpush1.msra.mxu0 0.0
        %5095 = vmatprep.subr.mxu0 0.0
        %5096 = vmatpush1.msra.mxu0 0.0
        %5097 = vmatprep.subr.mxu0 0.0
        %5098 = vmatpush1.msra.mxu0 0.0
        %5099 = vmatprep.subr.mxu0 0.0
        %5100 = vmatpush1.msra.mxu0 0.0
        %5101 = vmatprep.subr.mxu0 0.0
        %5102 = vmatpush1.msra.mxu0 0.0
        %5103 = vmatprep.subr.mxu0 0.0
        %5104 = vmatpush1.msra.mxu0 0.0
        %5105 = vmatprep.subr.mxu0 0.0
        %5106 = vmatpush1.msra.mxu0 0.0
        %5107 = vmatprep.subr.mxu0 0.0
        %5108 = vmatpush1.msra.mxu0 0.0
        %5109 = vmatprep.subr.mxu0 0.0
        %5110 = vmatpush1.msra.mxu0 0.0
        %5111 = vmatprep.subr.mxu0 0.0
        %5112 = vmatpush1.msra.mxu0 0.0
        %5113 = vmatprep.subr.mxu0 0.0
        %5114 = vmatpush1.msra.mxu0 0.0
        %5115 = vmatprep.subr.mxu0 0.0
        %5116 = vmatpush1.msra.mxu0 0.0
        %5117 = vmatprep.subr.mxu0 0.0
        %5118 = vmatpush1.msra.mxu0 0.0
        %5119 = vmatprep.subr.mxu0 0.0
        %5120 = vmatpush1.msra.mxu0 0.0
        %5121 = vmatprep.subr.mxu0 0.0
        %5122 = vmatpush1.msra.mxu0 0.0
        %5123 = vmatprep.subr.mxu0 0.0
        %5124 = vmatpush1.msra.mxu0 0.0
        %5125 = vmatprep.subr.mxu0 0.0
        %5126 = vmatpush1.msra.mxu0 0.0
        %5127 = vmatprep.subr.mxu0 0.0
        %5128 = vmatpush1.msra.mxu0 0.0
        %5129 = vmatprep.subr.mxu0 0.0
        %5130 = vmatpush1.msra.mxu0 0.0
        %5131 = vmatprep.subr.mxu0 0.0
        %5132 = vmatpush1.msra.mxu0 0.0
        %5133 = vmatprep.mubr.f32.mxu0 0.0
        %5134 = vmatmul.mubr.f32.gmra.mrb[0].mxu0 %v5067
        %v5135 = vpop.f32.mrb[0].mxu0
        %v5136 = vadd.f32 %v5063, %v5135
        %v5137 = vpop.f32.mrb[0].mxu0
        %v5138 = vadd.f32 %v5063, %v5137
        %5139 = vdwg.mxu0
        %5140 = vmatprep.subr.mxu0 %v5057
        %5141 = vmatpush1.msra.mxu0 %v5056
        %5142 = vmatprep.subr.mxu0 0.0
        %5143 = vmatpush1.msra.mxu0 0.0
        %5144 = vmatprep.subr.mxu0 0.0
        %5145 = vmatpush1.msra.mxu0 0.0
        %5146 = vmatprep.subr.mxu0 0.0
        %5147 = vmatpush1.msra.mxu0 0.0
        %5148 = vmatprep.subr.mxu0 0.0
        %5149 = vmatpush1.msra.mxu0 0.0
        %5150 = vmatprep.subr.mxu0 0.0
        %5151 = vmatpush1.msra.mxu0 0.0
        %5152 = vmatprep.subr.mxu0 0.0
        %5153 = vmatpush1.msra.mxu0 0.0
        %5154 = vmatprep.subr.mxu0 0.0
        %5155 = vmatpush1.msra.mxu0 0.0
        %5156 = vmatprep.subr.mxu0 0.0
        %5157 = vmatpush1.msra.mxu0 0.0
        %5158 = vmatprep.subr.mxu0 0.0
        %5159 = vmatpush1.msra.mxu0 0.0
        %5160 = vmatprep.subr.mxu0 0.0
        %5161 = vmatpush1.msra.mxu0 0.0
        %5162 = vmatprep.subr.mxu0 0.0
        %5163 = vmatpush1.msra.mxu0 0.0
        %5164 = vmatprep.subr.mxu0 0.0
        %5165 = vmatpush1.msra.mxu0 0.0
        %5166 = vmatprep.subr.mxu0 0.0
        %5167 = vmatpush1.msra.mxu0 0.0
        %5168 = vmatprep.subr.mxu0 0.0
        %5169 = vmatpush1.msra.mxu0 0.0
        %5170 = vmatprep.subr.mxu0 0.0
        %5171 = vmatpush1.msra.mxu0 0.0
        %5172 = vmatprep.subr.mxu0 0.0
        %5173 = vmatpush1.msra.mxu0 0.0
        %5174 = vmatprep.subr.mxu0 0.0
        %5175 = vmatpush1.msra.mxu0 0.0
        %5176 = vmatprep.subr.mxu0 0.0
        %5177 = vmatpush1.msra.mxu0 0.0
        %5178 = vmatprep.subr.mxu0 0.0
        %5179 = vmatpush1.msra.mxu0 0.0
        %5180 = vmatprep.subr.mxu0 0.0
        %5181 = vmatpush1.msra.mxu0 0.0
        %5182 = vmatprep.subr.mxu0 0.0
        %5183 = vmatpush1.msra.mxu0 0.0
        %5184 = vmatprep.subr.mxu0 0.0
        %5185 = vmatpush1.msra.mxu0 0.0
        %5186 = vmatprep.subr.mxu0 0.0
        %5187 = vmatpush1.msra.mxu0 0.0
        %5188 = vmatprep.subr.mxu0 0.0
        %5189 = vmatpush1.msra.mxu0 0.0
        %5190 = vmatprep.subr.mxu0 0.0
        %5191 = vmatpush1.msra.mxu0 0.0
        %5192 = vmatprep.subr.mxu0 0.0
        %5193 = vmatpush1.msra.mxu0 0.0
        %5194 = vmatprep.subr.mxu0 0.0
        %5195 = vmatpush1.msra.mxu0 0.0
        %5196 = vmatprep.subr.mxu0 0.0
        %5197 = vmatpush1.msra.mxu0 0.0
        %5198 = vmatprep.subr.mxu0 0.0
        %5199 = vmatpush1.msra.mxu0 0.0
        %5200 = vmatprep.subr.mxu0 0.0
        %5201 = vmatpush1.msra.mxu0 0.0
        %5202 = vmatprep.subr.mxu0 0.0
        %5203 = vmatpush1.msra.mxu0 0.0
        %5204 = vmatprep.mubr.f32.mxu0 0.0
        %5205 = vmatmul.mubr.f32.gmra.mrb[0].mxu0 %v5067
        %v5206 = vpop.f32.mrb[0].mxu0
        %v5207 = vadd.f32 %v5063, %v5206
        %v5208 = vpop.f32.mrb[0].mxu0
        %v5209 = vadd.f32 %v5063, %v5208
        %5210 = vdwg.mxu0
        %v5215 = vcombine.low %v5136, %v5138
        %v5216 = vcombine.low %v5207, %v5209
        %5219 = vst [vmem:[%s300] sm:$0x77] %v5215
        %5220 = vst [vmem:[%s300 + $0x8] sm:$0x77] %v5216
        %s5221 = scalar_lea.vmem %s5, 4
        %v5222 = vld [vmem:[%s5221] sm:$0x7]
        %v5223 = vld [vmem:[%s6] sm:$0x7]
        %5225 = vset.pattern.permute.xlu0 0
        %5226 = vperm.xlu0 %5225, %v5223
        %v5227 = vpop.permute.xlu0 %5226
        %5233 = vrot.lane.b32.xlu0 %v5054, 127
        %v5234 = vpop.permute.xlu0 %5233
        %5235 = vrot.lane.b32.xlu0 %v5055, 127
        %v5236 = vpop.permute.xlu0 %5235
        %5237 = vrot.lane.b32.xlu0 %v5056, 127
        %v5238 = vpop.permute.xlu0 %5237
        %5239 = vrot.lane.b32.xlu0 %v5057, 127
        %v5240 = vpop.permute.xlu0 %5239
        %v5241 = vsel %vm458, %v5234, %v5236
        %v5242 = vsel %vm458, %v5236, %v5238
        %v5243 = vsel %vm458, %v5238, %v5240
        %v5244 = vsel %vm458, %v5240, %v449
        %v5250 = vsel %vm5065, %v5222, 0
        %5252 = vmatprep.subr.mxu0 %v5242
        %5253 = vmatpush1.msra.mxu0 %v5241
        %5254 = vmatprep.subr.mxu0 0.0
        %5255 = vmatpush1.msra.mxu0 0.0
        %5256 = vmatprep.subr.mxu0 0.0
        %5257 = vmatpush1.msra.mxu0 0.0
        %5258 = vmatprep.subr.mxu0 0.0
        %5259 = vmatpush1.msra.mxu0 0.0
        %5260 = vmatprep.subr.mxu0 0.0
        %5261 = vmatpush1.msra.mxu0 0.0
        %5262 = vmatprep.subr.mxu0 0.0
        %5263 = vmatpush1.msra.mxu0 0.0
        %5264 = vmatprep.subr.mxu0 0.0
        %5265 = vmatpush1.msra.mxu0 0.0
        %5266 = vmatprep.subr.mxu0 0.0
        %5267 = vmatpush1.msra.mxu0 0.0
        %5268 = vmatprep.subr.mxu0 0.0
        %5269 = vmatpush1.msra.mxu0 0.0
        %5270 = vmatprep.subr.mxu0 0.0
        %5271 = vmatpush1.msra.mxu0 0.0
        %5272 = vmatprep.subr.mxu0 0.0
        %5273 = vmatpush1.msra.mxu0 0.0
        %5274 = vmatprep.subr.mxu0 0.0
        %5275 = vmatpush1.msra.mxu0 0.0
        %5276 = vmatprep.subr.mxu0 0.0
        %5277 = vmatpush1.msra.mxu0 0.0
        %5278 = vmatprep.subr.mxu0 0.0
        %5279 = vmatpush1.msra.mxu0 0.0
        %5280 = vmatprep.subr.mxu0 0.0
        %5281 = vmatpush1.msra.mxu0 0.0
        %5282 = vmatprep.subr.mxu0 0.0
        %5283 = vmatpush1.msra.mxu0 0.0
        %5284 = vmatprep.subr.mxu0 0.0
        %5285 = vmatpush1.msra.mxu0 0.0
        %5286 = vmatprep.subr.mxu0 0.0
        %5287 = vmatpush1.msra.mxu0 0.0
        %5288 = vmatprep.subr.mxu0 0.0
        %5289 = vmatpush1.msra.mxu0 0.0
        %5290 = vmatprep.subr.mxu0 0.0
        %5291 = vmatpush1.msra.mxu0 0.0
        %5292 = vmatprep.subr.mxu0 0.0
        %5293 = vmatpush1.msra.mxu0 0.0
        %5294 = vmatprep.subr.mxu0 0.0
        %5295 = vmatpush1.msra.mxu0 0.0
        %5296 = vmatprep.subr.mxu0 0.0
        %5297 = vmatpush1.msra.mxu0 0.0
        %5298 = vmatprep.subr.mxu0 0.0
        %5299 = vmatpush1.msra.mxu0 0.0
        %5300 = vmatprep.subr.mxu0 0.0
        %5301 = vmatpush1.msra.mxu0 0.0
        %5302 = vmatprep.subr.mxu0 0.0
        %5303 = vmatpush1.msra.mxu0 0.0
        %5304 = vmatprep.subr.mxu0 0.0
        %5305 = vmatpush1.msra.mxu0 0.0
        %5306 = vmatprep.subr.mxu0 0.0
        %5307 = vmatpush1.msra.mxu0 0.0
        %5308 = vmatprep.subr.mxu0 0.0
        %5309 = vmatpush1.msra.mxu0 0.0
        %5310 = vmatprep.subr.mxu0 0.0
        %5311 = vmatpush1.msra.mxu0 0.0
        %5312 = vmatprep.subr.mxu0 0.0
        %5313 = vmatpush1.msra.mxu0 0.0
        %5314 = vmatprep.subr.mxu0 0.0
        %5315 = vmatpush1.msra.mxu0 0.0
        %5316 = vmatprep.mubr.f32.mxu0 0.0
        %5317 = vmatmul.mubr.f32.gmra.mrb[0].mxu0 %v5250
        %v5318 = vpop.f32.mrb[0].mxu0
        %v5319 = vadd.f32 %v5227, %v5318
        %v5320 = vpop.f32.mrb[0].mxu0
        %v5321 = vadd.f32 %v5227, %v5320
        %5322 = vdwg.mxu0
        %5323 = vmatprep.subr.mxu0 %v5244
        %5324 = vmatpush1.msra.mxu0 %v5243
        %5325 = vmatprep.subr.mxu0 0.0
        %5326 = vmatpush1.msra.mxu0 0.0
        %5327 = vmatprep.subr.mxu0 0.0
        %5328 = vmatpush1.msra.mxu0 0.0
        %5329 = vmatprep.subr.mxu0 0.0
        %5330 = vmatpush1.msra.mxu0 0.0
        %5331 = vmatprep.subr.mxu0 0.0
        %5332 = vmatpush1.msra.mxu0 0.0
        %5333 = vmatprep.subr.mxu0 0.0
        %5334 = vmatpush1.msra.mxu0 0.0
        %5335 = vmatprep.subr.mxu0 0.0
        %5336 = vmatpush1.msra.mxu0 0.0
        %5337 = vmatprep.subr.mxu0 0.0
        %5338 = vmatpush1.msra.mxu0 0.0
        %5339 = vmatprep.subr.mxu0 0.0
        %5340 = vmatpush1.msra.mxu0 0.0
        %5341 = vmatprep.subr.mxu0 0.0
        %5342 = vmatpush1.msra.mxu0 0.0
        %5343 = vmatprep.subr.mxu0 0.0
        %5344 = vmatpush1.msra.mxu0 0.0
        %5345 = vmatprep.subr.mxu0 0.0
        %5346 = vmatpush1.msra.mxu0 0.0
        %5347 = vmatprep.subr.mxu0 0.0
        %5348 = vmatpush1.msra.mxu0 0.0
        %5349 = vmatprep.subr.mxu0 0.0
        %5350 = vmatpush1.msra.mxu0 0.0
        %5351 = vmatprep.subr.mxu0 0.0
        %5352 = vmatpush1.msra.mxu0 0.0
        %5353 = vmatprep.subr.mxu0 0.0
        %5354 = vmatpush1.msra.mxu0 0.0
        %5355 = vmatprep.subr.mxu0 0.0
        %5356 = vmatpush1.msra.mxu0 0.0
        %5357 = vmatprep.subr.mxu0 0.0
        %5358 = vmatpush1.msra.mxu0 0.0
        %5359 = vmatprep.subr.mxu0 0.0
        %5360 = vmatpush1.msra.mxu0 0.0
        %5361 = vmatprep.subr.mxu0 0.0
        %5362 = vmatpush1.msra.mxu0 0.0
        %5363 = vmatprep.subr.mxu0 0.0
        %5364 = vmatpush1.msra.mxu0 0.0
        %5365 = vmatprep.subr.mxu0 0.0
        %5366 = vmatpush1.msra.mxu0 0.0
        %5367 = vmatprep.subr.mxu0 0.0
        %5368 = vmatpush1.msra.mxu0 0.0
        %5369 = vmatprep.subr.mxu0 0.0
        %5370 = vmatpush1.msra.mxu0 0.0
        %5371 = vmatprep.subr.mxu0 0.0
        %5372 = vmatpush1.msra.mxu0 0.0
        %5373 = vmatprep.subr.mxu0 0.0
        %5374 = vmatpush1.msra.mxu0 0.0
        %5375 = vmatprep.subr.mxu0 0.0
        %5376 = vmatpush1.msra.mxu0 0.0
        %5377 = vmatprep.subr.mxu0 0.0
        %5378 = vmatpush1.msra.mxu0 0.0
        %5379 = vmatprep.subr.mxu0 0.0
        %5380 = vmatpush1.msra.mxu0 0.0
        %5381 = vmatprep.subr.mxu0 0.0
        %5382 = vmatpush1.msra.mxu0 0.0
        %5383 = vmatprep.subr.mxu0 0.0
        %5384 = vmatpush1.msra.mxu0 0.0
        %5385 = vmatprep.subr.mxu0 0.0
        %5386 = vmatpush1.msra.mxu0 0.0
        %5387 = vmatprep.mubr.f32.mxu0 0.0
        %5388 = vmatmul.mubr.f32.gmra.mrb[0].mxu0 %v5250
        %v5389 = vpop.f32.mrb[0].mxu0
        %v5390 = vadd.f32 %v5227, %v5389
        %v5391 = vpop.f32.mrb[0].mxu0
        %v5392 = vadd.f32 %v5227, %v5391
        %5393 = vdwg.mxu0
        %v5398 = vcombine.low %v5319, %v5321
        %v5399 = vcombine.low %v5390, %v5392
        %s5402 = scalar_lea.vmem %s300, 16
        %5403 = vst [vmem:[%s5402] sm:$0x77] %v5398
        %5404 = vst [vmem:[%s5402 + $0x8] sm:$0x77] %v5399
        %s5405 = scalar_lea.vmem %s5, 8
        %v5406 = vld [vmem:[%s5405] sm:$0x7]
        %v5407 = vld [vmem:[%s6] sm:$0x7]
        %5409 = vset.pattern.permute.xlu0 0
        %5410 = vperm.xlu0 %5409, %v5407
        %v5411 = vpop.permute.xlu0 %5410
        %5413 = vrot.lane.b32.xlu0 %v5054, 107
        %v5414 = vpop.permute.xlu0 %5413
        %5415 = vrot.lane.b32.xlu0 %v5055, 107
        %v5416 = vpop.permute.xlu0 %5415
        %5417 = vrot.lane.b32.xlu0 %v5056, 107
        %v5418 = vpop.permute.xlu0 %5417
        %5419 = vrot.lane.b32.xlu0 %v5057, 107
        %v5420 = vpop.permute.xlu0 %5419
        %v5421 = vsel %vm1344, %v5414, %v5416
        %v5422 = vsel %vm1344, %v5416, %v5418
        %v5423 = vsel %vm1344, %v5418, %v5420
        %v5424 = vsel %vm1344, %v5420, %v1335
        %v5430 = vsel %vm5065, %v5406, 0
        %5432 = vmatprep.subr.mxu0 %v5422
        %5433 = vmatpush1.msra.mxu0 %v5421
        %5434 = vmatprep.subr.mxu0 0.0
        %5435 = vmatpush1.msra.mxu0 0.0
        %5436 = vmatprep.subr.mxu0 0.0
        %5437 = vmatpush1.msra.mxu0 0.0
        %5438 = vmatprep.subr.mxu0 0.0
        %5439 = vmatpush1.msra.mxu0 0.0
        %5440 = vmatprep.subr.mxu0 0.0
        %5441 = vmatpush1.msra.mxu0 0.0
        %5442 = vmatprep.subr.mxu0 0.0
        %5443 = vmatpush1.msra.mxu0 0.0
        %5444 = vmatprep.subr.mxu0 0.0
        %5445 = vmatpush1.msra.mxu0 0.0
        %5446 = vmatprep.subr.mxu0 0.0
        %5447 = vmatpush1.msra.mxu0 0.0
        %5448 = vmatprep.subr.mxu0 0.0
        %5449 = vmatpush1.msra.mxu0 0.0
        %5450 = vmatprep.subr.mxu0 0.0
        %5451 = vmatpush1.msra.mxu0 0.0
        %5452 = vmatprep.subr.mxu0 0.0
        %5453 = vmatpush1.msra.mxu0 0.0
        %5454 = vmatprep.subr.mxu0 0.0
        %5455 = vmatpush1.msra.mxu0 0.0
        %5456 = vmatprep.subr.mxu0 0.0
        %5457 = vmatpush1.msra.mxu0 0.0
        %5458 = vmatprep.subr.mxu0 0.0
        %5459 = vmatpush1.msra.mxu0 0.0
        %5460 = vmatprep.subr.mxu0 0.0
        %5461 = vmatpush1.msra.mxu0 0.0
        %5462 = vmatprep.subr.mxu0 0.0
        %5463 = vmatpush1.msra.mxu0 0.0
        %5464 = vmatprep.subr.mxu0 0.0
        %5465 = vmatpush1.msra.mxu0 0.0
        %5466 = vmatprep.subr.mxu0 0.0
        %5467 = vmatpush1.msra.mxu0 0.0
        %5468 = vmatprep.subr.mxu0 0.0
        %5469 = vmatpush1.msra.mxu0 0.0
        %5470 = vmatprep.subr.mxu0 0.0
        %5471 = vmatpush1.msra.mxu0 0.0
        %5472 = vmatprep.subr.mxu0 0.0
        %5473 = vmatpush1.msra.mxu0 0.0
        %5474 = vmatprep.subr.mxu0 0.0
        %5475 = vmatpush1.msra.mxu0 0.0
        %5476 = vmatprep.subr.mxu0 0.0
        %5477 = vmatpush1.msra.mxu0 0.0
        %5478 = vmatprep.subr.mxu0 0.0
        %5479 = vmatpush1.msra.mxu0 0.0
        %5480 = vmatprep.subr.mxu0 0.0
        %5481 = vmatpush1.msra.mxu0 0.0
        %5482 = vmatprep.subr.mxu0 0.0
        %5483 = vmatpush1.msra.mxu0 0.0
        %5484 = vmatprep.subr.mxu0 0.0
        %5485 = vmatpush1.msra.mxu0 0.0
        %5486 = vmatprep.subr.mxu0 0.0
        %5487 = vmatpush1.msra.mxu0 0.0
        %5488 = vmatprep.subr.mxu0 0.0
        %5489 = vmatpush1.msra.mxu0 0.0
        %5490 = vmatprep.subr.mxu0 0.0
        %5491 = vmatpush1.msra.mxu0 0.0
        %5492 = vmatprep.subr.mxu0 0.0
        %5493 = vmatpush1.msra.mxu0 0.0
        %5494 = vmatprep.subr.mxu0 0.0
        %5495 = vmatpush1.msra.mxu0 0.0
        %5496 = vmatprep.mubr.f32.mxu0 0.0
        %5497 = vmatmul.mubr.f32.gmra.mrb[0].mxu0 %v5430
        %v5498 = vpop.f32.mrb[0].mxu0
        %v5499 = vadd.f32 %v5411, %v5498
        %v5500 = vpop.f32.mrb[0].mxu0
        %v5501 = vadd.f32 %v5411, %v5500
        %5502 = vdwg.mxu0
        %5503 = vmatprep.subr.mxu0 %v5424
        %5504 = vmatpush1.msra.mxu0 %v5423
        %5505 = vmatprep.subr.mxu0 0.0
        %5506 = vmatpush1.msra.mxu0 0.0
        %5507 = vmatprep.subr.mxu0 0.0
        %5508 = vmatpush1.msra.mxu0 0.0
        %5509 = vmatprep.subr.mxu0 0.0
        %5510 = vmatpush1.msra.mxu0 0.0
        %5511 = vmatprep.subr.mxu0 0.0
        %5512 = vmatpush1.msra.mxu0 0.0
        %5513 = vmatprep.subr.mxu0 0.0
        %5514 = vmatpush1.msra.mxu0 0.0
        %5515 = vmatprep.subr.mxu0 0.0
        %5516 = vmatpush1.msra.mxu0 0.0
        %5517 = vmatprep.subr.mxu0 0.0
        %5518 = vmatpush1.msra.mxu0 0.0
        %5519 = vmatprep.subr.mxu0 0.0
        %5520 = vmatpush1.msra.mxu0 0.0
        %5521 = vmatprep.subr.mxu0 0.0
        %5522 = vmatpush1.msra.mxu0 0.0
        %5523 = vmatprep.subr.mxu0 0.0
        %5524 = vmatpush1.msra.mxu0 0.0
        %5525 = vmatprep.subr.mxu0 0.0
        %5526 = vmatpush1.msra.mxu0 0.0
        %5527 = vmatprep.subr.mxu0 0.0
        %5528 = vmatpush1.msra.mxu0 0.0
        %5529 = vmatprep.subr.mxu0 0.0
        %5530 = vmatpush1.msra.mxu0 0.0
        %5531 = vmatprep.subr.mxu0 0.0
        %5532 = vmatpush1.msra.mxu0 0.0
        %5533 = vmatprep.subr.mxu0 0.0
        %5534 = vmatpush1.msra.mxu0 0.0
        %5535 = vmatprep.subr.mxu0 0.0
        %5536 = vmatpush1.msra.mxu0 0.0
        %5537 = vmatprep.subr.mxu0 0.0
        %5538 = vmatpush1.msra.mxu0 0.0
        %5539 = vmatprep.subr.mxu0 0.0
        %5540 = vmatpush1.msra.mxu0 0.0
        %5541 = vmatprep.subr.mxu0 0.0
        %5542 = vmatpush1.msra.mxu0 0.0
        %5543 = vmatprep.subr.mxu0 0.0
        %5544 = vmatpush1.msra.mxu0 0.0
        %5545 = vmatprep.subr.mxu0 0.0
        %5546 = vmatpush1.msra.mxu0 0.0
        %5547 = vmatprep.subr.mxu0 0.0
        %5548 = vmatpush1.msra.mxu0 0.0
        %5549 = vmatprep.subr.mxu0 0.0
        %5550 = vmatpush1.msra.mxu0 0.0
        %5551 = vmatprep.subr.mxu0 0.0
        %5552 = vmatpush1.msra.mxu0 0.0
        %5553 = vmatprep.subr.mxu0 0.0
        %5554 = vmatpush1.msra.mxu0 0.0
        %5555 = vmatprep.subr.mxu0 0.0
        %5556 = vmatpush1.msra.mxu0 0.0
        %5557 = vmatprep.subr.mxu0 0.0
        %5558 = vmatpush1.msra.mxu0 0.0
        %5559 = vmatprep.subr.mxu0 0.0
        %5560 = vmatpush1.msra.mxu0 0.0
        %5561 = vmatprep.subr.mxu0 0.0
        %5562 = vmatpush1.msra.mxu0 0.0
        %5563 = vmatprep.subr.mxu0 0.0
        %5564 = vmatpush1.msra.mxu0 0.0
        %5565 = vmatprep.subr.mxu0 0.0
        %5566 = vmatpush1.msra.mxu0 0.0
        %5567 = vmatprep.mubr.f32.mxu0 0.0
        %5568 = vmatmul.mubr.f32.gmra.mrb[0].mxu0 %v5430
        %v5569 = vpop.f32.mrb[0].mxu0
        %v5570 = vadd.f32 %v5411, %v5569
        %v5571 = vpop.f32.mrb[0].mxu0
        %v5572 = vadd.f32 %v5411, %v5571
        %5573 = vdwg.mxu0
        %v5578 = vcombine.low %v5499, %v5501
        %v5579 = vcombine.low %v5570, %v5572
        %s5582 = scalar_lea.vmem %s300, 32
        %5583 = vst [vmem:[%s5582] sm:$0x77] %v5578
        %5584 = vst [vmem:[%s5582 + $0x8] sm:$0x77] %v5579
        %s5585 = scalar_lea.vmem %s5, 12
        %v5586 = vld [vmem:[%s5585] sm:$0x7]
        %v5587 = vld [vmem:[%s6] sm:$0x7]
        %5589 = vset.pattern.permute.xlu0 0
        %5590 = vperm.xlu0 %5589, %v5587
        %v5591 = vpop.permute.xlu0 %5590
        %5593 = vrot.lane.b32.xlu0 %v5054, 106
        %v5594 = vpop.permute.xlu0 %5593
        %5595 = vrot.lane.b32.xlu0 %v5055, 106
        %v5596 = vpop.permute.xlu0 %5595
        %5597 = vrot.lane.b32.xlu0 %v5056, 106
        %v5598 = vpop.permute.xlu0 %5597
        %5599 = vrot.lane.b32.xlu0 %v5057, 106
        %v5600 = vpop.permute.xlu0 %5599
        %v5601 = vsel %vm1530, %v5594, %v5596
        %v5602 = vsel %vm1530, %v5596, %v5598
        %v5603 = vsel %vm1530, %v5598, %v5600
        %v5604 = vsel %vm1530, %v5600, %v1521
        %v5610 = vsel %vm5065, %v5586, 0
        %5612 = vmatprep.subr.mxu0 %v5602
        %5613 = vmatpush1.msra.mxu0 %v5601
        %5614 = vmatprep.subr.mxu0 0.0
        %5615 = vmatpush1.msra.mxu0 0.0
        %5616 = vmatprep.subr.mxu0 0.0
        %5617 = vmatpush1.msra.mxu0 0.0
        %5618 = vmatprep.subr.mxu0 0.0
        %5619 = vmatpush1.msra.mxu0 0.0
        %5620 = vmatprep.subr.mxu0 0.0
        %5621 = vmatpush1.msra.mxu0 0.0
        %5622 = vmatprep.subr.mxu0 0.0
        %5623 = vmatpush1.msra.mxu0 0.0
        %5624 = vmatprep.subr.mxu0 0.0
        %5625 = vmatpush1.msra.mxu0 0.0
        %5626 = vmatprep.subr.mxu0 0.0
        %5627 = vmatpush1.msra.mxu0 0.0
        %5628 = vmatprep.subr.mxu0 0.0
        %5629 = vmatpush1.msra.mxu0 0.0
        %5630 = vmatprep.subr.mxu0 0.0
        %5631 = vmatpush1.msra.mxu0 0.0
        %5632 = vmatprep.subr.mxu0 0.0
        %5633 = vmatpush1.msra.mxu0 0.0
        %5634 = vmatprep.subr.mxu0 0.0
        %5635 = vmatpush1.msra.mxu0 0.0
        %5636 = vmatprep.subr.mxu0 0.0
        %5637 = vmatpush1.msra.mxu0 0.0
        %5638 = vmatprep.subr.mxu0 0.0
        %5639 = vmatpush1.msra.mxu0 0.0
        %5640 = vmatprep.subr.mxu0 0.0
        %5641 = vmatpush1.msra.mxu0 0.0
        %5642 = vmatprep.subr.mxu0 0.0
        %5643 = vmatpush1.msra.mxu0 0.0
        %5644 = vmatprep.subr.mxu0 0.0
        %5645 = vmatpush1.msra.mxu0 0.0
        %5646 = vmatprep.subr.mxu0 0.0
        %5647 = vmatpush1.msra.mxu0 0.0
        %5648 = vmatprep.subr.mxu0 0.0
        %5649 = vmatpush1.msra.mxu0 0.0
        %5650 = vmatprep.subr.mxu0 0.0
        %5651 = vmatpush1.msra.mxu0 0.0
        %5652 = vmatprep.subr.mxu0 0.0
        %5653 = vmatpush1.msra.mxu0 0.0
        %5654 = vmatprep.subr.mxu0 0.0
        %5655 = vmatpush1.msra.mxu0 0.0
        %5656 = vmatprep.subr.mxu0 0.0
        %5657 = vmatpush1.msra.mxu0 0.0
        %5658 = vmatprep.subr.mxu0 0.0
        %5659 = vmatpush1.msra.mxu0 0.0
        %5660 = vmatprep.subr.mxu0 0.0
        %5661 = vmatpush1.msra.mxu0 0.0
        %5662 = vmatprep.subr.mxu0 0.0
        %5663 = vmatpush1.msra.mxu0 0.0
        %5664 = vmatprep.subr.mxu0 0.0
        %5665 = vmatpush1.msra.mxu0 0.0
        %5666 = vmatprep.subr.mxu0 0.0
        %5667 = vmatpush1.msra.mxu0 0.0
        %5668 = vmatprep.subr.mxu0 0.0
        %5669 = vmatpush1.msra.mxu0 0.0
        %5670 = vmatprep.subr.mxu0 0.0
        %5671 = vmatpush1.msra.mxu0 0.0
        %5672 = vmatprep.subr.mxu0 0.0
        %5673 = vmatpush1.msra.mxu0 0.0
        %5674 = vmatprep.subr.mxu0 0.0
        %5675 = vmatpush1.msra.mxu0 0.0
        %5676 = vmatprep.mubr.f32.mxu0 0.0
        %5677 = vmatmul.mubr.f32.gmra.mrb[0].mxu0 %v5610
        %v5678 = vpop.f32.mrb[0].mxu0
        %v5679 = vadd.f32 %v5591, %v5678
        %v5680 = vpop.f32.mrb[0].mxu0
        %v5681 = vadd.f32 %v5591, %v5680
        %5682 = vdwg.mxu0
        %5683 = vmatprep.subr.mxu0 %v5604
        %5684 = vmatpush1.msra.mxu0 %v5603
        %5685 = vmatprep.subr.mxu0 0.0
        %5686 = vmatpush1.msra.mxu0 0.0
        %5687 = vmatprep.subr.mxu0 0.0
        %5688 = vmatpush1.msra.mxu0 0.0
        %5689 = vmatprep.subr.mxu0 0.0
        %5690 = vmatpush1.msra.mxu0 0.0
        %5691 = vmatprep.subr.mxu0 0.0
        %5692 = vmatpush1.msra.mxu0 0.0
        %5693 = vmatprep.subr.mxu0 0.0
        %5694 = vmatpush1.msra.mxu0 0.0
        %5695 = vmatprep.subr.mxu0 0.0
        %5696 = vmatpush1.msra.mxu0 0.0
        %5697 = vmatprep.subr.mxu0 0.0
        %5698 = vmatpush1.msra.mxu0 0.0
        %5699 = vmatprep.subr.mxu0 0.0
        %5700 = vmatpush1.msra.mxu0 0.0
        %5701 = vmatprep.subr.mxu0 0.0
        %5702 = vmatpush1.msra.mxu0 0.0
        %5703 = vmatprep.subr.mxu0 0.0
        %5704 = vmatpush1.msra.mxu0 0.0
        %5705 = vmatprep.subr.mxu0 0.0
        %5706 = vmatpush1.msra.mxu0 0.0
        %5707 = vmatprep.subr.mxu0 0.0
        %5708 = vmatpush1.msra.mxu0 0.0
        %5709 = vmatprep.subr.mxu0 0.0
        %5710 = vmatpush1.msra.mxu0 0.0
        %5711 = vmatprep.subr.mxu0 0.0
        %5712 = vmatpush1.msra.mxu0 0.0
        %5713 = vmatprep.subr.mxu0 0.0
        %5714 = vmatpush1.msra.mxu0 0.0
        %5715 = vmatprep.subr.mxu0 0.0
        %5716 = vmatpush1.msra.mxu0 0.0
        %5717 = vmatprep.subr.mxu0 0.0
        %5718 = vmatpush1.msra.mxu0 0.0
        %5719 = vmatprep.subr.mxu0 0.0
        %5720 = vmatpush1.msra.mxu0 0.0
        %5721 = vmatprep.subr.mxu0 0.0
        %5722 = vmatpush1.msra.mxu0 0.0
        %5723 = vmatprep.subr.mxu0 0.0
        %5724 = vmatpush1.msra.mxu0 0.0
        %5725 = vmatprep.subr.mxu0 0.0
        %5726 = vmatpush1.msra.mxu0 0.0
        %5727 = vmatprep.subr.mxu0 0.0
        %5728 = vmatpush1.msra.mxu0 0.0
        %5729 = vmatprep.subr.mxu0 0.0
        %5730 = vmatpush1.msra.mxu0 0.0
        %5731 = vmatprep.subr.mxu0 0.0
        %5732 = vmatpush1.msra.mxu0 0.0
        %5733 = vmatprep.subr.mxu0 0.0
        %5734 = vmatpush1.msra.mxu0 0.0
        %5735 = vmatprep.subr.mxu0 0.0
        %5736 = vmatpush1.msra.mxu0 0.0
        %5737 = vmatprep.subr.mxu0 0.0
        %5738 = vmatpush1.msra.mxu0 0.0
        %5739 = vmatprep.subr.mxu0 0.0
        %5740 = vmatpush1.msra.mxu0 0.0
        %5741 = vmatprep.subr.mxu0 0.0
        %5742 = vmatpush1.msra.mxu0 0.0
        %5743 = vmatprep.subr.mxu0 0.0
        %5744 = vmatpush1.msra.mxu0 0.0
        %5745 = vmatprep.subr.mxu0 0.0
        %5746 = vmatpush1.msra.mxu0 0.0
        %5747 = vmatprep.mubr.f32.mxu0 0.0
        %5748 = vmatmul.mubr.f32.gmra.mrb[0].mxu0 %v5610
        %v5749 = vpop.f32.mrb[0].mxu0
        %v5750 = vadd.f32 %v5591, %v5749
        %v5751 = vpop.f32.mrb[0].mxu0
        %v5752 = vadd.f32 %v5591, %v5751
        %5753 = vdwg.mxu0
        %v5758 = vcombine.low %v5679, %v5681
        %v5759 = vcombine.low %v5750, %v5752
        %s5762 = scalar_lea.vmem %s300, 48
        %5763 = vst [vmem:[%s5762] sm:$0x77] %v5758
        %5764 = vst [vmem:[%s5762 + $0x8] sm:$0x77] %v5759
        %p5765 = scmp.lt.s32.totalorder %s21, 1
        %s5766 = scalar_select %p5765, %s21, 1
        %s5767 = smul.addr %s5766, 16
        %s5768 = smul.addr %s5767, 4
        %s5769 = scalar_lea.vmem %s7, %s5768
        // Predicated region
        $region61: #{senn_decoder_forward.1} parent=47 // pred_check
          %p5770 = pneg %p186
        $region62: #{senn_decoder_forward.1} parent=47 // pred_check_branch
          %5772 = sbr.rel (%p5770) target = $region64
        $region63: #{senn_decoder_forward.1} parent=47 // pred_region
          _
        $region64: #{senn_decoder_forward.1} parent=47 // pred_fallthru
          _
      $region48: #{senn_decoder_forward.1} parent=5 // pred_fallthru
        _
      %p5773 = scmp.le.s32.totalorder 2, %s16
      // Predicated region
      $region65: #{senn_decoder_forward.1} parent=5 // pred_check
        %p5774 = pneg %p5773
      $region66: #{senn_decoder_forward.1} parent=5 // pred_check_branch
        %5776 = sbr.rel (%p5774) target = $region68
      $region67: #{senn_decoder_forward.1} parent=5 // pred_region
        %s5777 = ssub.s32 %s16, 2
        // Predicated region
        $region69: #{senn_decoder_forward.1} parent=67 // pred_check
          %p5778 = pneg %p192
        $region70: #{senn_decoder_forward.1} parent=67 // pred_check_branch
          %5780 = sbr.rel (%p5778) target = $region72
        $region71: #{senn_decoder_forward.1} parent=67 // pred_region
          %p5781 = scmp.lt.s32.totalorder %s22, 1
          %s5782 = scalar_select %p5781, %s22, 1
          %s5783 = smul.addr %s5782, 16
          %s5784 = smul.addr %s5783, 4
          %s5785 = scalar_lea.vmem %s7, %s5784
        $region72: #{senn_decoder_forward.1} parent=67 // pred_fallthru
          _
      $region68: #{senn_decoder_forward.1} parent=5 // pred_fallthru
        _
    $region6: #{senn_decoder_forward.1} parent=1 // loop_footer
      %s20 = sadd.s32 1, %s16
    $region7: #{senn_decoder_forward.1} parent=1 // loop_footer_branch
      %15 = sbr.rel target = $region3
    $region8: #{senn_decoder_forward.1} parent=1 // loop_exit
      _
    %5786 = vsyncpa [#allocation3], 1
    %s5787 = scalar_lea.sflag [#allocation3], 1
    %5788 = vsyncpa %s5787, 1
    %5789 = vsyncpa [#allocation7], 1
    %5790 = vsyncpa [#allocation4], 1
    %s5791 = scalar_lea.sflag [#allocation4], 1
    %5792 = vsyncpa %s5791, 1

</llo_original>
